<compile_context>
chip_gen: v7x
topology: tpu7x:2x2x1
jax: 0.10.0
libtpu: 0.0.40
codegen_flags: <defaults>
</compile_context>

<pallas_src>
import functools

import jax
import jax.numpy as jnp
from jax import lax
from jax.experimental import pallas as pl
from jax.experimental.pallas import tpu as pltpu


# -----------------------------------------------------------------------------
# Fused encoder kernel (one grid step == one encoder layer)
# -----------------------------------------------------------------------------
def _layernorm(v, g, b, eps=1e-5):
    mu = jnp.mean(v, axis=-1, keepdims=True)
    var = jnp.mean((v - mu) ** 2, axis=-1, keepdims=True)
    return (v - mu) * lax.rsqrt(var + eps) * g + b


def _encoder_kernel(x_ref,
                    qkv_w_ref, qkv_b_ref, out_w_ref, out_b_ref,
                    ff1_w_ref, ff1_b_ref, ff2_w_ref, ff2_b_ref,
                    n1g_ref, n1b_ref, n2g_ref, n2b_ref,
                    ng_ref, nb_ref,
                    o_ref, act_ref, *, batch, seq, num_heads):
    l = pl.program_id(0)
    E = x_ref.shape[-1]
    hd = E // num_heads
    scale = 1.0 / (hd ** 0.5)

    # Load the input activation into the resident VMEM scratch at layer 0.
    @pl.when(l == 0)
    def _():
        act_ref[...] = x_ref[...].astype(jnp.float32)

    x = act_ref[...]                                            # (M, E) f32

    # ---------------- self-attention sub-block -----------------------------
    h = _layernorm(x, n1g_ref[...], n1b_ref[...])
    qkv = jnp.dot(h, qkv_w_ref[...],
                  preferred_element_type=jnp.float32) + qkv_b_ref[...]   # (M, 3E)

    # Head split done in-kernel with static slices, matching the PyTorch
    # reshape(B, S, H, 3*hd).transpose(1, 2).chunk(3, dim=-1) ordering:
    # head h occupies columns [h*3*hd, (h+1)*3*hd) laid out as [q | k | v].
    batch_rows = []
    for b in range(batch):
        r0, r1 = b * seq, (b + 1) * seq
        head_cols = []
        for hh in range(num_heads):
            c0 = hh * 3 * hd
            q = qkv[r0:r1, c0:c0 + hd] * scale                  # (S, hd)
            k = qkv[r0:r1, c0 + hd:c0 + 2 * hd]                 # (S, hd)
            v = qkv[r0:r1, c0 + 2 * hd:c0 + 3 * hd]             # (S, hd)
            # scores = q @ k^T via dot_general (contract last dims, no transpose op)
            s = lax.dot_general(q, k, (((1,), (1,)), ((), ())),
                                preferred_element_type=jnp.float32)      # (S, S)
            s = s - jnp.max(s, axis=-1, keepdims=True)
            p = jnp.exp(s)
            p = p * pl.reciprocal(jnp.sum(p, axis=-1, keepdims=True), approx=True)
            head_cols.append(jnp.dot(p, v, preferred_element_type=jnp.float32))
        batch_rows.append(jnp.concatenate(head_cols, axis=-1))  # (S, E)
    attn = jnp.concatenate(batch_rows, axis=0)                  # (M, E)

    attn = jnp.dot(attn, out_w_ref[...],
                   preferred_element_type=jnp.float32) + out_b_ref[...]
    x = x + attn                                                # fused residual

    # ---------------- feed-forward sub-block -------------------------------
    h = _layernorm(x, n2g_ref[...], n2b_ref[...])
    h = jnp.maximum(jnp.dot(h, ff1_w_ref[...],
                            preferred_element_type=jnp.float32) + ff1_b_ref[...],
                    0.0)
    h = jnp.dot(h, ff2_w_ref[...],
                preferred_element_type=jnp.float32) + ff2_b_ref[...]
    x = x + h                                                   # fused residual

    act_ref[...] = x                                            # carry to next layer

    # Final LayerNorm + the single HBM store, only after the last layer.
    @pl.when(l == pl.num_programs(0) - 1)
    def _():
        o_ref[...] = _layernorm(x, ng_ref[...], nb_ref[...]).astype(o_ref.dtype)


# -----------------------------------------------------------------------------
# Wrapper: one pallas_call for the whole encoder
# -----------------------------------------------------------------------------
def transformer_encoder(x, params, num_heads):
    B, S, E = x.shape
    M = B * S
    L = params["qkv_w"].shape[0]
    F = params["ff1_w"].shape[2]
    E3 = 3 * E

    kernel = functools.partial(_encoder_kernel, batch=B, seq=S, num_heads=num_heads)

    def layer_spec(*dims):
        # Stacked per-layer parameter: leading layer dim squeezed, indexed by l.
        n = len(dims)
        return pl.BlockSpec((None,) + tuple(dims), lambda l, n=n: (l,) + (0,) * n)

    def full_spec(*dims):
        # Same block every grid step -> DMA'd once, resident in VMEM.
        n = len(dims)
        return pl.BlockSpec(tuple(dims), lambda l, n=n: (0,) * n)

    out2d = pl.pallas_call(
        kernel,
        out_shape=jax.ShapeDtypeStruct((M, E), x.dtype),
        grid=(L,),
        in_specs=[
            full_spec(M, E),                        # x
            layer_spec(E, E3), layer_spec(1, E3),   # qkv proj
            layer_spec(E, E),  layer_spec(1, E),    # out proj
            layer_spec(E, F),  layer_spec(1, F),    # ff1
            layer_spec(F, E),  layer_spec(1, E),    # ff2
            layer_spec(1, E),  layer_spec(1, E),    # norm1 gamma/beta
            layer_spec(1, E),  layer_spec(1, E),    # norm2 gamma/beta
            full_spec(1, E),   full_spec(1, E),     # final norm gamma/beta
        ],
        out_specs=full_spec(M, E),
        scratch_shapes=[pltpu.VMEM((M, E), jnp.float32)],
        compiler_params=pltpu.CompilerParams(
            dimension_semantics=("arbitrary",)),    # layers are sequential
    )(
        x.reshape(M, E),
        params["qkv_w"], params["qkv_b"],
        params["out_w"], params["out_b"],
        params["ff1_w"], params["ff1_b"],
        params["ff2_w"], params["ff2_b"],
        params["n1_g"], params["n1_b"],
        params["n2_g"], params["n2_b"],
        params["norm_g"], params["norm_b"],
    )
    return out2d.reshape(B, S, E)


# -----------------------------------------------------------------------------
# Deterministic parameters (stacked per-layer along a leading L axis)
# -----------------------------------------------------------------------------
def init_params(key, embed_dim, num_layers, num_heads, feedforward_dim):
    def dense(k, fan_in, fan_out):
        kw, kb = jax.random.split(k)
        lim = 1.0 / (fan_in ** 0.5)
        w = jax.random.uniform(kw, (fan_in, fan_out), jnp.float32, -lim, lim)
        b = jax.random.uniform(kb, (1, fan_out), jnp.float32, -lim, lim)
        return w, b

    keys = jax.random.split(key, num_layers)
    acc = {k: [] for k in ("qkv_w", "qkv_b", "out_w", "out_b",
                           "ff1_w", "ff1_b", "ff2_w", "ff2_b")}
    for li in range(num_layers):
        lk = jax.random.split(keys[li], 4)
        for name, (fi, fo), kk in (
                ("qkv", (embed_dim, 3 * embed_dim), lk[0]),
                ("out", (embed_dim, embed_dim), lk[1]),
                ("ff1", (embed_dim, feedforward_dim), lk[2]),
                ("ff2", (feedforward_dim, embed_dim), lk[3])):
            w, b = dense(kk, fi, fo)
            acc[name + "_w"].append(w)
            acc[name + "_b"].append(b)

    L, E = num_layers, embed_dim
    params = {k: jnp.stack(v) for k, v in acc.items()}
    params.update(
        n1_g=jnp.ones((L, 1, E), jnp.float32), n1_b=jnp.zeros((L, 1, E), jnp.float32),
        n2_g=jnp.ones((L, 1, E), jnp.float32), n2_b=jnp.zeros((L, 1, E), jnp.float32),
        norm_g=jnp.ones((1, E), jnp.float32),  norm_b=jnp.zeros((1, E), jnp.float32),
    )
    return params


# -----------------------------------------------------------------------------
# Pure-JAX reference (mirrors the PyTorch module) for a numerical sanity check
# -----------------------------------------------------------------------------
def reference_forward(x, params, num_heads):
    B, S, E = x.shape
    hd = E // num_heads
    L = params["qkv_w"].shape[0]

    def ln(v, g, b):
        mu = jnp.mean(v, axis=-1, keepdims=True)
        var = jnp.mean((v - mu) ** 2, axis=-1, keepdims=True)
        return (v - mu) * lax.rsqrt(var + 1e-5) * g + b

    for li in range(L):
        residual = x
        h = ln(x, params["n1_g"][li, 0], params["n1_b"][li, 0])
        qkv = h @ params["qkv_w"][li] + params["qkv_b"][li, 0]          # (B,S,3E)
        qkv = qkv.reshape(B, S, num_heads, 3 * hd).transpose(0, 2, 1, 3)
        q, k, v = jnp.split(qkv, 3, axis=-1)
        q = q / hd ** 0.5
        s = jnp.einsum("bhqd,bhkd->bhqk", q, k)
        p = jax.nn.softmax(s, axis=-1)
        a = jnp.einsum("bhqk,bhkd->bhqd", p, v).transpose(0, 2, 1, 3).reshape(B, S, E)
        a = a @ params["out_w"][li] + params["out_b"][li, 0]
        x = a + residual
        residual = x
        h = ln(x, params["n2_g"][li, 0], params["n2_b"][li, 0])
        h = jax.nn.relu(h @ params["ff1_w"][li] + params["ff1_b"][li, 0])
        h = h @ params["ff2_w"][li] + params["ff2_b"][li, 0]
        x = h + residual
    return ln(x, params["norm_g"][0], params["norm_b"][0])


# -----------------------------------------------------------------------------
if __name__ == "__main__":
    embed_dim = 32
    num_layers = 2
    num_heads = 4
    feedforward_dim = 64
    # dropout = 0.1 -> identity in eval mode

    batch, seq = 2, 8

    key = jax.random.PRNGKey(0)
    kx, kp = jax.random.split(key)
    x = jax.random.normal(kx, (batch, seq, embed_dim), jnp.float32)
    params = init_params(kp, embed_dim, num_layers, num_heads, feedforward_dim)

    fwd = jax.jit(functools.partial(transformer_encoder, num_heads=num_heads))
    out = fwd(x, params)
    jax.block_until_ready(out)
    assert out.shape == (batch, seq, embed_dim)

    ref = reference_forward(x, params, num_heads)
    max_err = float(jnp.max(jnp.abs(out - ref)))
    assert jnp.allclose(out, ref, atol=1e-2, rtol=1e-2), max_err
    print("KERNEL_OK")
</pallas_src>

<mosaic_0001>
module attributes {stable_mosaic.version = 11 : i64} {
  func.func @_encoder_kernel(%arg0: i32, %arg1: memref<16x32xf32, #tpu.memory_space<vmem>>, %arg2: memref<1x32x96xf32, #tpu.memory_space<vmem>>, %arg3: memref<1x1x96xf32, #tpu.memory_space<vmem>>, %arg4: memref<1x32x32xf32, #tpu.memory_space<vmem>>, %arg5: memref<1x1x32xf32, #tpu.memory_space<vmem>>, %arg6: memref<1x32x64xf32, #tpu.memory_space<vmem>>, %arg7: memref<1x1x64xf32, #tpu.memory_space<vmem>>, %arg8: memref<1x64x32xf32, #tpu.memory_space<vmem>>, %arg9: memref<1x1x32xf32, #tpu.memory_space<vmem>>, %arg10: memref<1x1x32xf32, #tpu.memory_space<vmem>>, %arg11: memref<1x1x32xf32, #tpu.memory_space<vmem>>, %arg12: memref<1x1x32xf32, #tpu.memory_space<vmem>>, %arg13: memref<1x1x32xf32, #tpu.memory_space<vmem>>, %arg14: memref<1x32xf32, #tpu.memory_space<vmem>>, %arg15: memref<1x32xf32, #tpu.memory_space<vmem>>, %arg16: memref<16x32xf32, #tpu.memory_space<vmem>>, %arg17: memref<16x32xf32, #tpu.memory_space<vmem>>) attributes {dimension_semantics = [#tpu.dimension_semantics<arbitrary>], iteration_bounds = array<i64: 2>, scalar_prefetch = 0 : i64, scratch_operands = 1 : i64, tpu.core_type = #tpu.core_type<tc>, window_params = [{pipeline_mode = #tpu.pipeline_mode<synchronous>, transform_indices = @transform_0, window_bounds = array<i64: 16, 32>}, {transform_indices = @transform_1, window_bounds = array<i64: 1, 32, 96>}, {transform_indices = @transform_2, window_bounds = array<i64: 1, 1, 96>}, {transform_indices = @transform_3, window_bounds = array<i64: 1, 32, 32>}, {transform_indices = @transform_4, window_bounds = array<i64: 1, 1, 32>}, {transform_indices = @transform_5, window_bounds = array<i64: 1, 32, 64>}, {transform_indices = @transform_6, window_bounds = array<i64: 1, 1, 64>}, {transform_indices = @transform_7, window_bounds = array<i64: 1, 64, 32>}, {transform_indices = @transform_8, window_bounds = array<i64: 1, 1, 32>}, {transform_indices = @transform_9, window_bounds = array<i64: 1, 1, 32>}, {transform_indices = @transform_10, window_bounds = array<i64: 1, 1, 32>}, {transform_indices = @transform_11, window_bounds = array<i64: 1, 1, 32>}, {transform_indices = @transform_12, window_bounds = array<i64: 1, 1, 32>}, {pipeline_mode = #tpu.pipeline_mode<synchronous>, transform_indices = @transform_13, window_bounds = array<i64: 1, 32>}, {pipeline_mode = #tpu.pipeline_mode<synchronous>, transform_indices = @transform_14, window_bounds = array<i64: 1, 32>}, {pipeline_mode = #tpu.pipeline_mode<synchronous>, transform_indices = @transform_15, window_bounds = array<i64: 16, 32>}]} {
    %c0_i32 = arith.constant 0 : i32
    %0 = arith.cmpi eq, %arg0, %c0_i32 : i32
    %1 = arith.extui %0 : i1 to i32
    %c0_i32_0 = arith.constant 0 : i32
    %2 = arith.cmpi ne, %1, %c0_i32_0 : i32
    scf.if %2 {
      %c0_95 = arith.constant 0 : index
      %c0_96 = arith.constant 0 : index
      %231 = vector.load %arg1[%c0_95, %c0_96] : memref<16x32xf32, #tpu.memory_space<vmem>>, vector<16x32xf32>
      %c0_97 = arith.constant 0 : index
      %c0_98 = arith.constant 0 : index
      %232 = vector.load %arg17[%c0_97, %c0_98] : memref<16x32xf32, #tpu.memory_space<vmem>>, vector<16x32xf32>
      tpu.vector_store %arg17[%c0_97, %c0_98], %231 {strides = array<i32>} : memref<16x32xf32, #tpu.memory_space<vmem>>, vector<16x32xf32>,
    } else {
    }
    %c0 = arith.constant 0 : index
    %c0_1 = arith.constant 0 : index
    %3 = vector.load %arg17[%c0, %c0_1] : memref<16x32xf32, #tpu.memory_space<vmem>>, vector<16x32xf32>
    %c0_2 = arith.constant 0 : index
    %c0_3 = arith.constant 0 : index
    %c0_4 = arith.constant 0 : index
    %4 = vector.load %arg10[%c0_2, %c0_3, %c0_4] : memref<1x1x32xf32, #tpu.memory_space<vmem>>, vector<1x1x32xf32>
    %5 = vector.shape_cast %4 : vector<1x1x32xf32> to vector<1x32xf32>
    %c0_5 = arith.constant 0 : index
    %c0_6 = arith.constant 0 : index
    %c0_7 = arith.constant 0 : index
    %6 = vector.load %arg11[%c0_5, %c0_6, %c0_7] : memref<1x1x32xf32, #tpu.memory_space<vmem>>, vector<1x1x32xf32>
    %7 = vector.shape_cast %6 : vector<1x1x32xf32> to vector<1x32xf32>
    %cst = arith.constant dense<0.000000e+00> : vector<16xf32>
    %8 = vector.multi_reduction <add>, %3, %cst [1] : vector<16x32xf32> to vector<16xf32>
    %9 = vector.shape_cast %8 : vector<16xf32> to vector<16x1xf32>
    %cst_8 = arith.constant 3.200000e+01 : f32
    %10 = vector.broadcast %cst_8 : f32 to vector<16x1xf32>
    %11 = arith.divf %9, %10 : vector<16x1xf32>
    %12 = vector.broadcast %11 : vector<16x1xf32> to vector<16x32xf32>
    %13 = arith.subf %3, %12 : vector<16x32xf32>
    %14 = arith.mulf %13, %13 : vector<16x32xf32>
    %cst_9 = arith.constant dense<0.000000e+00> : vector<16xf32>
    %15 = vector.multi_reduction <add>, %14, %cst_9 [1] : vector<16x32xf32> to vector<16xf32>
    %16 = vector.shape_cast %15 : vector<16xf32> to vector<16x1xf32>
    %cst_10 = arith.constant 3.200000e+01 : f32
    %17 = vector.broadcast %cst_10 : f32 to vector<16x1xf32>
    %18 = arith.divf %16, %17 : vector<16x1xf32>
    %19 = vector.broadcast %11 : vector<16x1xf32> to vector<16x32xf32>
    %20 = arith.subf %3, %19 : vector<16x32xf32>
    %cst_11 = arith.constant 9.99999974E-6 : f32
    %21 = vector.broadcast %cst_11 : f32 to vector<16x1xf32>
    %22 = arith.addf %18, %21 : vector<16x1xf32>
    %23 = math.rsqrt %22 : vector<16x1xf32>
    %24 = vector.broadcast %23 : vector<16x1xf32> to vector<16x32xf32>
    %25 = arith.mulf %20, %24 : vector<16x32xf32>
    %26 = vector.broadcast %5 : vector<1x32xf32> to vector<16x32xf32>
    %27 = arith.mulf %25, %26 : vector<16x32xf32>
    %28 = vector.broadcast %7 : vector<1x32xf32> to vector<16x32xf32>
    %29 = arith.addf %27, %28 : vector<16x32xf32>
    %c0_12 = arith.constant 0 : index
    %c0_13 = arith.constant 0 : index
    %c0_14 = arith.constant 0 : index
    %30 = vector.load %arg2[%c0_12, %c0_13, %c0_14] : memref<1x32x96xf32, #tpu.memory_space<vmem>>, vector<1x32x96xf32>
    %31 = vector.shape_cast %30 : vector<1x32x96xf32> to vector<32x96xf32>
    %cst_15 = arith.constant dense<0.000000e+00> : vector<16x96xf32>
    %32 = tpu.matmul %29, %31, %cst_15 {dimension_numbers = #tpu.dot_dimension_numbers<[1], [0], [0], [1], [0, 0, 1, 1], [], []>} : vector<16x32xf32>, vector<32x96xf32>, vector<16x96xf32> -> vector<16x96xf32>
    %c0_16 = arith.constant 0 : index
    %c0_17 = arith.constant 0 : index
    %c0_18 = arith.constant 0 : index
    %33 = vector.load %arg3[%c0_16, %c0_17, %c0_18] : memref<1x1x96xf32, #tpu.memory_space<vmem>>, vector<1x1x96xf32>
    %34 = vector.shape_cast %33 : vector<1x1x96xf32> to vector<1x96xf32>
    %35 = vector.broadcast %34 : vector<1x96xf32> to vector<16x96xf32>
    %36 = arith.addf %32, %35 : vector<16x96xf32>
    %37 = vector.extract_strided_slice %36 {offsets = [0, 0], sizes = [8, 8], strides = [1, 1]} : vector<16x96xf32> to vector<8x8xf32>
    %cst_19 = arith.constant 0.353553385 : f32
    %38 = vector.broadcast %cst_19 : f32 to vector<8x8xf32>
    %39 = arith.mulf %37, %38 : vector<8x8xf32>
    %40 = vector.extract_strided_slice %36 {offsets = [0, 8], sizes = [8, 8], strides = [1, 1]} : vector<16x96xf32> to vector<8x8xf32>
    %41 = vector.extract_strided_slice %36 {offsets = [0, 16], sizes = [8, 8], strides = [1, 1]} : vector<16x96xf32> to vector<8x8xf32>
    %cst_20 = arith.constant dense<0.000000e+00> : vector<8x8xf32>
    %42 = tpu.matmul %39, %40, %cst_20 {dimension_numbers = #tpu.dot_dimension_numbers<[1], [1], [0], [0], [0, 0, 1, 0], [], []>} : vector<8x8xf32>, vector<8x8xf32>, vector<8x8xf32> -> vector<8x8xf32>
    %cst_21 = arith.constant dense<0xFF800000> : vector<8xf32>
    %43 = vector.multi_reduction <maximumf>, %42, %cst_21 [1] : vector<8x8xf32> to vector<8xf32>
    %44 = vector.shape_cast %43 : vector<8xf32> to vector<8x1xf32>
    %45 = vector.broadcast %44 : vector<8x1xf32> to vector<8x8xf32>
    %46 = arith.subf %42, %45 : vector<8x8xf32>
    %47 = math.exp %46 : vector<8x8xf32>
    %cst_22 = arith.constant dense<0.000000e+00> : vector<8xf32>
    %48 = vector.multi_reduction <add>, %47, %cst_22 [1] : vector<8x8xf32> to vector<8xf32>
    %49 = vector.shape_cast %48 : vector<8xf32> to vector<8x1xf32>
    %50 = tpu.reciprocal %49 {approx = true} : vector<8x1xf32> -> vector<8x1xf32>
    %51 = vector.broadcast %50 : vector<8x1xf32> to vector<8x8xf32>
    %52 = arith.mulf %47, %51 : vector<8x8xf32>
    %cst_23 = arith.constant dense<0.000000e+00> : vector<8x8xf32>
    %53 = tpu.matmul %52, %41, %cst_23 {dimension_numbers = #tpu.dot_dimension_numbers<[1], [0], [0], [1], [0, 0, 1, 1], [], []>} : vector<8x8xf32>, vector<8x8xf32>, vector<8x8xf32> -> vector<8x8xf32>
    %54 = vector.extract_strided_slice %36 {offsets = [0, 24], sizes = [8, 8], strides = [1, 1]} : vector<16x96xf32> to vector<8x8xf32>
    %cst_24 = arith.constant 0.353553385 : f32
    %55 = vector.broadcast %cst_24 : f32 to vector<8x8xf32>
    %56 = arith.mulf %54, %55 : vector<8x8xf32>
    %57 = vector.extract_strided_slice %36 {offsets = [0, 32], sizes = [8, 8], strides = [1, 1]} : vector<16x96xf32> to vector<8x8xf32>
    %58 = vector.extract_strided_slice %36 {offsets = [0, 40], sizes = [8, 8], strides = [1, 1]} : vector<16x96xf32> to vector<8x8xf32>
    %cst_25 = arith.constant dense<0.000000e+00> : vector<8x8xf32>
    %59 = tpu.matmul %56, %57, %cst_25 {dimension_numbers = #tpu.dot_dimension_numbers<[1], [1], [0], [0], [0, 0, 1, 0], [], []>} : vector<8x8xf32>, vector<8x8xf32>, vector<8x8xf32> -> vector<8x8xf32>
    %cst_26 = arith.constant dense<0xFF800000> : vector<8xf32>
    %60 = vector.multi_reduction <maximumf>, %59, %cst_26 [1] : vector<8x8xf32> to vector<8xf32>
    %61 = vector.shape_cast %60 : vector<8xf32> to vector<8x1xf32>
    %62 = vector.broadcast %61 : vector<8x1xf32> to vector<8x8xf32>
    %63 = arith.subf %59, %62 : vector<8x8xf32>
    %64 = math.exp %63 : vector<8x8xf32>
    %cst_27 = arith.constant dense<0.000000e+00> : vector<8xf32>
    %65 = vector.multi_reduction <add>, %64, %cst_27 [1] : vector<8x8xf32> to vector<8xf32>
    %66 = vector.shape_cast %65 : vector<8xf32> to vector<8x1xf32>
    %67 = tpu.reciprocal %66 {approx = true} : vector<8x1xf32> -> vector<8x1xf32>
    %68 = vector.broadcast %67 : vector<8x1xf32> to vector<8x8xf32>
    %69 = arith.mulf %64, %68 : vector<8x8xf32>
    %cst_28 = arith.constant dense<0.000000e+00> : vector<8x8xf32>
    %70 = tpu.matmul %69, %58, %cst_28 {dimension_numbers = #tpu.dot_dimension_numbers<[1], [0], [0], [1], [0, 0, 1, 1], [], []>} : vector<8x8xf32>, vector<8x8xf32>, vector<8x8xf32> -> vector<8x8xf32>
    %71 = vector.extract_strided_slice %36 {offsets = [0, 48], sizes = [8, 8], strides = [1, 1]} : vector<16x96xf32> to vector<8x8xf32>
    %cst_29 = arith.constant 0.353553385 : f32
    %72 = vector.broadcast %cst_29 : f32 to vector<8x8xf32>
    %73 = arith.mulf %71, %72 : vector<8x8xf32>
    %74 = vector.extract_strided_slice %36 {offsets = [0, 56], sizes = [8, 8], strides = [1, 1]} : vector<16x96xf32> to vector<8x8xf32>
    %75 = vector.extract_strided_slice %36 {offsets = [0, 64], sizes = [8, 8], strides = [1, 1]} : vector<16x96xf32> to vector<8x8xf32>
    %cst_30 = arith.constant dense<0.000000e+00> : vector<8x8xf32>
    %76 = tpu.matmul %73, %74, %cst_30 {dimension_numbers = #tpu.dot_dimension_numbers<[1], [1], [0], [0], [0, 0, 1, 0], [], []>} : vector<8x8xf32>, vector<8x8xf32>, vector<8x8xf32> -> vector<8x8xf32>
    %cst_31 = arith.constant dense<0xFF800000> : vector<8xf32>
    %77 = vector.multi_reduction <maximumf>, %76, %cst_31 [1] : vector<8x8xf32> to vector<8xf32>
    %78 = vector.shape_cast %77 : vector<8xf32> to vector<8x1xf32>
    %79 = vector.broadcast %78 : vector<8x1xf32> to vector<8x8xf32>
    %80 = arith.subf %76, %79 : vector<8x8xf32>
    %81 = math.exp %80 : vector<8x8xf32>
    %cst_32 = arith.constant dense<0.000000e+00> : vector<8xf32>
    %82 = vector.multi_reduction <add>, %81, %cst_32 [1] : vector<8x8xf32> to vector<8xf32>
    %83 = vector.shape_cast %82 : vector<8xf32> to vector<8x1xf32>
    %84 = tpu.reciprocal %83 {approx = true} : vector<8x1xf32> -> vector<8x1xf32>
    %85 = vector.broadcast %84 : vector<8x1xf32> to vector<8x8xf32>
    %86 = arith.mulf %81, %85 : vector<8x8xf32>
    %cst_33 = arith.constant dense<0.000000e+00> : vector<8x8xf32>
    %87 = tpu.matmul %86, %75, %cst_33 {dimension_numbers = #tpu.dot_dimension_numbers<[1], [0], [0], [1], [0, 0, 1, 1], [], []>} : vector<8x8xf32>, vector<8x8xf32>, vector<8x8xf32> -> vector<8x8xf32>
    %88 = vector.extract_strided_slice %36 {offsets = [0, 72], sizes = [8, 8], strides = [1, 1]} : vector<16x96xf32> to vector<8x8xf32>
    %cst_34 = arith.constant 0.353553385 : f32
    %89 = vector.broadcast %cst_34 : f32 to vector<8x8xf32>
    %90 = arith.mulf %88, %89 : vector<8x8xf32>
    %91 = vector.extract_strided_slice %36 {offsets = [0, 80], sizes = [8, 8], strides = [1, 1]} : vector<16x96xf32> to vector<8x8xf32>
    %92 = vector.extract_strided_slice %36 {offsets = [0, 88], sizes = [8, 8], strides = [1, 1]} : vector<16x96xf32> to vector<8x8xf32>
    %cst_35 = arith.constant dense<0.000000e+00> : vector<8x8xf32>
    %93 = tpu.matmul %90, %91, %cst_35 {dimension_numbers = #tpu.dot_dimension_numbers<[1], [1], [0], [0], [0, 0, 1, 0], [], []>} : vector<8x8xf32>, vector<8x8xf32>, vector<8x8xf32> -> vector<8x8xf32>
    %cst_36 = arith.constant dense<0xFF800000> : vector<8xf32>
    %94 = vector.multi_reduction <maximumf>, %93, %cst_36 [1] : vector<8x8xf32> to vector<8xf32>
    %95 = vector.shape_cast %94 : vector<8xf32> to vector<8x1xf32>
    %96 = vector.broadcast %95 : vector<8x1xf32> to vector<8x8xf32>
    %97 = arith.subf %93, %96 : vector<8x8xf32>
    %98 = math.exp %97 : vector<8x8xf32>
    %cst_37 = arith.constant dense<0.000000e+00> : vector<8xf32>
    %99 = vector.multi_reduction <add>, %98, %cst_37 [1] : vector<8x8xf32> to vector<8xf32>
    %100 = vector.shape_cast %99 : vector<8xf32> to vector<8x1xf32>
    %101 = tpu.reciprocal %100 {approx = true} : vector<8x1xf32> -> vector<8x1xf32>
    %102 = vector.broadcast %101 : vector<8x1xf32> to vector<8x8xf32>
    %103 = arith.mulf %98, %102 : vector<8x8xf32>
    %cst_38 = arith.constant dense<0.000000e+00> : vector<8x8xf32>
    %104 = tpu.matmul %103, %92, %cst_38 {dimension_numbers = #tpu.dot_dimension_numbers<[1], [0], [0], [1], [0, 0, 1, 1], [], []>} : vector<8x8xf32>, vector<8x8xf32>, vector<8x8xf32> -> vector<8x8xf32>
    %105 = tpu.concatenate %53, %70, %87, %104 in 1 : vector<8x8xf32>, vector<8x8xf32>, vector<8x8xf32>, vector<8x8xf32> -> vector<8x32xf32>
    %106 = vector.extract_strided_slice %36 {offsets = [8, 0], sizes = [8, 8], strides = [1, 1]} : vector<16x96xf32> to vector<8x8xf32>
    %cst_39 = arith.constant 0.353553385 : f32
    %107 = vector.broadcast %cst_39 : f32 to vector<8x8xf32>
    %108 = arith.mulf %106, %107 : vector<8x8xf32>
    %109 = vector.extract_strided_slice %36 {offsets = [8, 8], sizes = [8, 8], strides = [1, 1]} : vector<16x96xf32> to vector<8x8xf32>
    %110 = vector.extract_strided_slice %36 {offsets = [8, 16], sizes = [8, 8], strides = [1, 1]} : vector<16x96xf32> to vector<8x8xf32>
    %cst_40 = arith.constant dense<0.000000e+00> : vector<8x8xf32>
    %111 = tpu.matmul %108, %109, %cst_40 {dimension_numbers = #tpu.dot_dimension_numbers<[1], [1], [0], [0], [0, 0, 1, 0], [], []>} : vector<8x8xf32>, vector<8x8xf32>, vector<8x8xf32> -> vector<8x8xf32>
    %cst_41 = arith.constant dense<0xFF800000> : vector<8xf32>
    %112 = vector.multi_reduction <maximumf>, %111, %cst_41 [1] : vector<8x8xf32> to vector<8xf32>
    %113 = vector.shape_cast %112 : vector<8xf32> to vector<8x1xf32>
    %114 = vector.broadcast %113 : vector<8x1xf32> to vector<8x8xf32>
    %115 = arith.subf %111, %114 : vector<8x8xf32>
    %116 = math.exp %115 : vector<8x8xf32>
    %cst_42 = arith.constant dense<0.000000e+00> : vector<8xf32>
    %117 = vector.multi_reduction <add>, %116, %cst_42 [1] : vector<8x8xf32> to vector<8xf32>
    %118 = vector.shape_cast %117 : vector<8xf32> to vector<8x1xf32>
    %119 = tpu.reciprocal %118 {approx = true} : vector<8x1xf32> -> vector<8x1xf32>
    %120 = vector.broadcast %119 : vector<8x1xf32> to vector<8x8xf32>
    %121 = arith.mulf %116, %120 : vector<8x8xf32>
    %cst_43 = arith.constant dense<0.000000e+00> : vector<8x8xf32>
    %122 = tpu.matmul %121, %110, %cst_43 {dimension_numbers = #tpu.dot_dimension_numbers<[1], [0], [0], [1], [0, 0, 1, 1], [], []>} : vector<8x8xf32>, vector<8x8xf32>, vector<8x8xf32> -> vector<8x8xf32>
    %123 = vector.extract_strided_slice %36 {offsets = [8, 24], sizes = [8, 8], strides = [1, 1]} : vector<16x96xf32> to vector<8x8xf32>
    %cst_44 = arith.constant 0.353553385 : f32
    %124 = vector.broadcast %cst_44 : f32 to vector<8x8xf32>
    %125 = arith.mulf %123, %124 : vector<8x8xf32>
    %126 = vector.extract_strided_slice %36 {offsets = [8, 32], sizes = [8, 8], strides = [1, 1]} : vector<16x96xf32> to vector<8x8xf32>
    %127 = vector.extract_strided_slice %36 {offsets = [8, 40], sizes = [8, 8], strides = [1, 1]} : vector<16x96xf32> to vector<8x8xf32>
    %cst_45 = arith.constant dense<0.000000e+00> : vector<8x8xf32>
    %128 = tpu.matmul %125, %126, %cst_45 {dimension_numbers = #tpu.dot_dimension_numbers<[1], [1], [0], [0], [0, 0, 1, 0], [], []>} : vector<8x8xf32>, vector<8x8xf32>, vector<8x8xf32> -> vector<8x8xf32>
    %cst_46 = arith.constant dense<0xFF800000> : vector<8xf32>
    %129 = vector.multi_reduction <maximumf>, %128, %cst_46 [1] : vector<8x8xf32> to vector<8xf32>
    %130 = vector.shape_cast %129 : vector<8xf32> to vector<8x1xf32>
    %131 = vector.broadcast %130 : vector<8x1xf32> to vector<8x8xf32>
    %132 = arith.subf %128, %131 : vector<8x8xf32>
    %133 = math.exp %132 : vector<8x8xf32>
    %cst_47 = arith.constant dense<0.000000e+00> : vector<8xf32>
    %134 = vector.multi_reduction <add>, %133, %cst_47 [1] : vector<8x8xf32> to vector<8xf32>
    %135 = vector.shape_cast %134 : vector<8xf32> to vector<8x1xf32>
    %136 = tpu.reciprocal %135 {approx = true} : vector<8x1xf32> -> vector<8x1xf32>
    %137 = vector.broadcast %136 : vector<8x1xf32> to vector<8x8xf32>
    %138 = arith.mulf %133, %137 : vector<8x8xf32>
    %cst_48 = arith.constant dense<0.000000e+00> : vector<8x8xf32>
    %139 = tpu.matmul %138, %127, %cst_48 {dimension_numbers = #tpu.dot_dimension_numbers<[1], [0], [0], [1], [0, 0, 1, 1], [], []>} : vector<8x8xf32>, vector<8x8xf32>, vector<8x8xf32> -> vector<8x8xf32>
    %140 = vector.extract_strided_slice %36 {offsets = [8, 48], sizes = [8, 8], strides = [1, 1]} : vector<16x96xf32> to vector<8x8xf32>
    %cst_49 = arith.constant 0.353553385 : f32
    %141 = vector.broadcast %cst_49 : f32 to vector<8x8xf32>
    %142 = arith.mulf %140, %141 : vector<8x8xf32>
    %143 = vector.extract_strided_slice %36 {offsets = [8, 56], sizes = [8, 8], strides = [1, 1]} : vector<16x96xf32> to vector<8x8xf32>
    %144 = vector.extract_strided_slice %36 {offsets = [8, 64], sizes = [8, 8], strides = [1, 1]} : vector<16x96xf32> to vector<8x8xf32>
    %cst_50 = arith.constant dense<0.000000e+00> : vector<8x8xf32>
    %145 = tpu.matmul %142, %143, %cst_50 {dimension_numbers = #tpu.dot_dimension_numbers<[1], [1], [0], [0], [0, 0, 1, 0], [], []>} : vector<8x8xf32>, vector<8x8xf32>, vector<8x8xf32> -> vector<8x8xf32>
    %cst_51 = arith.constant dense<0xFF800000> : vector<8xf32>
    %146 = vector.multi_reduction <maximumf>, %145, %cst_51 [1] : vector<8x8xf32> to vector<8xf32>
    %147 = vector.shape_cast %146 : vector<8xf32> to vector<8x1xf32>
    %148 = vector.broadcast %147 : vector<8x1xf32> to vector<8x8xf32>
    %149 = arith.subf %145, %148 : vector<8x8xf32>
    %150 = math.exp %149 : vector<8x8xf32>
    %cst_52 = arith.constant dense<0.000000e+00> : vector<8xf32>
    %151 = vector.multi_reduction <add>, %150, %cst_52 [1] : vector<8x8xf32> to vector<8xf32>
    %152 = vector.shape_cast %151 : vector<8xf32> to vector<8x1xf32>
    %153 = tpu.reciprocal %152 {approx = true} : vector<8x1xf32> -> vector<8x1xf32>
    %154 = vector.broadcast %153 : vector<8x1xf32> to vector<8x8xf32>
    %155 = arith.mulf %150, %154 : vector<8x8xf32>
    %cst_53 = arith.constant dense<0.000000e+00> : vector<8x8xf32>
    %156 = tpu.matmul %155, %144, %cst_53 {dimension_numbers = #tpu.dot_dimension_numbers<[1], [0], [0], [1], [0, 0, 1, 1], [], []>} : vector<8x8xf32>, vector<8x8xf32>, vector<8x8xf32> -> vector<8x8xf32>
    %157 = vector.extract_strided_slice %36 {offsets = [8, 72], sizes = [8, 8], strides = [1, 1]} : vector<16x96xf32> to vector<8x8xf32>
    %cst_54 = arith.constant 0.353553385 : f32
    %158 = vector.broadcast %cst_54 : f32 to vector<8x8xf32>
    %159 = arith.mulf %157, %158 : vector<8x8xf32>
    %160 = vector.extract_strided_slice %36 {offsets = [8, 80], sizes = [8, 8], strides = [1, 1]} : vector<16x96xf32> to vector<8x8xf32>
    %161 = vector.extract_strided_slice %36 {offsets = [8, 88], sizes = [8, 8], strides = [1, 1]} : vector<16x96xf32> to vector<8x8xf32>
    %cst_55 = arith.constant dense<0.000000e+00> : vector<8x8xf32>
    %162 = tpu.matmul %159, %160, %cst_55 {dimension_numbers = #tpu.dot_dimension_numbers<[1], [1], [0], [0], [0, 0, 1, 0], [], []>} : vector<8x8xf32>, vector<8x8xf32>, vector<8x8xf32> -> vector<8x8xf32>
    %cst_56 = arith.constant dense<0xFF800000> : vector<8xf32>
    %163 = vector.multi_reduction <maximumf>, %162, %cst_56 [1] : vector<8x8xf32> to vector<8xf32>
    %164 = vector.shape_cast %163 : vector<8xf32> to vector<8x1xf32>
    %165 = vector.broadcast %164 : vector<8x1xf32> to vector<8x8xf32>
    %166 = arith.subf %162, %165 : vector<8x8xf32>
    %167 = math.exp %166 : vector<8x8xf32>
    %cst_57 = arith.constant dense<0.000000e+00> : vector<8xf32>
    %168 = vector.multi_reduction <add>, %167, %cst_57 [1] : vector<8x8xf32> to vector<8xf32>
    %169 = vector.shape_cast %168 : vector<8xf32> to vector<8x1xf32>
    %170 = tpu.reciprocal %169 {approx = true} : vector<8x1xf32> -> vector<8x1xf32>
    %171 = vector.broadcast %170 : vector<8x1xf32> to vector<8x8xf32>
    %172 = arith.mulf %167, %171 : vector<8x8xf32>
    %cst_58 = arith.constant dense<0.000000e+00> : vector<8x8xf32>
    %173 = tpu.matmul %172, %161, %cst_58 {dimension_numbers = #tpu.dot_dimension_numbers<[1], [0], [0], [1], [0, 0, 1, 1], [], []>} : vector<8x8xf32>, vector<8x8xf32>, vector<8x8xf32> -> vector<8x8xf32>
    %174 = tpu.concatenate %122, %139, %156, %173 in 1 : vector<8x8xf32>, vector<8x8xf32>, vector<8x8xf32>, vector<8x8xf32> -> vector<8x32xf32>
    %175 = tpu.concatenate %105, %174 in 0 : vector<8x32xf32>, vector<8x32xf32> -> vector<16x32xf32>
    %c0_59 = arith.constant 0 : index
    %c0_60 = arith.constant 0 : index
    %c0_61 = arith.constant 0 : index
    %176 = vector.load %arg4[%c0_59, %c0_60, %c0_61] : memref<1x32x32xf32, #tpu.memory_space<vmem>>, vector<1x32x32xf32>
    %177 = vector.shape_cast %176 : vector<1x32x32xf32> to vector<32x32xf32>
    %cst_62 = arith.constant dense<0.000000e+00> : vector<16x32xf32>
    %178 = tpu.matmul %175, %177, %cst_62 {dimension_numbers = #tpu.dot_dimension_numbers<[1], [0], [0], [1], [0, 0, 1, 1], [], []>} : vector<16x32xf32>, vector<32x32xf32>, vector<16x32xf32> -> vector<16x32xf32>
    %c0_63 = arith.constant 0 : index
    %c0_64 = arith.constant 0 : index
    %c0_65 = arith.constant 0 : index
    %179 = vector.load %arg5[%c0_63, %c0_64, %c0_65] : memref<1x1x32xf32, #tpu.memory_space<vmem>>, vector<1x1x32xf32>
    %180 = vector.shape_cast %179 : vector<1x1x32xf32> to vector<1x32xf32>
    %181 = vector.broadcast %180 : vector<1x32xf32> to vector<16x32xf32>
    %182 = arith.addf %178, %181 : vector<16x32xf32>
    %183 = arith.addf %3, %182 : vector<16x32xf32>
    %c0_66 = arith.constant 0 : index
    %c0_67 = arith.constant 0 : index
    %c0_68 = arith.constant 0 : index
    %184 = vector.load %arg12[%c0_66, %c0_67, %c0_68] : memref<1x1x32xf32, #tpu.memory_space<vmem>>, vector<1x1x32xf32>
    %185 = vector.shape_cast %184 : vector<1x1x32xf32> to vector<1x32xf32>
    %c0_69 = arith.constant 0 : index
    %c0_70 = arith.constant 0 : index
    %c0_71 = arith.constant 0 : index
    %186 = vector.load %arg13[%c0_69, %c0_70, %c0_71] : memref<1x1x32xf32, #tpu.memory_space<vmem>>, vector<1x1x32xf32>
    %187 = vector.shape_cast %186 : vector<1x1x32xf32> to vector<1x32xf32>
    %cst_72 = arith.constant dense<0.000000e+00> : vector<16xf32>
    %188 = vector.multi_reduction <add>, %183, %cst_72 [1] : vector<16x32xf32> to vector<16xf32>
    %189 = vector.shape_cast %188 : vector<16xf32> to vector<16x1xf32>
    %cst_73 = arith.constant 3.200000e+01 : f32
    %190 = vector.broadcast %cst_73 : f32 to vector<16x1xf32>
    %191 = arith.divf %189, %190 : vector<16x1xf32>
    %192 = vector.broadcast %191 : vector<16x1xf32> to vector<16x32xf32>
    %193 = arith.subf %183, %192 : vector<16x32xf32>
    %194 = arith.mulf %193, %193 : vector<16x32xf32>
    %cst_74 = arith.constant dense<0.000000e+00> : vector<16xf32>
    %195 = vector.multi_reduction <add>, %194, %cst_74 [1] : vector<16x32xf32> to vector<16xf32>
    %196 = vector.shape_cast %195 : vector<16xf32> to vector<16x1xf32>
    %cst_75 = arith.constant 3.200000e+01 : f32
    %197 = vector.broadcast %cst_75 : f32 to vector<16x1xf32>
    %198 = arith.divf %196, %197 : vector<16x1xf32>
    %199 = vector.broadcast %191 : vector<16x1xf32> to vector<16x32xf32>
    %200 = arith.subf %183, %199 : vector<16x32xf32>
    %cst_76 = arith.constant 9.99999974E-6 : f32
    %201 = vector.broadcast %cst_76 : f32 to vector<16x1xf32>
    %202 = arith.addf %198, %201 : vector<16x1xf32>
    %203 = math.rsqrt %202 : vector<16x1xf32>
    %204 = vector.broadcast %203 : vector<16x1xf32> to vector<16x32xf32>
    %205 = arith.mulf %200, %204 : vector<16x32xf32>
    %206 = vector.broadcast %185 : vector<1x32xf32> to vector<16x32xf32>
    %207 = arith.mulf %205, %206 : vector<16x32xf32>
    %208 = vector.broadcast %187 : vector<1x32xf32> to vector<16x32xf32>
    %209 = arith.addf %207, %208 : vector<16x32xf32>
    %c0_77 = arith.constant 0 : index
    %c0_78 = arith.constant 0 : index
    %c0_79 = arith.constant 0 : index
    %210 = vector.load %arg6[%c0_77, %c0_78, %c0_79] : memref<1x32x64xf32, #tpu.memory_space<vmem>>, vector<1x32x64xf32>
    %211 = vector.shape_cast %210 : vector<1x32x64xf32> to vector<32x64xf32>
    %cst_80 = arith.constant dense<0.000000e+00> : vector<16x64xf32>
    %212 = tpu.matmul %209, %211, %cst_80 {dimension_numbers = #tpu.dot_dimension_numbers<[1], [0], [0], [1], [0, 0, 1, 1], [], []>} : vector<16x32xf32>, vector<32x64xf32>, vector<16x64xf32> -> vector<16x64xf32>
    %c0_81 = arith.constant 0 : index
    %c0_82 = arith.constant 0 : index
    %c0_83 = arith.constant 0 : index
    %213 = vector.load %arg7[%c0_81, %c0_82, %c0_83] : memref<1x1x64xf32, #tpu.memory_space<vmem>>, vector<1x1x64xf32>
    %214 = vector.shape_cast %213 : vector<1x1x64xf32> to vector<1x64xf32>
    %215 = vector.broadcast %214 : vector<1x64xf32> to vector<16x64xf32>
    %216 = arith.addf %212, %215 : vector<16x64xf32>
    %cst_84 = arith.constant 0.000000e+00 : f32
    %217 = vector.broadcast %cst_84 : f32 to vector<16x64xf32>
    %218 = arith.maximumf %216, %217 : vector<16x64xf32>
    %c0_85 = arith.constant 0 : index
    %c0_86 = arith.constant 0 : index
    %c0_87 = arith.constant 0 : index
    %219 = vector.load %arg8[%c0_85, %c0_86, %c0_87] : memref<1x64x32xf32, #tpu.memory_space<vmem>>, vector<1x64x32xf32>
    %220 = vector.shape_cast %219 : vector<1x64x32xf32> to vector<64x32xf32>
    %cst_88 = arith.constant dense<0.000000e+00> : vector<16x32xf32>
    %221 = tpu.matmul %218, %220, %cst_88 {dimension_numbers = #tpu.dot_dimension_numbers<[1], [0], [0], [1], [0, 0, 1, 1], [], []>} : vector<16x64xf32>, vector<64x32xf32>, vector<16x32xf32> -> vector<16x32xf32>
    %c0_89 = arith.constant 0 : index
    %c0_90 = arith.constant 0 : index
    %c0_91 = arith.constant 0 : index
    %222 = vector.load %arg9[%c0_89, %c0_90, %c0_91] : memref<1x1x32xf32, #tpu.memory_space<vmem>>, vector<1x1x32xf32>
    %223 = vector.shape_cast %222 : vector<1x1x32xf32> to vector<1x32xf32>
    %224 = vector.broadcast %223 : vector<1x32xf32> to vector<16x32xf32>
    %225 = arith.addf %221, %224 : vector<16x32xf32>
    %226 = arith.addf %183, %225 : vector<16x32xf32>
    %c0_92 = arith.constant 0 : index
    %c0_93 = arith.constant 0 : index
    %227 = vector.load %arg17[%c0_92, %c0_93] : memref<16x32xf32, #tpu.memory_space<vmem>>, vector<16x32xf32>
    tpu.vector_store %arg17[%c0_92, %c0_93], %226 {strides = array<i32>} : memref<16x32xf32, #tpu.memory_space<vmem>>, vector<16x32xf32>,
    %c1_i32 = arith.constant 1 : i32
    %228 = arith.cmpi eq, %arg0, %c1_i32 : i32
    %229 = arith.extui %228 : i1 to i32
    %c0_i32_94 = arith.constant 0 : i32
    %230 = arith.cmpi ne, %229, %c0_i32_94 : i32
    scf.if %230 {
      %c0_95 = arith.constant 0 : index
      %c0_96 = arith.constant 0 : index
      %231 = vector.load %arg14[%c0_95, %c0_96] : memref<1x32xf32, #tpu.memory_space<vmem>>, vector<1x32xf32>
      %c0_97 = arith.constant 0 : index
      %c0_98 = arith.constant 0 : index
      %232 = vector.load %arg15[%c0_97, %c0_98] : memref<1x32xf32, #tpu.memory_space<vmem>>, vector<1x32xf32>
      %cst_99 = arith.constant dense<0.000000e+00> : vector<16xf32>
      %233 = vector.multi_reduction <add>, %226, %cst_99 [1] : vector<16x32xf32> to vector<16xf32>
      %234 = vector.shape_cast %233 : vector<16xf32> to vector<16x1xf32>
      %cst_100 = arith.constant 3.200000e+01 : f32
      %235 = vector.broadcast %cst_100 : f32 to vector<16x1xf32>
      %236 = arith.divf %234, %235 : vector<16x1xf32>
      %237 = vector.broadcast %236 : vector<16x1xf32> to vector<16x32xf32>
      %238 = arith.subf %226, %237 : vector<16x32xf32>
      %239 = arith.mulf %238, %238 : vector<16x32xf32>
      %cst_101 = arith.constant dense<0.000000e+00> : vector<16xf32>
      %240 = vector.multi_reduction <add>, %239, %cst_101 [1] : vector<16x32xf32> to vector<16xf32>
      %241 = vector.shape_cast %240 : vector<16xf32> to vector<16x1xf32>
      %cst_102 = arith.constant 3.200000e+01 : f32
      %242 = vector.broadcast %cst_102 : f32 to vector<16x1xf32>
      %243 = arith.divf %241, %242 : vector<16x1xf32>
      %244 = vector.broadcast %236 : vector<16x1xf32> to vector<16x32xf32>
      %245 = arith.subf %226, %244 : vector<16x32xf32>
      %cst_103 = arith.constant 9.99999974E-6 : f32
      %246 = vector.broadcast %cst_103 : f32 to vector<16x1xf32>
      %247 = arith.addf %243, %246 : vector<16x1xf32>
      %248 = math.rsqrt %247 : vector<16x1xf32>
      %249 = vector.broadcast %248 : vector<16x1xf32> to vector<16x32xf32>
      %250 = arith.mulf %245, %249 : vector<16x32xf32>
      %251 = vector.broadcast %231 : vector<1x32xf32> to vector<16x32xf32>
      %252 = arith.mulf %250, %251 : vector<16x32xf32>
      %253 = vector.broadcast %232 : vector<1x32xf32> to vector<16x32xf32>
      %254 = arith.addf %252, %253 : vector<16x32xf32>
      %c0_104 = arith.constant 0 : index
      %c0_105 = arith.constant 0 : index
      %255 = vector.load %arg16[%c0_104, %c0_105] : memref<16x32xf32, #tpu.memory_space<vmem>>, vector<16x32xf32>
      tpu.vector_store %arg16[%c0_104, %c0_105], %254 {strides = array<i32>} : memref<16x32xf32, #tpu.memory_space<vmem>>, vector<16x32xf32>,
    } else {
    }
    return
  }
  func.func @transform_0(%arg0: i32) -> (i32, i32) {
    %c0_i32 = arith.constant 0 : i32
    %c0_i32_0 = arith.constant 0 : i32
    %c0_i32_1 = arith.constant 0 : i32
    return %c0_i32, %c0_i32_0 : i32, i32
  }
  func.func @transform_1(%arg0: i32) -> (i32, i32, i32) {
    %c0_i32 = arith.constant 0 : i32
    %c0_i32_0 = arith.constant 0 : i32
    %c0_i32_1 = arith.constant 0 : i32
    return %arg0, %c0_i32, %c0_i32_0 : i32, i32, i32
  }
  func.func @transform_2(%arg0: i32) -> (i32, i32, i32) {
    %c0_i32 = arith.constant 0 : i32
    %c0_i32_0 = arith.constant 0 : i32
    %c0_i32_1 = arith.constant 0 : i32
    return %arg0, %c0_i32, %c0_i32_0 : i32, i32, i32
  }
  func.func @transform_3(%arg0: i32) -> (i32, i32, i32) {
    %c0_i32 = arith.constant 0 : i32
    %c0_i32_0 = arith.constant 0 : i32
    %c0_i32_1 = arith.constant 0 : i32
    return %arg0, %c0_i32, %c0_i32_0 : i32, i32, i32
  }
  func.func @transform_4(%arg0: i32) -> (i32, i32, i32) {
    %c0_i32 = arith.constant 0 : i32
    %c0_i32_0 = arith.constant 0 : i32
    %c0_i32_1 = arith.constant 0 : i32
    return %arg0, %c0_i32, %c0_i32_0 : i32, i32, i32
  }
  func.func @transform_5(%arg0: i32) -> (i32, i32, i32) {
    %c0_i32 = arith.constant 0 : i32
    %c0_i32_0 = arith.constant 0 : i32
    %c0_i32_1 = arith.constant 0 : i32
    return %arg0, %c0_i32, %c0_i32_0 : i32, i32, i32
  }
  func.func @transform_6(%arg0: i32) -> (i32, i32, i32) {
    %c0_i32 = arith.constant 0 : i32
    %c0_i32_0 = arith.constant 0 : i32
    %c0_i32_1 = arith.constant 0 : i32
    return %arg0, %c0_i32, %c0_i32_0 : i32, i32, i32
  }
  func.func @transform_7(%arg0: i32) -> (i32, i32, i32) {
    %c0_i32 = arith.constant 0 : i32
    %c0_i32_0 = arith.constant 0 : i32
    %c0_i32_1 = arith.constant 0 : i32
    return %arg0, %c0_i32, %c0_i32_0 : i32, i32, i32
  }
  func.func @transform_8(%arg0: i32) -> (i32, i32, i32) {
    %c0_i32 = arith.constant 0 : i32
    %c0_i32_0 = arith.constant 0 : i32
    %c0_i32_1 = arith.constant 0 : i32
    return %arg0, %c0_i32, %c0_i32_0 : i32, i32, i32
  }
  func.func @transform_9(%arg0: i32) -> (i32, i32, i32) {
    %c0_i32 = arith.constant 0 : i32
    %c0_i32_0 = arith.constant 0 : i32
    %c0_i32_1 = arith.constant 0 : i32
    return %arg0, %c0_i32, %c0_i32_0 : i32, i32, i32
  }
  func.func @transform_10(%arg0: i32) -> (i32, i32, i32) {
    %c0_i32 = arith.constant 0 : i32
    %c0_i32_0 = arith.constant 0 : i32
    %c0_i32_1 = arith.constant 0 : i32
    return %arg0, %c0_i32, %c0_i32_0 : i32, i32, i32
  }
  func.func @transform_11(%arg0: i32) -> (i32, i32, i32) {
    %c0_i32 = arith.constant 0 : i32
    %c0_i32_0 = arith.constant 0 : i32
    %c0_i32_1 = arith.constant 0 : i32
    return %arg0, %c0_i32, %c0_i32_0 : i32, i32, i32
  }
  func.func @transform_12(%arg0: i32) -> (i32, i32, i32) {
    %c0_i32 = arith.constant 0 : i32
    %c0_i32_0 = arith.constant 0 : i32
    %c0_i32_1 = arith.constant 0 : i32
    return %arg0, %c0_i32, %c0_i32_0 : i32, i32, i32
  }
  func.func @transform_13(%arg0: i32) -> (i32, i32) {
    %c0_i32 = arith.constant 0 : i32
    %c0_i32_0 = arith.constant 0 : i32
    %c0_i32_1 = arith.constant 0 : i32
    return %c0_i32, %c0_i32_0 : i32, i32
  }
  func.func @transform_14(%arg0: i32) -> (i32, i32) {
    %c0_i32 = arith.constant 0 : i32
    %c0_i32_0 = arith.constant 0 : i32
    %c0_i32_1 = arith.constant 0 : i32
    return %c0_i32, %c0_i32_0 : i32, i32
  }
  func.func @transform_15(%arg0: i32) -> (i32, i32) {
    %c0_i32 = arith.constant 0 : i32
    %c0_i32_0 = arith.constant 0 : i32
    %c0_i32_1 = arith.constant 0 : i32
    return %c0_i32, %c0_i32_0 : i32, i32
  }
}

</mosaic_0001>

<llo_original>
// kernel: transformer_encoder.1
$region0: #{transformer_encoder.1}
  #allocation0 [shape = 'u32[]', space=smem, size = 0x4, offset = 0x4, fixed_abs, tag = 'smem constant byte address 0x4 - core index']
  #allocation1 [shape = 'u32[144,128]{1,0:T(1,128)}', space=vmem, size = 0x12000, scoped, tag = 'internal scratch']
  #allocation2 [shape = 'f32[16,32]{1,0:T(8,128)}', space=vmem, size = 0x2000, scoped, tag = 'scratch operand']
  %s0 = inlined_call_operand.hbm [shape: f32[16,32], index: 0, kind: input, shape index: {}]
  %s1 = inlined_call_operand.vmem [shape: f32[2,32,96], index: 1, kind: input, shape index: {}]
  %s2 = inlined_call_operand.vmem [shape: f32[2,1,96], index: 2, kind: input, shape index: {}]
  %s3 = inlined_call_operand.vmem [shape: f32[2,32,32], index: 3, kind: input, shape index: {}]
  %s4 = inlined_call_operand.vmem [shape: f32[2,1,32], index: 4, kind: input, shape index: {}]
  %s5 = inlined_call_operand.vmem [shape: f32[2,32,64], index: 5, kind: input, shape index: {}]
  %s6 = inlined_call_operand.vmem [shape: f32[2,1,64], index: 6, kind: input, shape index: {}]
  %s7 = inlined_call_operand.vmem [shape: f32[2,64,32], index: 7, kind: input, shape index: {}]
  %s8 = inlined_call_operand.vmem [shape: f32[2,1,32], index: 8, kind: input, shape index: {}]
  %s9 = inlined_call_operand.vmem [shape: f32[2,1,32], index: 9, kind: input, shape index: {}]
  %s10 = inlined_call_operand.vmem [shape: f32[2,1,32], index: 10, kind: input, shape index: {}]
  %s11 = inlined_call_operand.vmem [shape: f32[2,1,32], index: 11, kind: input, shape index: {}]
  %s12 = inlined_call_operand.vmem [shape: f32[2,1,32], index: 12, kind: input, shape index: {}]
  %s13 = inlined_call_operand.vmem [shape: f32[1,32], index: 13, kind: input, shape index: {}]
  %s14 = inlined_call_operand.vmem [shape: f32[1,32], index: 14, kind: input, shape index: {}]
  %s15 = inlined_call_operand.hbm [shape: f32[16,32], index: 15, kind: output, shape index: {}]
  %s16 = sld [smem:[#allocation0]]
  $region105: #{transformer_encoder.1} parent=0
    _
  %s18 = ssub.s32 1, %s16
  %s19 = scalar_select 0, %s18, %s16
  $region1: #{transformer_encoder.1} parent=0
    #allocation3 [shape = 'u8[8192]{0}', space=vmem, size = 0x2000, scoped, tag = 'input window, operand 0, single buffered']
    #allocation4 [shape = 's32[2]{0}', space=sflag, size = 0x8, scoped, tag = 'scoped memory for transformer_encoder.1']
    #allocation5 [shape = 's32[2]{0}', space=sflag, size = 0x8, scoped, tag = 'scoped memory for transformer_encoder.1']
    #allocation6 [shape = 'u8[8192]{0}', space=vmem, size = 0x2000, scoped, tag = 'output window, operand 0, single buffered']
    %20 = vsyncpa [#allocation4], 0
    %21 = vsyncpa [#allocation5], 0
    loop: start=0, step=1, limit=4
    $region2: #{transformer_encoder.1} parent=1 // loop_pre_header
      _
    $region3: #{transformer_encoder.1} parent=1 // loop_header
      %s23 = sphi 0, %s27
      %p24 = scmp.ge.s32.totalorder %s23, 4
      %s31 = sphi 0, %s31
      %s33 = sphi 0, %s31
      %s34 = sphi 0, %s33
      %s48 = sphi 0, %s34
      %s54 = sphi 0, %s56
      %s57 = sphi 0, %s54
      %s58 = sphi 0, %s57
      %s74 = sphi 0, %s58
      %s80 = sphi 0, %s82
      %s83 = sphi 0, %s80
      %s84 = sphi 0, %s83
      %s100 = sphi 0, %s84
      %s106 = sphi 0, %s108
      %s109 = sphi 0, %s106
      %s110 = sphi 0, %s109
      %s126 = sphi 0, %s110
      %s132 = sphi 0, %s134
      %s135 = sphi 0, %s132
      %s136 = sphi 0, %s135
      %s152 = sphi 0, %s136
      %s158 = sphi 0, %s160
      %s161 = sphi 0, %s158
      %s162 = sphi 0, %s161
      %s178 = sphi 0, %s162
      %s184 = sphi 0, %s186
      %s187 = sphi 0, %s184
      %s188 = sphi 0, %s187
      %s204 = sphi 0, %s188
      %s210 = sphi 0, %s212
      %s213 = sphi 0, %s210
      %s214 = sphi 0, %s213
      %s230 = sphi 0, %s214
      %s236 = sphi 0, %s238
      %s239 = sphi 0, %s236
      %s240 = sphi 0, %s239
      %s256 = sphi 0, %s240
      %s262 = sphi 0, %s264
      %s265 = sphi 0, %s262
      %s266 = sphi 0, %s265
      %s282 = sphi 0, %s266
      %s288 = sphi 0, %s290
      %s291 = sphi 0, %s288
      %s292 = sphi 0, %s291
      %s308 = sphi 0, %s292
      %s314 = sphi 0, %s316
      %s317 = sphi 0, %s314
      %s318 = sphi 0, %s317
      %s334 = sphi 0, %s318
      %s340 = sphi 0, %s342
      %s343 = sphi 0, %s340
      %s344 = sphi 0, %s343
      %s360 = sphi 0, %s344
      %s364 = sphi 0, %s364
      %s366 = sphi 0, %s364
      %s367 = sphi 0, %s366
      %s381 = sphi 0, %s367
      %s385 = sphi 0, %s385
      %s387 = sphi 0, %s385
      %s388 = sphi 0, %s387
      %s402 = sphi 0, %s388
      %s406 = sphi 0, %s406
      %s408 = sphi 0, %s406
      %s409 = sphi 0, %s408
      %s423 = sphi 0, %s409
    $region4: #{transformer_encoder.1} parent=1 // loop_header_branch
      %26 = sbr.rel (%p24) target = $region8
    $region5: #{transformer_encoder.1} parent=1 // loop_body
      %s28 = ssub.s32 %s23, 1
      %s29 = ssub.s32 %s23, 2
      %s30 = sadd.s32 %s23, 1
      %s32 = sadd.s32 %s31, 1
      %p35 = scmp.eq.s32.totalorder %s23, 1
      %p36 = scmp.ne.s32.totalorder %s31, %s33
      %p37 = scmp.eq.s32.totalorder %s23, 0
      %p38 = por %p36, %p37
      %p39 = scmp.ne.s32.totalorder %s31, %s33
      %p40 = scmp.eq.s32.totalorder %s28, 1
      %p41 = por %p39, %p40
      %p42 = scmp.ne.s32.totalorder %s33, %s34
      %p43 = scmp.eq.s32.totalorder %s28, 0
      %p44 = por %p42, %p43
      %p45 = scmp.ne.s32.totalorder %s33, %s34
      %p46 = scmp.eq.s32.totalorder %s29, 1
      %p47 = por %p45, %p46
      %p49 = scmp.ne.s32.totalorder %s34, %s48
      %p50 = scmp.eq.s32.totalorder %s29, 0
      %p51 = por %p49, %p50
      %s52 = ssub.s32 %s23, %s30
      %p53 = scmp.eq.s32.totalorder %s52, 0
      %s55 = sadd.s32 %s54, 1
      %s56 = scalar_select %p53, %s54, %s55
      %p59 = pneg %p53
      %p60 = scmp.eq.s32.totalorder %s23, 1
      %p61 = por %p59, %p60
      %p62 = scmp.ne.s32.totalorder %s54, %s57
      %p63 = scmp.eq.s32.totalorder %s23, 0
      %p64 = por %p62, %p63
      %p65 = scmp.ne.s32.totalorder %s54, %s57
      %p66 = scmp.eq.s32.totalorder %s28, 1
      %p67 = por %p65, %p66
      %p68 = scmp.ne.s32.totalorder %s57, %s58
      %p69 = scmp.eq.s32.totalorder %s28, 0
      %p70 = por %p68, %p69
      %p71 = scmp.ne.s32.totalorder %s57, %s58
      %p72 = scmp.eq.s32.totalorder %s29, 1
      %p73 = por %p71, %p72
      %p75 = scmp.ne.s32.totalorder %s58, %s74
      %p76 = scmp.eq.s32.totalorder %s29, 0
      %p77 = por %p75, %p76
      %s78 = ssub.s32 %s23, %s30
      %p79 = scmp.eq.s32.totalorder %s78, 0
      %s81 = sadd.s32 %s80, 1
      %s82 = scalar_select %p79, %s80, %s81
      %p85 = pneg %p79
      %p86 = scmp.eq.s32.totalorder %s23, 1
      %p87 = por %p85, %p86
      %p88 = scmp.ne.s32.totalorder %s80, %s83
      %p89 = scmp.eq.s32.totalorder %s23, 0
      %p90 = por %p88, %p89
      %p91 = scmp.ne.s32.totalorder %s80, %s83
      %p92 = scmp.eq.s32.totalorder %s28, 1
      %p93 = por %p91, %p92
      %p94 = scmp.ne.s32.totalorder %s83, %s84
      %p95 = scmp.eq.s32.totalorder %s28, 0
      %p96 = por %p94, %p95
      %p97 = scmp.ne.s32.totalorder %s83, %s84
      %p98 = scmp.eq.s32.totalorder %s29, 1
      %p99 = por %p97, %p98
      %p101 = scmp.ne.s32.totalorder %s84, %s100
      %p102 = scmp.eq.s32.totalorder %s29, 0
      %p103 = por %p101, %p102
      %s104 = ssub.s32 %s23, %s30
      %p105 = scmp.eq.s32.totalorder %s104, 0
      %s107 = sadd.s32 %s106, 1
      %s108 = scalar_select %p105, %s106, %s107
      %p111 = pneg %p105
      %p112 = scmp.eq.s32.totalorder %s23, 1
      %p113 = por %p111, %p112
      %p114 = scmp.ne.s32.totalorder %s106, %s109
      %p115 = scmp.eq.s32.totalorder %s23, 0
      %p116 = por %p114, %p115
      %p117 = scmp.ne.s32.totalorder %s106, %s109
      %p118 = scmp.eq.s32.totalorder %s28, 1
      %p119 = por %p117, %p118
      %p120 = scmp.ne.s32.totalorder %s109, %s110
      %p121 = scmp.eq.s32.totalorder %s28, 0
      %p122 = por %p120, %p121
      %p123 = scmp.ne.s32.totalorder %s109, %s110
      %p124 = scmp.eq.s32.totalorder %s29, 1
      %p125 = por %p123, %p124
      %p127 = scmp.ne.s32.totalorder %s110, %s126
      %p128 = scmp.eq.s32.totalorder %s29, 0
      %p129 = por %p127, %p128
      %s130 = ssub.s32 %s23, %s30
      %p131 = scmp.eq.s32.totalorder %s130, 0
      %s133 = sadd.s32 %s132, 1
      %s134 = scalar_select %p131, %s132, %s133
      %p137 = pneg %p131
      %p138 = scmp.eq.s32.totalorder %s23, 1
      %p139 = por %p137, %p138
      %p140 = scmp.ne.s32.totalorder %s132, %s135
      %p141 = scmp.eq.s32.totalorder %s23, 0
      %p142 = por %p140, %p141
      %p143 = scmp.ne.s32.totalorder %s132, %s135
      %p144 = scmp.eq.s32.totalorder %s28, 1
      %p145 = por %p143, %p144
      %p146 = scmp.ne.s32.totalorder %s135, %s136
      %p147 = scmp.eq.s32.totalorder %s28, 0
      %p148 = por %p146, %p147
      %p149 = scmp.ne.s32.totalorder %s135, %s136
      %p150 = scmp.eq.s32.totalorder %s29, 1
      %p151 = por %p149, %p150
      %p153 = scmp.ne.s32.totalorder %s136, %s152
      %p154 = scmp.eq.s32.totalorder %s29, 0
      %p155 = por %p153, %p154
      %s156 = ssub.s32 %s23, %s30
      %p157 = scmp.eq.s32.totalorder %s156, 0
      %s159 = sadd.s32 %s158, 1
      %s160 = scalar_select %p157, %s158, %s159
      %p163 = pneg %p157
      %p164 = scmp.eq.s32.totalorder %s23, 1
      %p165 = por %p163, %p164
      %p166 = scmp.ne.s32.totalorder %s158, %s161
      %p167 = scmp.eq.s32.totalorder %s23, 0
      %p168 = por %p166, %p167
      %p169 = scmp.ne.s32.totalorder %s158, %s161
      %p170 = scmp.eq.s32.totalorder %s28, 1
      %p171 = por %p169, %p170
      %p172 = scmp.ne.s32.totalorder %s161, %s162
      %p173 = scmp.eq.s32.totalorder %s28, 0
      %p174 = por %p172, %p173
      %p175 = scmp.ne.s32.totalorder %s161, %s162
      %p176 = scmp.eq.s32.totalorder %s29, 1
      %p177 = por %p175, %p176
      %p179 = scmp.ne.s32.totalorder %s162, %s178
      %p180 = scmp.eq.s32.totalorder %s29, 0
      %p181 = por %p179, %p180
      %s182 = ssub.s32 %s23, %s30
      %p183 = scmp.eq.s32.totalorder %s182, 0
      %s185 = sadd.s32 %s184, 1
      %s186 = scalar_select %p183, %s184, %s185
      %p189 = pneg %p183
      %p190 = scmp.eq.s32.totalorder %s23, 1
      %p191 = por %p189, %p190
      %p192 = scmp.ne.s32.totalorder %s184, %s187
      %p193 = scmp.eq.s32.totalorder %s23, 0
      %p194 = por %p192, %p193
      %p195 = scmp.ne.s32.totalorder %s184, %s187
      %p196 = scmp.eq.s32.totalorder %s28, 1
      %p197 = por %p195, %p196
      %p198 = scmp.ne.s32.totalorder %s187, %s188
      %p199 = scmp.eq.s32.totalorder %s28, 0
      %p200 = por %p198, %p199
      %p201 = scmp.ne.s32.totalorder %s187, %s188
      %p202 = scmp.eq.s32.totalorder %s29, 1
      %p203 = por %p201, %p202
      %p205 = scmp.ne.s32.totalorder %s188, %s204
      %p206 = scmp.eq.s32.totalorder %s29, 0
      %p207 = por %p205, %p206
      %s208 = ssub.s32 %s23, %s30
      %p209 = scmp.eq.s32.totalorder %s208, 0
      %s211 = sadd.s32 %s210, 1
      %s212 = scalar_select %p209, %s210, %s211
      %p215 = pneg %p209
      %p216 = scmp.eq.s32.totalorder %s23, 1
      %p217 = por %p215, %p216
      %p218 = scmp.ne.s32.totalorder %s210, %s213
      %p219 = scmp.eq.s32.totalorder %s23, 0
      %p220 = por %p218, %p219
      %p221 = scmp.ne.s32.totalorder %s210, %s213
      %p222 = scmp.eq.s32.totalorder %s28, 1
      %p223 = por %p221, %p222
      %p224 = scmp.ne.s32.totalorder %s213, %s214
      %p225 = scmp.eq.s32.totalorder %s28, 0
      %p226 = por %p224, %p225
      %p227 = scmp.ne.s32.totalorder %s213, %s214
      %p228 = scmp.eq.s32.totalorder %s29, 1
      %p229 = por %p227, %p228
      %p231 = scmp.ne.s32.totalorder %s214, %s230
      %p232 = scmp.eq.s32.totalorder %s29, 0
      %p233 = por %p231, %p232
      %s234 = ssub.s32 %s23, %s30
      %p235 = scmp.eq.s32.totalorder %s234, 0
      %s237 = sadd.s32 %s236, 1
      %s238 = scalar_select %p235, %s236, %s237
      %p241 = pneg %p235
      %p242 = scmp.eq.s32.totalorder %s23, 1
      %p243 = por %p241, %p242
      %p244 = scmp.ne.s32.totalorder %s236, %s239
      %p245 = scmp.eq.s32.totalorder %s23, 0
      %p246 = por %p244, %p245
      %p247 = scmp.ne.s32.totalorder %s236, %s239
      %p248 = scmp.eq.s32.totalorder %s28, 1
      %p249 = por %p247, %p248
      %p250 = scmp.ne.s32.totalorder %s239, %s240
      %p251 = scmp.eq.s32.totalorder %s28, 0
      %p252 = por %p250, %p251
      %p253 = scmp.ne.s32.totalorder %s239, %s240
      %p254 = scmp.eq.s32.totalorder %s29, 1
      %p255 = por %p253, %p254
      %p257 = scmp.ne.s32.totalorder %s240, %s256
      %p258 = scmp.eq.s32.totalorder %s29, 0
      %p259 = por %p257, %p258
      %s260 = ssub.s32 %s23, %s30
      %p261 = scmp.eq.s32.totalorder %s260, 0
      %s263 = sadd.s32 %s262, 1
      %s264 = scalar_select %p261, %s262, %s263
      %p267 = pneg %p261
      %p268 = scmp.eq.s32.totalorder %s23, 1
      %p269 = por %p267, %p268
      %p270 = scmp.ne.s32.totalorder %s262, %s265
      %p271 = scmp.eq.s32.totalorder %s23, 0
      %p272 = por %p270, %p271
      %p273 = scmp.ne.s32.totalorder %s262, %s265
      %p274 = scmp.eq.s32.totalorder %s28, 1
      %p275 = por %p273, %p274
      %p276 = scmp.ne.s32.totalorder %s265, %s266
      %p277 = scmp.eq.s32.totalorder %s28, 0
      %p278 = por %p276, %p277
      %p279 = scmp.ne.s32.totalorder %s265, %s266
      %p280 = scmp.eq.s32.totalorder %s29, 1
      %p281 = por %p279, %p280
      %p283 = scmp.ne.s32.totalorder %s266, %s282
      %p284 = scmp.eq.s32.totalorder %s29, 0
      %p285 = por %p283, %p284
      %s286 = ssub.s32 %s23, %s30
      %p287 = scmp.eq.s32.totalorder %s286, 0
      %s289 = sadd.s32 %s288, 1
      %s290 = scalar_select %p287, %s288, %s289
      %p293 = pneg %p287
      %p294 = scmp.eq.s32.totalorder %s23, 1
      %p295 = por %p293, %p294
      %p296 = scmp.ne.s32.totalorder %s288, %s291
      %p297 = scmp.eq.s32.totalorder %s23, 0
      %p298 = por %p296, %p297
      %p299 = scmp.ne.s32.totalorder %s288, %s291
      %p300 = scmp.eq.s32.totalorder %s28, 1
      %p301 = por %p299, %p300
      %p302 = scmp.ne.s32.totalorder %s291, %s292
      %p303 = scmp.eq.s32.totalorder %s28, 0
      %p304 = por %p302, %p303
      %p305 = scmp.ne.s32.totalorder %s291, %s292
      %p306 = scmp.eq.s32.totalorder %s29, 1
      %p307 = por %p305, %p306
      %p309 = scmp.ne.s32.totalorder %s292, %s308
      %p310 = scmp.eq.s32.totalorder %s29, 0
      %p311 = por %p309, %p310
      %s312 = ssub.s32 %s23, %s30
      %p313 = scmp.eq.s32.totalorder %s312, 0
      %s315 = sadd.s32 %s314, 1
      %s316 = scalar_select %p313, %s314, %s315
      %p319 = pneg %p313
      %p320 = scmp.eq.s32.totalorder %s23, 1
      %p321 = por %p319, %p320
      %p322 = scmp.ne.s32.totalorder %s314, %s317
      %p323 = scmp.eq.s32.totalorder %s23, 0
      %p324 = por %p322, %p323
      %p325 = scmp.ne.s32.totalorder %s314, %s317
      %p326 = scmp.eq.s32.totalorder %s28, 1
      %p327 = por %p325, %p326
      %p328 = scmp.ne.s32.totalorder %s317, %s318
      %p329 = scmp.eq.s32.totalorder %s28, 0
      %p330 = por %p328, %p329
      %p331 = scmp.ne.s32.totalorder %s317, %s318
      %p332 = scmp.eq.s32.totalorder %s29, 1
      %p333 = por %p331, %p332
      %p335 = scmp.ne.s32.totalorder %s318, %s334
      %p336 = scmp.eq.s32.totalorder %s29, 0
      %p337 = por %p335, %p336
      %s338 = ssub.s32 %s23, %s30
      %p339 = scmp.eq.s32.totalorder %s338, 0
      %s341 = sadd.s32 %s340, 1
      %s342 = scalar_select %p339, %s340, %s341
      %p345 = pneg %p339
      %p346 = scmp.eq.s32.totalorder %s23, 1
      %p347 = por %p345, %p346
      %p348 = scmp.ne.s32.totalorder %s340, %s343
      %p349 = scmp.eq.s32.totalorder %s23, 0
      %p350 = por %p348, %p349
      %p351 = scmp.ne.s32.totalorder %s340, %s343
      %p352 = scmp.eq.s32.totalorder %s28, 1
      %p353 = por %p351, %p352
      %p354 = scmp.ne.s32.totalorder %s343, %s344
      %p355 = scmp.eq.s32.totalorder %s28, 0
      %p356 = por %p354, %p355
      %p357 = scmp.ne.s32.totalorder %s343, %s344
      %p358 = scmp.eq.s32.totalorder %s29, 1
      %p359 = por %p357, %p358
      %p361 = scmp.ne.s32.totalorder %s344, %s360
      %p362 = scmp.eq.s32.totalorder %s29, 0
      %p363 = por %p361, %p362
      %s365 = sadd.s32 %s364, 1
      %p368 = scmp.eq.s32.totalorder %s23, 1
      %p369 = scmp.ne.s32.totalorder %s364, %s366
      %p370 = scmp.eq.s32.totalorder %s23, 0
      %p371 = por %p369, %p370
      %p372 = scmp.ne.s32.totalorder %s364, %s366
      %p373 = scmp.eq.s32.totalorder %s28, 1
      %p374 = por %p372, %p373
      %p375 = scmp.ne.s32.totalorder %s366, %s367
      %p376 = scmp.eq.s32.totalorder %s28, 0
      %p377 = por %p375, %p376
      %p378 = scmp.ne.s32.totalorder %s366, %s367
      %p379 = scmp.eq.s32.totalorder %s29, 1
      %p380 = por %p378, %p379
      %p382 = scmp.ne.s32.totalorder %s367, %s381
      %p383 = scmp.eq.s32.totalorder %s29, 0
      %p384 = por %p382, %p383
      %s386 = sadd.s32 %s385, 1
      %p389 = scmp.eq.s32.totalorder %s23, 1
      %p390 = scmp.ne.s32.totalorder %s385, %s387
      %p391 = scmp.eq.s32.totalorder %s23, 0
      %p392 = por %p390, %p391
      %p393 = scmp.ne.s32.totalorder %s385, %s387
      %p394 = scmp.eq.s32.totalorder %s28, 1
      %p395 = por %p393, %p394
      %p396 = scmp.ne.s32.totalorder %s387, %s388
      %p397 = scmp.eq.s32.totalorder %s28, 0
      %p398 = por %p396, %p397
      %p399 = scmp.ne.s32.totalorder %s387, %s388
      %p400 = scmp.eq.s32.totalorder %s29, 1
      %p401 = por %p399, %p400
      %p403 = scmp.ne.s32.totalorder %s388, %s402
      %p404 = scmp.eq.s32.totalorder %s29, 0
      %p405 = por %p403, %p404
      %s407 = sadd.s32 %s406, 1
      %p410 = scmp.eq.s32.totalorder %s23, 1
      %p411 = scmp.ne.s32.totalorder %s406, %s408
      %p412 = scmp.eq.s32.totalorder %s23, 0
      %p413 = por %p411, %p412
      %p414 = scmp.ne.s32.totalorder %s406, %s408
      %p415 = scmp.eq.s32.totalorder %s28, 1
      %p416 = por %p414, %p415
      %p417 = scmp.ne.s32.totalorder %s408, %s409
      %p418 = scmp.eq.s32.totalorder %s28, 0
      %p419 = por %p417, %p418
      %p420 = scmp.ne.s32.totalorder %s408, %s409
      %p421 = scmp.eq.s32.totalorder %s29, 1
      %p422 = por %p420, %p421
      %p424 = scmp.ne.s32.totalorder %s409, %s423
      %p425 = scmp.eq.s32.totalorder %s29, 0
      %p426 = por %p424, %p425
      %p427 = scmp.le.s32.totalorder 1, %s23
      %p428 = scmp.lt.s32.totalorder %s23, 3
      %p429 = pnand %p427, %p428
      %p430 = pneg %p429
      // Predicated region
      $region9: #{transformer_encoder.1} parent=5 // pred_check
        _
      $region10: #{transformer_encoder.1} parent=5 // pred_check_branch
        %432 = sbr.rel (%p429) target = $region12
      $region11: #{transformer_encoder.1} parent=5 // pred_region
        %s433 = ssub.s32 %s23, 1
        // Predicated region
        $region13: #{transformer_encoder.1} parent=11 // pred_check
          %p434 = pneg %p44
        $region14: #{transformer_encoder.1} parent=11 // pred_check_branch
          %436 = sbr.rel (%p434) target = $region16
        $region15: #{transformer_encoder.1} parent=11 // pred_region
          %s438 = ssub.s32 256, 256
          %439 = vsyncadd [#allocation4], %s438
          %s440 = sshll.u32 [#allocation3], 4
          %s441 = int_to_ptr.vmem [resolvable:$true] %s440
          %446 = dma.hbm_to_vmem [thread:$0]  %s0, 256, %s441, [#allocation4], 128, 128, 8
        $region16: #{transformer_encoder.1} parent=11 // pred_fallthru
          _
        // Predicated region
        $region17: #{transformer_encoder.1} parent=11 // pred_check
          %p447 = pneg %p377
        $region18: #{transformer_encoder.1} parent=11 // pred_check_branch
          %449 = sbr.rel (%p447) target = $region20
        $region19: #{transformer_encoder.1} parent=11 // pred_region
          _
        $region20: #{transformer_encoder.1} parent=11 // pred_fallthru
          _
        // Predicated region
        $region21: #{transformer_encoder.1} parent=11 // pred_check
          %p450 = pneg %p398
        $region22: #{transformer_encoder.1} parent=11 // pred_check_branch
          %452 = sbr.rel (%p450) target = $region24
        $region23: #{transformer_encoder.1} parent=11 // pred_region
          _
        $region24: #{transformer_encoder.1} parent=11 // pred_fallthru
          _
      $region12: #{transformer_encoder.1} parent=5 // pred_fallthru
        _
      %p453 = scmp.lt.s32.totalorder %s23, 2
      // Predicated region
      $region25: #{transformer_encoder.1} parent=5 // pred_check
        %p454 = pneg %p453
      $region26: #{transformer_encoder.1} parent=5 // pred_check_branch
        %456 = sbr.rel (%p454) target = $region28
      $region27: #{transformer_encoder.1} parent=5 // pred_region
        // Predicated region
        $region29: #{transformer_encoder.1} parent=27 // pred_check
          %p457 = pneg %p64
        $region30: #{transformer_encoder.1} parent=27 // pred_check_branch
          %459 = sbr.rel (%p457) target = $region32
        $region31: #{transformer_encoder.1} parent=27 // pred_region
          %p460 = scmp.lt.s32.totalorder %s23, 1
          %s461 = scalar_select %p460, %s23, 1
          %s462 = smul.addr %s461, 4
          %s463 = smul.addr %s462, 8
          %s464 = scalar_lea.vmem %s1, %s463
        $region32: #{transformer_encoder.1} parent=27 // pred_fallthru
          _
        // Predicated region
        $region33: #{transformer_encoder.1} parent=27 // pred_check
          %p465 = pneg %p90
        $region34: #{transformer_encoder.1} parent=27 // pred_check_branch
          %467 = sbr.rel (%p465) target = $region36
        $region35: #{transformer_encoder.1} parent=27 // pred_region
          %p468 = scmp.lt.s32.totalorder %s23, 1
          %s469 = scalar_select %p468, %s23, 1
          %s470 = scalar_lea.vmem %s2, %s469
        $region36: #{transformer_encoder.1} parent=27 // pred_fallthru
          _
        // Predicated region
        $region37: #{transformer_encoder.1} parent=27 // pred_check
          %p471 = pneg %p116
        $region38: #{transformer_encoder.1} parent=27 // pred_check_branch
          %473 = sbr.rel (%p471) target = $region40
        $region39: #{transformer_encoder.1} parent=27 // pred_region
          %p474 = scmp.lt.s32.totalorder %s23, 1
          %s475 = scalar_select %p474, %s23, 1
          %s476 = smul.addr %s475, 4
          %s477 = smul.addr %s476, 8
          %s478 = scalar_lea.vmem %s3, %s477
        $region40: #{transformer_encoder.1} parent=27 // pred_fallthru
          _
        // Predicated region
        $region41: #{transformer_encoder.1} parent=27 // pred_check
          %p479 = pneg %p142
        $region42: #{transformer_encoder.1} parent=27 // pred_check_branch
          %481 = sbr.rel (%p479) target = $region44
        $region43: #{transformer_encoder.1} parent=27 // pred_region
          %p482 = scmp.lt.s32.totalorder %s23, 1
          %s483 = scalar_select %p482, %s23, 1
          %s484 = scalar_lea.vmem %s4, %s483
        $region44: #{transformer_encoder.1} parent=27 // pred_fallthru
          _
        // Predicated region
        $region45: #{transformer_encoder.1} parent=27 // pred_check
          %p485 = pneg %p168
        $region46: #{transformer_encoder.1} parent=27 // pred_check_branch
          %487 = sbr.rel (%p485) target = $region48
        $region47: #{transformer_encoder.1} parent=27 // pred_region
          %p488 = scmp.lt.s32.totalorder %s23, 1
          %s489 = scalar_select %p488, %s23, 1
          %s490 = smul.addr %s489, 4
          %s491 = smul.addr %s490, 8
          %s492 = scalar_lea.vmem %s5, %s491
        $region48: #{transformer_encoder.1} parent=27 // pred_fallthru
          _
        // Predicated region
        $region49: #{transformer_encoder.1} parent=27 // pred_check
          %p493 = pneg %p194
        $region50: #{transformer_encoder.1} parent=27 // pred_check_branch
          %495 = sbr.rel (%p493) target = $region52
        $region51: #{transformer_encoder.1} parent=27 // pred_region
          %p496 = scmp.lt.s32.totalorder %s23, 1
          %s497 = scalar_select %p496, %s23, 1
          %s498 = scalar_lea.vmem %s6, %s497
        $region52: #{transformer_encoder.1} parent=27 // pred_fallthru
          _
        // Predicated region
        $region53: #{transformer_encoder.1} parent=27 // pred_check
          %p499 = pneg %p220
        $region54: #{transformer_encoder.1} parent=27 // pred_check_branch
          %501 = sbr.rel (%p499) target = $region56
        $region55: #{transformer_encoder.1} parent=27 // pred_region
          %p502 = scmp.lt.s32.totalorder %s23, 1
          %s503 = scalar_select %p502, %s23, 1
          %s504 = smul.addr %s503, 8
          %s505 = smul.addr %s504, 8
          %s506 = scalar_lea.vmem %s7, %s505
        $region56: #{transformer_encoder.1} parent=27 // pred_fallthru
          _
        // Predicated region
        $region57: #{transformer_encoder.1} parent=27 // pred_check
          %p507 = pneg %p246
        $region58: #{transformer_encoder.1} parent=27 // pred_check_branch
          %509 = sbr.rel (%p507) target = $region60
        $region59: #{transformer_encoder.1} parent=27 // pred_region
          %p510 = scmp.lt.s32.totalorder %s23, 1
          %s511 = scalar_select %p510, %s23, 1
          %s512 = scalar_lea.vmem %s8, %s511
        $region60: #{transformer_encoder.1} parent=27 // pred_fallthru
          _
        // Predicated region
        $region61: #{transformer_encoder.1} parent=27 // pred_check
          %p513 = pneg %p272
        $region62: #{transformer_encoder.1} parent=27 // pred_check_branch
          %515 = sbr.rel (%p513) target = $region64
        $region63: #{transformer_encoder.1} parent=27 // pred_region
          %p516 = scmp.lt.s32.totalorder %s23, 1
          %s517 = scalar_select %p516, %s23, 1
          %s518 = scalar_lea.vmem %s9, %s517
        $region64: #{transformer_encoder.1} parent=27 // pred_fallthru
          _
        // Predicated region
        $region65: #{transformer_encoder.1} parent=27 // pred_check
          %p519 = pneg %p298
        $region66: #{transformer_encoder.1} parent=27 // pred_check_branch
          %521 = sbr.rel (%p519) target = $region68
        $region67: #{transformer_encoder.1} parent=27 // pred_region
          %p522 = scmp.lt.s32.totalorder %s23, 1
          %s523 = scalar_select %p522, %s23, 1
          %s524 = scalar_lea.vmem %s10, %s523
        $region68: #{transformer_encoder.1} parent=27 // pred_fallthru
          _
        // Predicated region
        $region69: #{transformer_encoder.1} parent=27 // pred_check
          %p525 = pneg %p324
        $region70: #{transformer_encoder.1} parent=27 // pred_check_branch
          %527 = sbr.rel (%p525) target = $region72
        $region71: #{transformer_encoder.1} parent=27 // pred_region
          %p528 = scmp.lt.s32.totalorder %s23, 1
          %s529 = scalar_select %p528, %s23, 1
          %s530 = scalar_lea.vmem %s11, %s529
        $region72: #{transformer_encoder.1} parent=27 // pred_fallthru
          _
        // Predicated region
        $region73: #{transformer_encoder.1} parent=27 // pred_check
          %p531 = pneg %p350
        $region74: #{transformer_encoder.1} parent=27 // pred_check_branch
          %533 = sbr.rel (%p531) target = $region76
        $region75: #{transformer_encoder.1} parent=27 // pred_region
          %p534 = scmp.lt.s32.totalorder %s23, 1
          %s535 = scalar_select %p534, %s23, 1
          %s536 = scalar_lea.vmem %s12, %s535
        $region76: #{transformer_encoder.1} parent=27 // pred_fallthru
          _
      $region28: #{transformer_encoder.1} parent=5 // pred_fallthru
        _
      %p537 = scmp.le.s32.totalorder 1, %s23
      %p538 = scmp.lt.s32.totalorder %s23, 3
      %p539 = pnand %p537, %p538
      %p540 = pneg %p539
      // Predicated region
      $region77: #{transformer_encoder.1} parent=5 // pred_check
        _
      $region78: #{transformer_encoder.1} parent=5 // pred_check_branch
        %542 = sbr.rel (%p539) target = $region80
      $region79: #{transformer_encoder.1} parent=5 // pred_region
        %s543 = ssub.s32 %s23, 1
        // Predicated region
        $region81: #{transformer_encoder.1} parent=79 // pred_check
          %p544 = pneg %p44
        $region82: #{transformer_encoder.1} parent=79 // pred_check_branch
          %546 = sbr.rel (%p544) target = $region84
        $region83: #{transformer_encoder.1} parent=79 // pred_region
          %547 = dma.done [#allocation4], 256
        $region84: #{transformer_encoder.1} parent=79 // pred_fallthru
          _
        %p548 = pneg %p44
        %p549 = pneg %p41
        %p550 = scmp.lt.s32.totalorder %s28, 1
        %s551 = scalar_select %p550, %s28, 1
        %s552 = smul.addr %s551, 4
        %s553 = smul.addr %s552, 8
        %s554 = scalar_lea.vmem %s1, %s553
        %p555 = pneg %p70
        %p556 = pneg %p67
        %p557 = scmp.lt.s32.totalorder %s28, 1
        %s558 = scalar_select %p557, %s28, 1
        %s559 = scalar_lea.vmem %s2, %s558
        %p560 = pneg %p96
        %p561 = pneg %p93
        %p562 = scmp.lt.s32.totalorder %s28, 1
        %s563 = scalar_select %p562, %s28, 1
        %s564 = smul.addr %s563, 4
        %s565 = smul.addr %s564, 8
        %s566 = scalar_lea.vmem %s3, %s565
        %p567 = pneg %p122
        %p568 = pneg %p119
        %p569 = scmp.lt.s32.totalorder %s28, 1
        %s570 = scalar_select %p569, %s28, 1
        %s571 = scalar_lea.vmem %s4, %s570
        %p572 = pneg %p148
        %p573 = pneg %p145
        %p574 = scmp.lt.s32.totalorder %s28, 1
        %s575 = scalar_select %p574, %s28, 1
        %s576 = smul.addr %s575, 4
        %s577 = smul.addr %s576, 8
        %s578 = scalar_lea.vmem %s5, %s577
        %p579 = pneg %p174
        %p580 = pneg %p171
        %p581 = scmp.lt.s32.totalorder %s28, 1
        %s582 = scalar_select %p581, %s28, 1
        %s583 = scalar_lea.vmem %s6, %s582
        %p584 = pneg %p200
        %p585 = pneg %p197
        %p586 = scmp.lt.s32.totalorder %s28, 1
        %s587 = scalar_select %p586, %s28, 1
        %s588 = smul.addr %s587, 8
        %s589 = smul.addr %s588, 8
        %s590 = scalar_lea.vmem %s7, %s589
        %p591 = pneg %p226
        %p592 = pneg %p223
        %p593 = scmp.lt.s32.totalorder %s28, 1
        %s594 = scalar_select %p593, %s28, 1
        %s595 = scalar_lea.vmem %s8, %s594
        %p596 = pneg %p252
        %p597 = pneg %p249
        %p598 = scmp.lt.s32.totalorder %s28, 1
        %s599 = scalar_select %p598, %s28, 1
        %s600 = scalar_lea.vmem %s9, %s599
        %p601 = pneg %p278
        %p602 = pneg %p275
        %p603 = scmp.lt.s32.totalorder %s28, 1
        %s604 = scalar_select %p603, %s28, 1
        %s605 = scalar_lea.vmem %s10, %s604
        %p606 = pneg %p304
        %p607 = pneg %p301
        %p608 = scmp.lt.s32.totalorder %s28, 1
        %s609 = scalar_select %p608, %s28, 1
        %s610 = scalar_lea.vmem %s11, %s609
        %p611 = pneg %p330
        %p612 = pneg %p327
        %p613 = scmp.lt.s32.totalorder %s28, 1
        %s614 = scalar_select %p613, %s28, 1
        %s615 = scalar_lea.vmem %s12, %s614
        %p616 = pneg %p356
        %p617 = pneg %p353
        %p618 = pneg %p377
        %p619 = pneg %p374
        %p620 = pneg %p398
        %p621 = pneg %p395
        %p622 = pneg %p419
        %p623 = pneg %p416
        %p624 = scmp.lt.s32.totalorder %s28, 1
        %s625 = scalar_select %p624, %s28, 1
        %s626 = smul.addr %s625, 4
        %s627 = smul.addr %s626, 8
        %s628 = scalar_lea.vmem %s1, %s627
        %p629 = scmp.lt.s32.totalorder %s28, 1
        %s630 = scalar_select %p629, %s28, 1
        %s631 = scalar_lea.vmem %s2, %s630
        %p632 = scmp.lt.s32.totalorder %s28, 1
        %s633 = scalar_select %p632, %s28, 1
        %s634 = smul.addr %s633, 4
        %s635 = smul.addr %s634, 8
        %s636 = scalar_lea.vmem %s3, %s635
        %p637 = scmp.lt.s32.totalorder %s28, 1
        %s638 = scalar_select %p637, %s28, 1
        %s639 = scalar_lea.vmem %s4, %s638
        %p640 = scmp.lt.s32.totalorder %s28, 1
        %s641 = scalar_select %p640, %s28, 1
        %s642 = smul.addr %s641, 4
        %s643 = smul.addr %s642, 8
        %s644 = scalar_lea.vmem %s5, %s643
        %p645 = scmp.lt.s32.totalorder %s28, 1
        %s646 = scalar_select %p645, %s28, 1
        %s647 = scalar_lea.vmem %s6, %s646
        %p648 = scmp.lt.s32.totalorder %s28, 1
        %s649 = scalar_select %p648, %s28, 1
        %s650 = smul.addr %s649, 8
        %s651 = smul.addr %s650, 8
        %s652 = scalar_lea.vmem %s7, %s651
        %p653 = scmp.lt.s32.totalorder %s28, 1
        %s654 = scalar_select %p653, %s28, 1
        %s655 = scalar_lea.vmem %s8, %s654
        %p656 = scmp.lt.s32.totalorder %s28, 1
        %s657 = scalar_select %p656, %s28, 1
        %s658 = scalar_lea.vmem %s9, %s657
        %p659 = scmp.lt.s32.totalorder %s28, 1
        %s660 = scalar_select %p659, %s28, 1
        %s661 = scalar_lea.vmem %s10, %s660
        %p662 = scmp.lt.s32.totalorder %s28, 1
        %s663 = scalar_select %p662, %s28, 1
        %s664 = scalar_lea.vmem %s11, %s663
        %p665 = scmp.lt.s32.totalorder %s28, 1
        %s666 = scalar_select %p665, %s28, 1
        %s667 = scalar_lea.vmem %s12, %s666
        %p668 = scmp.eq.s32.totalorder %s28, 0
        // Predicated region
        $region85: #{transformer_encoder.1} parent=79 // pred_check
          %p669 = pneg %p668
        $region86: #{transformer_encoder.1} parent=79 // pred_check_branch
          %671 = sbr.rel (%p669) target = $region88
        $region87: #{transformer_encoder.1} parent=79 // pred_region
          %v672 = vld [vmem:[#allocation3] sm:$0xff]
          %v673 = vld [vmem:[#allocation3 + $0x8] sm:$0xff]
          %vm674 = vcmask 261120
          %675 = vst.msk [vmem:[#allocation2] sm:$0xff] %vm674, %v672
          %676 = vst.msk [vmem:[#allocation2 + $0x8] sm:$0xff] %vm674, %v673
        $region88: #{transformer_encoder.1} parent=79 // pred_fallthru
          _
        %v677 = vld [vmem:[#allocation2] sm:$0xff]
        %v678 = vld [vmem:[#allocation2 + $0x8] sm:$0xff]
        %v679 = vld [vmem:[%s658] sm:$0x1]
        %v680 = vld [vmem:[%s661] sm:$0x1]
        %vm681 = vcmask 261120
        %v682 = vsel %vm681, %v677, 0.0
        %683 = vadd.xlane.f32.xlu0 %v682
        %v684 = vpop.xlane.xlu0 %683
        %v685 = vsel %vm681, %v678, 0.0
        %686 = vadd.xlane.f32.xlu0 %v685
        %v687 = vpop.xlane.xlu0 %686
        %v688 = vrcp.pop 32.0
        %v689 = vmul.f32 %v684, %v688
        %v690 = vmul.f32 %v687, %v688
        %v691 = vsub.f32 %v677, %v689
        %v692 = vsub.f32 %v678, %v690
        %v693 = vmul.f32 %v691, %v691
        %v694 = vmul.f32 %v692, %v692
        %v695 = vsel %vm681, %v693, 0.0
        %696 = vadd.xlane.f32.xlu0 %v695
        %v697 = vpop.xlane.xlu0 %696
        %v698 = vsel %vm681, %v694, 0.0
        %699 = vadd.xlane.f32.xlu0 %v698
        %v700 = vpop.xlane.xlu0 %699
        %v701 = vmul.f32 %v697, %v688
        %v702 = vmul.f32 %v700, %v688
        %v703 = vadd.f32 %v701, 1e-05
        %v704 = vadd.f32 %v702, 1e-05
        %v705 = vrsqrt.pop %v703
        %v706 = vrsqrt.pop %v704
        %v707 = vmul.f32 %v691, %v705
        %v708 = vmul.f32 %v692, %v706
        %v710 = vlaneseq
        %v711 = vshrl.u32 %v710, 7
        %v712 = vsub.s32 0, %v711
        %v713 = vrot.slane %v679, %v712
        %v715 = vmul.f32 %v707, %v713
        %v716 = vmul.f32 %v708, %v713
        %v718 = vlaneseq
        %v719 = vshrl.u32 %v718, 7
        %v720 = vsub.s32 0, %v719
        %v721 = vrot.slane %v680, %v720
        %v723 = vadd.f32 %v715, %v721
        %v724 = vadd.f32 %v716, %v721
        %v725 = vld [vmem:[%s628] sm:$0xff]
        %v726 = vld [vmem:[%s628 + $0x8] sm:$0xff]
        %v727 = vld [vmem:[%s628 + $0x10] sm:$0xff]
        %v728 = vld [vmem:[%s628 + $0x18] sm:$0xff]
        %v729 = vld [vmem:[%s631] sm:$0x1]
        %v731 = vlaneseq
        %v732 = vshrl.u32 %v731, 7
        %v733 = vsub.s32 0, %v732
        %v734 = vrot.slane %v729, %v733
        %v737 = vsel %vm681, %v723, 0
        %v740 = vsel %vm681, %v724, 0
        %742 = vmatprep.subr.mxu0 0.0
        %743 = vmatpush1.msra.mxu0 %v725
        %744 = vmatprep.subr.mxu0 0.0
        %745 = vmatpush1.msra.mxu0 %v726
        %746 = vmatprep.subr.mxu0 0.0
        %747 = vmatpush1.msra.mxu0 %v727
        %748 = vmatprep.subr.mxu0 0.0
        %749 = vmatpush1.msra.mxu0 %v728
        %750 = vmatprep.subr.mxu0 0.0
        %751 = vmatpush1.msra.mxu0 0.0
        %752 = vmatprep.subr.mxu0 0.0
        %753 = vmatpush1.msra.mxu0 0.0
        %754 = vmatprep.subr.mxu0 0.0
        %755 = vmatpush1.msra.mxu0 0.0
        %756 = vmatprep.subr.mxu0 0.0
        %757 = vmatpush1.msra.mxu0 0.0
        %758 = vmatprep.subr.mxu0 0.0
        %759 = vmatpush1.msra.mxu0 0.0
        %760 = vmatprep.subr.mxu0 0.0
        %761 = vmatpush1.msra.mxu0 0.0
        %762 = vmatprep.subr.mxu0 0.0
        %763 = vmatpush1.msra.mxu0 0.0
        %764 = vmatprep.subr.mxu0 0.0
        %765 = vmatpush1.msra.mxu0 0.0
        %766 = vmatprep.subr.mxu0 0.0
        %767 = vmatpush1.msra.mxu0 0.0
        %768 = vmatprep.subr.mxu0 0.0
        %769 = vmatpush1.msra.mxu0 0.0
        %770 = vmatprep.subr.mxu0 0.0
        %771 = vmatpush1.msra.mxu0 0.0
        %772 = vmatprep.subr.mxu0 0.0
        %773 = vmatpush1.msra.mxu0 0.0
        %774 = vmatprep.subr.mxu0 0.0
        %775 = vmatpush1.msra.mxu0 0.0
        %776 = vmatprep.subr.mxu0 0.0
        %777 = vmatpush1.msra.mxu0 0.0
        %778 = vmatprep.subr.mxu0 0.0
        %779 = vmatpush1.msra.mxu0 0.0
        %780 = vmatprep.subr.mxu0 0.0
        %781 = vmatpush1.msra.mxu0 0.0
        %782 = vmatprep.subr.mxu0 0.0
        %783 = vmatpush1.msra.mxu0 0.0
        %784 = vmatprep.subr.mxu0 0.0
        %785 = vmatpush1.msra.mxu0 0.0
        %786 = vmatprep.subr.mxu0 0.0
        %787 = vmatpush1.msra.mxu0 0.0
        %788 = vmatprep.subr.mxu0 0.0
        %789 = vmatpush1.msra.mxu0 0.0
        %790 = vmatprep.subr.mxu0 0.0
        %791 = vmatpush1.msra.mxu0 0.0
        %792 = vmatprep.subr.mxu0 0.0
        %793 = vmatpush1.msra.mxu0 0.0
        %794 = vmatprep.subr.mxu0 0.0
        %795 = vmatpush1.msra.mxu0 0.0
        %796 = vmatprep.subr.mxu0 0.0
        %797 = vmatpush1.msra.mxu0 0.0
        %798 = vmatprep.subr.mxu0 0.0
        %799 = vmatpush1.msra.mxu0 0.0
        %800 = vmatprep.subr.mxu0 0.0
        %801 = vmatpush1.msra.mxu0 0.0
        %802 = vmatprep.subr.mxu0 0.0
        %803 = vmatpush1.msra.mxu0 0.0
        %804 = vmatprep.subr.mxu0 0.0
        %805 = vmatpush1.msra.mxu0 0.0
        %806 = vmatprep.mubr.f32.mxu0 0.0
        %807 = vmatmul.mubr.f32.gmra.mrb[0].mxu0 %v737
        %v808 = vpop.f32.mrb[0].mxu0
        %v809 = vadd.f32 %v734, %v808
        %v810 = vpop.f32.mrb[0].mxu0
        %811 = vmatprep.mubr.f32.mxu0 0.0
        %812 = vmatmul.mubr.f32.gmra.mrb[0].mxu0 %v740
        %v813 = vpop.f32.mrb[0].mxu0
        %v814 = vadd.f32 %v734, %v813
        %v815 = vpop.f32.mrb[0].mxu0
        %816 = vdwg.mxu0
        %v817 = vmul.f32 %v809, 0.35355338
        %819 = vrot.lane.b32.xlu0 %v809, 120
        %v820 = vpop.permute.xlu0 %819
        %vm821 = vcmask 64512
        %v823 = vsel %vm821, %v817, 0
        %v825 = vsel %vm821, %v820, 0
        %827 = vmatprep.subr.mxu0 0.0
        %828 = vmatpush1.xpose.msra.mxu0 %v825
        %829 = vmatprep.subr.mxu0 0.0
        %830 = vmatpush1.xpose.msra.mxu0 0.0
        %831 = vmatprep.subr.mxu0 0.0
        %832 = vmatpush1.xpose.msra.mxu0 0.0
        %833 = vmatprep.subr.mxu0 0.0
        %834 = vmatpush1.xpose.msra.mxu0 0.0
        %835 = vmatprep.subr.mxu0 0.0
        %836 = vmatpush1.xpose.msra.mxu0 0.0
        %837 = vmatprep.subr.mxu0 0.0
        %838 = vmatpush1.xpose.msra.mxu0 0.0
        %839 = vmatprep.subr.mxu0 0.0
        %840 = vmatpush1.xpose.msra.mxu0 0.0
        %841 = vmatprep.subr.mxu0 0.0
        %842 = vmatpush1.xpose.msra.mxu0 0.0
        %843 = vmatprep.subr.mxu0 0.0
        %844 = vmatpush1.xpose.msra.mxu0 0.0
        %845 = vmatprep.subr.mxu0 0.0
        %846 = vmatpush1.xpose.msra.mxu0 0.0
        %847 = vmatprep.subr.mxu0 0.0
        %848 = vmatpush1.xpose.msra.mxu0 0.0
        %849 = vmatprep.subr.mxu0 0.0
        %850 = vmatpush1.xpose.msra.mxu0 0.0
        %851 = vmatprep.subr.mxu0 0.0
        %852 = vmatpush1.xpose.msra.mxu0 0.0
        %853 = vmatprep.subr.mxu0 0.0
        %854 = vmatpush1.xpose.msra.mxu0 0.0
        %855 = vmatprep.subr.mxu0 0.0
        %856 = vmatpush1.xpose.msra.mxu0 0.0
        %857 = vmatprep.subr.mxu0 0.0
        %858 = vmatpush1.xpose.msra.mxu0 0.0
        %859 = vmatprep.subr.mxu0 0.0
        %860 = vmatpush1.xpose.msra.mxu0 0.0
        %861 = vmatprep.subr.mxu0 0.0
        %862 = vmatpush1.xpose.msra.mxu0 0.0
        %863 = vmatprep.subr.mxu0 0.0
        %864 = vmatpush1.xpose.msra.mxu0 0.0
        %865 = vmatprep.subr.mxu0 0.0
        %866 = vmatpush1.xpose.msra.mxu0 0.0
        %867 = vmatprep.subr.mxu0 0.0
        %868 = vmatpush1.xpose.msra.mxu0 0.0
        %869 = vmatprep.subr.mxu0 0.0
        %870 = vmatpush1.xpose.msra.mxu0 0.0
        %871 = vmatprep.subr.mxu0 0.0
        %872 = vmatpush1.xpose.msra.mxu0 0.0
        %873 = vmatprep.subr.mxu0 0.0
        %874 = vmatpush1.xpose.msra.mxu0 0.0
        %875 = vmatprep.subr.mxu0 0.0
        %876 = vmatpush1.xpose.msra.mxu0 0.0
        %877 = vmatprep.subr.mxu0 0.0
        %878 = vmatpush1.xpose.msra.mxu0 0.0
        %879 = vmatprep.subr.mxu0 0.0
        %880 = vmatpush1.xpose.msra.mxu0 0.0
        %881 = vmatprep.subr.mxu0 0.0
        %882 = vmatpush1.xpose.msra.mxu0 0.0
        %883 = vmatprep.subr.mxu0 0.0
        %884 = vmatpush1.xpose.msra.mxu0 0.0
        %885 = vmatprep.subr.mxu0 0.0
        %886 = vmatpush1.xpose.msra.mxu0 0.0
        %887 = vmatprep.subr.mxu0 0.0
        %888 = vmatpush1.xpose.msra.mxu0 0.0
        %889 = vmatprep.subr.mxu0 0.0
        %890 = vmatpush1.xpose.msra.mxu0 0.0
        %891 = vmatprep.mubr.f32.mxu0 0.0
        %892 = vmatmul.mubr.f32.gmra.mrb[0].mxu0 %v823
        %v893 = vpop.f32.mrb[0].mxu0
        %v894 = vadd.f32 0.0, %v893
        %v895 = vpop.f32.mrb[0].mxu0
        %896 = vdwg.mxu0
        %v897 = vsel %vm821, %v894, -inf
        %898 = vmax.xlane.f32.xlu0 %v897
        %v899 = vpop.xlane.xlu0 %898
        %v900 = vsub.f32 %v894, %v899
        %v901 = vmul.f32 %v900, 1.442695
        %v902 = vpow.pop %v901
        %v903 = vsel %vm821, %v902, 0.0
        %904 = vadd.xlane.f32.xlu0 %v903
        %v905 = vpop.xlane.xlu0 %904
        %v906 = vrcp.pop %v905
        %v907 = vmul.f32 %v902, %v906
        %908 = vrot.lane.b32.xlu0 %v809, 112
        %v909 = vpop.permute.xlu0 %908
        %v912 = vsel %vm821, %v907, 0
        %914 = vmatprep.subr.mxu0 0.0
        %915 = vmatpush1.msra.mxu0 %v909
        %916 = vmatprep.subr.mxu0 0.0
        %917 = vmatpush1.msra.mxu0 0.0
        %918 = vmatprep.subr.mxu0 0.0
        %919 = vmatpush1.msra.mxu0 0.0
        %920 = vmatprep.subr.mxu0 0.0
        %921 = vmatpush1.msra.mxu0 0.0
        %922 = vmatprep.subr.mxu0 0.0
        %923 = vmatpush1.msra.mxu0 0.0
        %924 = vmatprep.subr.mxu0 0.0
        %925 = vmatpush1.msra.mxu0 0.0
        %926 = vmatprep.subr.mxu0 0.0
        %927 = vmatpush1.msra.mxu0 0.0
        %928 = vmatprep.subr.mxu0 0.0
        %929 = vmatpush1.msra.mxu0 0.0
        %930 = vmatprep.subr.mxu0 0.0
        %931 = vmatpush1.msra.mxu0 0.0
        %932 = vmatprep.subr.mxu0 0.0
        %933 = vmatpush1.msra.mxu0 0.0
        %934 = vmatprep.subr.mxu0 0.0
        %935 = vmatpush1.msra.mxu0 0.0
        %936 = vmatprep.subr.mxu0 0.0
        %937 = vmatpush1.msra.mxu0 0.0
        %938 = vmatprep.subr.mxu0 0.0
        %939 = vmatpush1.msra.mxu0 0.0
        %940 = vmatprep.subr.mxu0 0.0
        %941 = vmatpush1.msra.mxu0 0.0
        %942 = vmatprep.subr.mxu0 0.0
        %943 = vmatpush1.msra.mxu0 0.0
        %944 = vmatprep.subr.mxu0 0.0
        %945 = vmatpush1.msra.mxu0 0.0
        %946 = vmatprep.subr.mxu0 0.0
        %947 = vmatpush1.msra.mxu0 0.0
        %948 = vmatprep.subr.mxu0 0.0
        %949 = vmatpush1.msra.mxu0 0.0
        %950 = vmatprep.subr.mxu0 0.0
        %951 = vmatpush1.msra.mxu0 0.0
        %952 = vmatprep.subr.mxu0 0.0
        %953 = vmatpush1.msra.mxu0 0.0
        %954 = vmatprep.subr.mxu0 0.0
        %955 = vmatpush1.msra.mxu0 0.0
        %956 = vmatprep.subr.mxu0 0.0
        %957 = vmatpush1.msra.mxu0 0.0
        %958 = vmatprep.subr.mxu0 0.0
        %959 = vmatpush1.msra.mxu0 0.0
        %960 = vmatprep.subr.mxu0 0.0
        %961 = vmatpush1.msra.mxu0 0.0
        %962 = vmatprep.subr.mxu0 0.0
        %963 = vmatpush1.msra.mxu0 0.0
        %964 = vmatprep.subr.mxu0 0.0
        %965 = vmatpush1.msra.mxu0 0.0
        %966 = vmatprep.subr.mxu0 0.0
        %967 = vmatpush1.msra.mxu0 0.0
        %968 = vmatprep.subr.mxu0 0.0
        %969 = vmatpush1.msra.mxu0 0.0
        %970 = vmatprep.subr.mxu0 0.0
        %971 = vmatpush1.msra.mxu0 0.0
        %972 = vmatprep.subr.mxu0 0.0
        %973 = vmatpush1.msra.mxu0 0.0
        %974 = vmatprep.subr.mxu0 0.0
        %975 = vmatpush1.msra.mxu0 0.0
        %976 = vmatprep.subr.mxu0 0.0
        %977 = vmatpush1.msra.mxu0 0.0
        %978 = vmatprep.mubr.f32.mxu0 0.0
        %979 = vmatmul.mubr.f32.gmra.mrb[0].mxu0 %v912
        %v980 = vpop.f32.mrb[0].mxu0
        %v981 = vadd.f32 0.0, %v980
        %v982 = vpop.f32.mrb[0].mxu0
        %983 = vdwg.mxu0
        %984 = vrot.lane.b32.xlu0 %v817, 104
        %v985 = vpop.permute.xlu0 %984
        %986 = vrot.lane.b32.xlu0 %v809, 96
        %v987 = vpop.permute.xlu0 %986
        %v988 = vsel %vm821, %v985, 0
        %v990 = vsel %vm821, %v987, 0
        %992 = vmatprep.subr.mxu0 0.0
        %993 = vmatpush1.xpose.msra.mxu0 %v990
        %994 = vmatprep.subr.mxu0 0.0
        %995 = vmatpush1.xpose.msra.mxu0 0.0
        %996 = vmatprep.subr.mxu0 0.0
        %997 = vmatpush1.xpose.msra.mxu0 0.0
        %998 = vmatprep.subr.mxu0 0.0
        %999 = vmatpush1.xpose.msra.mxu0 0.0
        %1000 = vmatprep.subr.mxu0 0.0
        %1001 = vmatpush1.xpose.msra.mxu0 0.0
        %1002 = vmatprep.subr.mxu0 0.0
        %1003 = vmatpush1.xpose.msra.mxu0 0.0
        %1004 = vmatprep.subr.mxu0 0.0
        %1005 = vmatpush1.xpose.msra.mxu0 0.0
        %1006 = vmatprep.subr.mxu0 0.0
        %1007 = vmatpush1.xpose.msra.mxu0 0.0
        %1008 = vmatprep.subr.mxu0 0.0
        %1009 = vmatpush1.xpose.msra.mxu0 0.0
        %1010 = vmatprep.subr.mxu0 0.0
        %1011 = vmatpush1.xpose.msra.mxu0 0.0
        %1012 = vmatprep.subr.mxu0 0.0
        %1013 = vmatpush1.xpose.msra.mxu0 0.0
        %1014 = vmatprep.subr.mxu0 0.0
        %1015 = vmatpush1.xpose.msra.mxu0 0.0
        %1016 = vmatprep.subr.mxu0 0.0
        %1017 = vmatpush1.xpose.msra.mxu0 0.0
        %1018 = vmatprep.subr.mxu0 0.0
        %1019 = vmatpush1.xpose.msra.mxu0 0.0
        %1020 = vmatprep.subr.mxu0 0.0
        %1021 = vmatpush1.xpose.msra.mxu0 0.0
        %1022 = vmatprep.subr.mxu0 0.0
        %1023 = vmatpush1.xpose.msra.mxu0 0.0
        %1024 = vmatprep.subr.mxu0 0.0
        %1025 = vmatpush1.xpose.msra.mxu0 0.0
        %1026 = vmatprep.subr.mxu0 0.0
        %1027 = vmatpush1.xpose.msra.mxu0 0.0
        %1028 = vmatprep.subr.mxu0 0.0
        %1029 = vmatpush1.xpose.msra.mxu0 0.0
        %1030 = vmatprep.subr.mxu0 0.0
        %1031 = vmatpush1.xpose.msra.mxu0 0.0
        %1032 = vmatprep.subr.mxu0 0.0
        %1033 = vmatpush1.xpose.msra.mxu0 0.0
        %1034 = vmatprep.subr.mxu0 0.0
        %1035 = vmatpush1.xpose.msra.mxu0 0.0
        %1036 = vmatprep.subr.mxu0 0.0
        %1037 = vmatpush1.xpose.msra.mxu0 0.0
        %1038 = vmatprep.subr.mxu0 0.0
        %1039 = vmatpush1.xpose.msra.mxu0 0.0
        %1040 = vmatprep.subr.mxu0 0.0
        %1041 = vmatpush1.xpose.msra.mxu0 0.0
        %1042 = vmatprep.subr.mxu0 0.0
        %1043 = vmatpush1.xpose.msra.mxu0 0.0
        %1044 = vmatprep.subr.mxu0 0.0
        %1045 = vmatpush1.xpose.msra.mxu0 0.0
        %1046 = vmatprep.subr.mxu0 0.0
        %1047 = vmatpush1.xpose.msra.mxu0 0.0
        %1048 = vmatprep.subr.mxu0 0.0
        %1049 = vmatpush1.xpose.msra.mxu0 0.0
        %1050 = vmatprep.subr.mxu0 0.0
        %1051 = vmatpush1.xpose.msra.mxu0 0.0
        %1052 = vmatprep.subr.mxu0 0.0
        %1053 = vmatpush1.xpose.msra.mxu0 0.0
        %1054 = vmatprep.subr.mxu0 0.0
        %1055 = vmatpush1.xpose.msra.mxu0 0.0
        %1056 = vmatprep.mubr.f32.mxu0 0.0
        %1057 = vmatmul.mubr.f32.gmra.mrb[0].mxu0 %v988
        %v1058 = vpop.f32.mrb[0].mxu0
        %v1059 = vadd.f32 0.0, %v1058
        %v1060 = vpop.f32.mrb[0].mxu0
        %1061 = vdwg.mxu0
        %v1062 = vsel %vm821, %v1059, -inf
        %1063 = vmax.xlane.f32.xlu0 %v1062
        %v1064 = vpop.xlane.xlu0 %1063
        %v1065 = vsub.f32 %v1059, %v1064
        %v1066 = vmul.f32 %v1065, 1.442695
        %v1067 = vpow.pop %v1066
        %v1068 = vsel %vm821, %v1067, 0.0
        %1069 = vadd.xlane.f32.xlu0 %v1068
        %v1070 = vpop.xlane.xlu0 %1069
        %v1071 = vrcp.pop %v1070
        %v1072 = vmul.f32 %v1067, %v1071
        %1073 = vrot.lane.b32.xlu0 %v809, 88
        %v1074 = vpop.permute.xlu0 %1073
        %v1077 = vsel %vm821, %v1072, 0
        %1079 = vmatprep.subr.mxu0 0.0
        %1080 = vmatpush1.msra.mxu0 %v1074
        %1081 = vmatprep.subr.mxu0 0.0
        %1082 = vmatpush1.msra.mxu0 0.0
        %1083 = vmatprep.subr.mxu0 0.0
        %1084 = vmatpush1.msra.mxu0 0.0
        %1085 = vmatprep.subr.mxu0 0.0
        %1086 = vmatpush1.msra.mxu0 0.0
        %1087 = vmatprep.subr.mxu0 0.0
        %1088 = vmatpush1.msra.mxu0 0.0
        %1089 = vmatprep.subr.mxu0 0.0
        %1090 = vmatpush1.msra.mxu0 0.0
        %1091 = vmatprep.subr.mxu0 0.0
        %1092 = vmatpush1.msra.mxu0 0.0
        %1093 = vmatprep.subr.mxu0 0.0
        %1094 = vmatpush1.msra.mxu0 0.0
        %1095 = vmatprep.subr.mxu0 0.0
        %1096 = vmatpush1.msra.mxu0 0.0
        %1097 = vmatprep.subr.mxu0 0.0
        %1098 = vmatpush1.msra.mxu0 0.0
        %1099 = vmatprep.subr.mxu0 0.0
        %1100 = vmatpush1.msra.mxu0 0.0
        %1101 = vmatprep.subr.mxu0 0.0
        %1102 = vmatpush1.msra.mxu0 0.0
        %1103 = vmatprep.subr.mxu0 0.0
        %1104 = vmatpush1.msra.mxu0 0.0
        %1105 = vmatprep.subr.mxu0 0.0
        %1106 = vmatpush1.msra.mxu0 0.0
        %1107 = vmatprep.subr.mxu0 0.0
        %1108 = vmatpush1.msra.mxu0 0.0
        %1109 = vmatprep.subr.mxu0 0.0
        %1110 = vmatpush1.msra.mxu0 0.0
        %1111 = vmatprep.subr.mxu0 0.0
        %1112 = vmatpush1.msra.mxu0 0.0
        %1113 = vmatprep.subr.mxu0 0.0
        %1114 = vmatpush1.msra.mxu0 0.0
        %1115 = vmatprep.subr.mxu0 0.0
        %1116 = vmatpush1.msra.mxu0 0.0
        %1117 = vmatprep.subr.mxu0 0.0
        %1118 = vmatpush1.msra.mxu0 0.0
        %1119 = vmatprep.subr.mxu0 0.0
        %1120 = vmatpush1.msra.mxu0 0.0
        %1121 = vmatprep.subr.mxu0 0.0
        %1122 = vmatpush1.msra.mxu0 0.0
        %1123 = vmatprep.subr.mxu0 0.0
        %1124 = vmatpush1.msra.mxu0 0.0
        %1125 = vmatprep.subr.mxu0 0.0
        %1126 = vmatpush1.msra.mxu0 0.0
        %1127 = vmatprep.subr.mxu0 0.0
        %1128 = vmatpush1.msra.mxu0 0.0
        %1129 = vmatprep.subr.mxu0 0.0
        %1130 = vmatpush1.msra.mxu0 0.0
        %1131 = vmatprep.subr.mxu0 0.0
        %1132 = vmatpush1.msra.mxu0 0.0
        %1133 = vmatprep.subr.mxu0 0.0
        %1134 = vmatpush1.msra.mxu0 0.0
        %1135 = vmatprep.subr.mxu0 0.0
        %1136 = vmatpush1.msra.mxu0 0.0
        %1137 = vmatprep.subr.mxu0 0.0
        %1138 = vmatpush1.msra.mxu0 0.0
        %1139 = vmatprep.subr.mxu0 0.0
        %1140 = vmatpush1.msra.mxu0 0.0
        %1141 = vmatprep.subr.mxu0 0.0
        %1142 = vmatpush1.msra.mxu0 0.0
        %1143 = vmatprep.mubr.f32.mxu0 0.0
        %1144 = vmatmul.mubr.f32.gmra.mrb[0].mxu0 %v1077
        %v1145 = vpop.f32.mrb[0].mxu0
        %v1146 = vadd.f32 0.0, %v1145
        %v1147 = vpop.f32.mrb[0].mxu0
        %1148 = vdwg.mxu0
        %1149 = vrot.lane.b32.xlu0 %v817, 80
        %v1150 = vpop.permute.xlu0 %1149
        %1151 = vrot.lane.b32.xlu0 %v809, 72
        %v1152 = vpop.permute.xlu0 %1151
        %v1153 = vsel %vm821, %v1150, 0
        %v1155 = vsel %vm821, %v1152, 0
        %1157 = vmatprep.subr.mxu0 0.0
        %1158 = vmatpush1.xpose.msra.mxu0 %v1155
        %1159 = vmatprep.subr.mxu0 0.0
        %1160 = vmatpush1.xpose.msra.mxu0 0.0
        %1161 = vmatprep.subr.mxu0 0.0
        %1162 = vmatpush1.xpose.msra.mxu0 0.0
        %1163 = vmatprep.subr.mxu0 0.0
        %1164 = vmatpush1.xpose.msra.mxu0 0.0
        %1165 = vmatprep.subr.mxu0 0.0
        %1166 = vmatpush1.xpose.msra.mxu0 0.0
        %1167 = vmatprep.subr.mxu0 0.0
        %1168 = vmatpush1.xpose.msra.mxu0 0.0
        %1169 = vmatprep.subr.mxu0 0.0
        %1170 = vmatpush1.xpose.msra.mxu0 0.0
        %1171 = vmatprep.subr.mxu0 0.0
        %1172 = vmatpush1.xpose.msra.mxu0 0.0
        %1173 = vmatprep.subr.mxu0 0.0
        %1174 = vmatpush1.xpose.msra.mxu0 0.0
        %1175 = vmatprep.subr.mxu0 0.0
        %1176 = vmatpush1.xpose.msra.mxu0 0.0
        %1177 = vmatprep.subr.mxu0 0.0
        %1178 = vmatpush1.xpose.msra.mxu0 0.0
        %1179 = vmatprep.subr.mxu0 0.0
        %1180 = vmatpush1.xpose.msra.mxu0 0.0
        %1181 = vmatprep.subr.mxu0 0.0
        %1182 = vmatpush1.xpose.msra.mxu0 0.0
        %1183 = vmatprep.subr.mxu0 0.0
        %1184 = vmatpush1.xpose.msra.mxu0 0.0
        %1185 = vmatprep.subr.mxu0 0.0
        %1186 = vmatpush1.xpose.msra.mxu0 0.0
        %1187 = vmatprep.subr.mxu0 0.0
        %1188 = vmatpush1.xpose.msra.mxu0 0.0
        %1189 = vmatprep.subr.mxu0 0.0
        %1190 = vmatpush1.xpose.msra.mxu0 0.0
        %1191 = vmatprep.subr.mxu0 0.0
        %1192 = vmatpush1.xpose.msra.mxu0 0.0
        %1193 = vmatprep.subr.mxu0 0.0
        %1194 = vmatpush1.xpose.msra.mxu0 0.0
        %1195 = vmatprep.subr.mxu0 0.0
        %1196 = vmatpush1.xpose.msra.mxu0 0.0
        %1197 = vmatprep.subr.mxu0 0.0
        %1198 = vmatpush1.xpose.msra.mxu0 0.0
        %1199 = vmatprep.subr.mxu0 0.0
        %1200 = vmatpush1.xpose.msra.mxu0 0.0
        %1201 = vmatprep.subr.mxu0 0.0
        %1202 = vmatpush1.xpose.msra.mxu0 0.0
        %1203 = vmatprep.subr.mxu0 0.0
        %1204 = vmatpush1.xpose.msra.mxu0 0.0
        %1205 = vmatprep.subr.mxu0 0.0
        %1206 = vmatpush1.xpose.msra.mxu0 0.0
        %1207 = vmatprep.subr.mxu0 0.0
        %1208 = vmatpush1.xpose.msra.mxu0 0.0
        %1209 = vmatprep.subr.mxu0 0.0
        %1210 = vmatpush1.xpose.msra.mxu0 0.0
        %1211 = vmatprep.subr.mxu0 0.0
        %1212 = vmatpush1.xpose.msra.mxu0 0.0
        %1213 = vmatprep.subr.mxu0 0.0
        %1214 = vmatpush1.xpose.msra.mxu0 0.0
        %1215 = vmatprep.subr.mxu0 0.0
        %1216 = vmatpush1.xpose.msra.mxu0 0.0
        %1217 = vmatprep.subr.mxu0 0.0
        %1218 = vmatpush1.xpose.msra.mxu0 0.0
        %1219 = vmatprep.subr.mxu0 0.0
        %1220 = vmatpush1.xpose.msra.mxu0 0.0
        %1221 = vmatprep.mubr.f32.mxu0 0.0
        %1222 = vmatmul.mubr.f32.gmra.mrb[0].mxu0 %v1153
        %v1223 = vpop.f32.mrb[0].mxu0
        %v1224 = vadd.f32 0.0, %v1223
        %v1225 = vpop.f32.mrb[0].mxu0
        %1226 = vdwg.mxu0
        %v1227 = vsel %vm821, %v1224, -inf
        %1228 = vmax.xlane.f32.xlu0 %v1227
        %v1229 = vpop.xlane.xlu0 %1228
        %v1230 = vsub.f32 %v1224, %v1229
        %v1231 = vmul.f32 %v1230, 1.442695
        %v1232 = vpow.pop %v1231
        %v1233 = vsel %vm821, %v1232, 0.0
        %1234 = vadd.xlane.f32.xlu0 %v1233
        %v1235 = vpop.xlane.xlu0 %1234
        %v1236 = vrcp.pop %v1235
        %v1237 = vmul.f32 %v1232, %v1236
        %1238 = vrot.lane.b32.xlu0 %v809, 64
        %v1239 = vpop.permute.xlu0 %1238
        %v1242 = vsel %vm821, %v1237, 0
        %1244 = vmatprep.subr.mxu0 0.0
        %1245 = vmatpush1.msra.mxu0 %v1239
        %1246 = vmatprep.subr.mxu0 0.0
        %1247 = vmatpush1.msra.mxu0 0.0
        %1248 = vmatprep.subr.mxu0 0.0
        %1249 = vmatpush1.msra.mxu0 0.0
        %1250 = vmatprep.subr.mxu0 0.0
        %1251 = vmatpush1.msra.mxu0 0.0
        %1252 = vmatprep.subr.mxu0 0.0
        %1253 = vmatpush1.msra.mxu0 0.0
        %1254 = vmatprep.subr.mxu0 0.0
        %1255 = vmatpush1.msra.mxu0 0.0
        %1256 = vmatprep.subr.mxu0 0.0
        %1257 = vmatpush1.msra.mxu0 0.0
        %1258 = vmatprep.subr.mxu0 0.0
        %1259 = vmatpush1.msra.mxu0 0.0
        %1260 = vmatprep.subr.mxu0 0.0
        %1261 = vmatpush1.msra.mxu0 0.0
        %1262 = vmatprep.subr.mxu0 0.0
        %1263 = vmatpush1.msra.mxu0 0.0
        %1264 = vmatprep.subr.mxu0 0.0
        %1265 = vmatpush1.msra.mxu0 0.0
        %1266 = vmatprep.subr.mxu0 0.0
        %1267 = vmatpush1.msra.mxu0 0.0
        %1268 = vmatprep.subr.mxu0 0.0
        %1269 = vmatpush1.msra.mxu0 0.0
        %1270 = vmatprep.subr.mxu0 0.0
        %1271 = vmatpush1.msra.mxu0 0.0
        %1272 = vmatprep.subr.mxu0 0.0
        %1273 = vmatpush1.msra.mxu0 0.0
        %1274 = vmatprep.subr.mxu0 0.0
        %1275 = vmatpush1.msra.mxu0 0.0
        %1276 = vmatprep.subr.mxu0 0.0
        %1277 = vmatpush1.msra.mxu0 0.0
        %1278 = vmatprep.subr.mxu0 0.0
        %1279 = vmatpush1.msra.mxu0 0.0
        %1280 = vmatprep.subr.mxu0 0.0
        %1281 = vmatpush1.msra.mxu0 0.0
        %1282 = vmatprep.subr.mxu0 0.0
        %1283 = vmatpush1.msra.mxu0 0.0
        %1284 = vmatprep.subr.mxu0 0.0
        %1285 = vmatpush1.msra.mxu0 0.0
        %1286 = vmatprep.subr.mxu0 0.0
        %1287 = vmatpush1.msra.mxu0 0.0
        %1288 = vmatprep.subr.mxu0 0.0
        %1289 = vmatpush1.msra.mxu0 0.0
        %1290 = vmatprep.subr.mxu0 0.0
        %1291 = vmatpush1.msra.mxu0 0.0
        %1292 = vmatprep.subr.mxu0 0.0
        %1293 = vmatpush1.msra.mxu0 0.0
        %1294 = vmatprep.subr.mxu0 0.0
        %1295 = vmatpush1.msra.mxu0 0.0
        %1296 = vmatprep.subr.mxu0 0.0
        %1297 = vmatpush1.msra.mxu0 0.0
        %1298 = vmatprep.subr.mxu0 0.0
        %1299 = vmatpush1.msra.mxu0 0.0
        %1300 = vmatprep.subr.mxu0 0.0
        %1301 = vmatpush1.msra.mxu0 0.0
        %1302 = vmatprep.subr.mxu0 0.0
        %1303 = vmatpush1.msra.mxu0 0.0
        %1304 = vmatprep.subr.mxu0 0.0
        %1305 = vmatpush1.msra.mxu0 0.0
        %1306 = vmatprep.subr.mxu0 0.0
        %1307 = vmatpush1.msra.mxu0 0.0
        %1308 = vmatprep.mubr.f32.mxu0 0.0
        %1309 = vmatmul.mubr.f32.gmra.mrb[0].mxu0 %v1242
        %v1310 = vpop.f32.mrb[0].mxu0
        %v1311 = vadd.f32 0.0, %v1310
        %v1312 = vpop.f32.mrb[0].mxu0
        %1313 = vdwg.mxu0
        %1314 = vrot.lane.b32.xlu0 %v817, 56
        %v1315 = vpop.permute.xlu0 %1314
        %1316 = vrot.lane.b32.xlu0 %v809, 48
        %v1317 = vpop.permute.xlu0 %1316
        %v1318 = vsel %vm821, %v1315, 0
        %v1320 = vsel %vm821, %v1317, 0
        %1322 = vmatprep.subr.mxu0 0.0
        %1323 = vmatpush1.xpose.msra.mxu0 %v1320
        %1324 = vmatprep.subr.mxu0 0.0
        %1325 = vmatpush1.xpose.msra.mxu0 0.0
        %1326 = vmatprep.subr.mxu0 0.0
        %1327 = vmatpush1.xpose.msra.mxu0 0.0
        %1328 = vmatprep.subr.mxu0 0.0
        %1329 = vmatpush1.xpose.msra.mxu0 0.0
        %1330 = vmatprep.subr.mxu0 0.0
        %1331 = vmatpush1.xpose.msra.mxu0 0.0
        %1332 = vmatprep.subr.mxu0 0.0
        %1333 = vmatpush1.xpose.msra.mxu0 0.0
        %1334 = vmatprep.subr.mxu0 0.0
        %1335 = vmatpush1.xpose.msra.mxu0 0.0
        %1336 = vmatprep.subr.mxu0 0.0
        %1337 = vmatpush1.xpose.msra.mxu0 0.0
        %1338 = vmatprep.subr.mxu0 0.0
        %1339 = vmatpush1.xpose.msra.mxu0 0.0
        %1340 = vmatprep.subr.mxu0 0.0
        %1341 = vmatpush1.xpose.msra.mxu0 0.0
        %1342 = vmatprep.subr.mxu0 0.0
        %1343 = vmatpush1.xpose.msra.mxu0 0.0
        %1344 = vmatprep.subr.mxu0 0.0
        %1345 = vmatpush1.xpose.msra.mxu0 0.0
        %1346 = vmatprep.subr.mxu0 0.0
        %1347 = vmatpush1.xpose.msra.mxu0 0.0
        %1348 = vmatprep.subr.mxu0 0.0
        %1349 = vmatpush1.xpose.msra.mxu0 0.0
        %1350 = vmatprep.subr.mxu0 0.0
        %1351 = vmatpush1.xpose.msra.mxu0 0.0
        %1352 = vmatprep.subr.mxu0 0.0
        %1353 = vmatpush1.xpose.msra.mxu0 0.0
        %1354 = vmatprep.subr.mxu0 0.0
        %1355 = vmatpush1.xpose.msra.mxu0 0.0
        %1356 = vmatprep.subr.mxu0 0.0
        %1357 = vmatpush1.xpose.msra.mxu0 0.0
        %1358 = vmatprep.subr.mxu0 0.0
        %1359 = vmatpush1.xpose.msra.mxu0 0.0
        %1360 = vmatprep.subr.mxu0 0.0
        %1361 = vmatpush1.xpose.msra.mxu0 0.0
        %1362 = vmatprep.subr.mxu0 0.0
        %1363 = vmatpush1.xpose.msra.mxu0 0.0
        %1364 = vmatprep.subr.mxu0 0.0
        %1365 = vmatpush1.xpose.msra.mxu0 0.0
        %1366 = vmatprep.subr.mxu0 0.0
        %1367 = vmatpush1.xpose.msra.mxu0 0.0
        %1368 = vmatprep.subr.mxu0 0.0
        %1369 = vmatpush1.xpose.msra.mxu0 0.0
        %1370 = vmatprep.subr.mxu0 0.0
        %1371 = vmatpush1.xpose.msra.mxu0 0.0
        %1372 = vmatprep.subr.mxu0 0.0
        %1373 = vmatpush1.xpose.msra.mxu0 0.0
        %1374 = vmatprep.subr.mxu0 0.0
        %1375 = vmatpush1.xpose.msra.mxu0 0.0
        %1376 = vmatprep.subr.mxu0 0.0
        %1377 = vmatpush1.xpose.msra.mxu0 0.0
        %1378 = vmatprep.subr.mxu0 0.0
        %1379 = vmatpush1.xpose.msra.mxu0 0.0
        %1380 = vmatprep.subr.mxu0 0.0
        %1381 = vmatpush1.xpose.msra.mxu0 0.0
        %1382 = vmatprep.subr.mxu0 0.0
        %1383 = vmatpush1.xpose.msra.mxu0 0.0
        %1384 = vmatprep.subr.mxu0 0.0
        %1385 = vmatpush1.xpose.msra.mxu0 0.0
        %1386 = vmatprep.mubr.f32.mxu0 0.0
        %1387 = vmatmul.mubr.f32.gmra.mrb[0].mxu0 %v1318
        %v1388 = vpop.f32.mrb[0].mxu0
        %v1389 = vadd.f32 0.0, %v1388
        %v1390 = vpop.f32.mrb[0].mxu0
        %1391 = vdwg.mxu0
        %v1392 = vsel %vm821, %v1389, -inf
        %1393 = vmax.xlane.f32.xlu0 %v1392
        %v1394 = vpop.xlane.xlu0 %1393
        %v1395 = vsub.f32 %v1389, %v1394
        %v1396 = vmul.f32 %v1395, 1.442695
        %v1397 = vpow.pop %v1396
        %v1398 = vsel %vm821, %v1397, 0.0
        %1399 = vadd.xlane.f32.xlu0 %v1398
        %v1400 = vpop.xlane.xlu0 %1399
        %v1401 = vrcp.pop %v1400
        %v1402 = vmul.f32 %v1397, %v1401
        %1403 = vrot.lane.b32.xlu0 %v809, 40
        %v1404 = vpop.permute.xlu0 %1403
        %v1407 = vsel %vm821, %v1402, 0
        %1409 = vmatprep.subr.mxu0 0.0
        %1410 = vmatpush1.msra.mxu0 %v1404
        %1411 = vmatprep.subr.mxu0 0.0
        %1412 = vmatpush1.msra.mxu0 0.0
        %1413 = vmatprep.subr.mxu0 0.0
        %1414 = vmatpush1.msra.mxu0 0.0
        %1415 = vmatprep.subr.mxu0 0.0
        %1416 = vmatpush1.msra.mxu0 0.0
        %1417 = vmatprep.subr.mxu0 0.0
        %1418 = vmatpush1.msra.mxu0 0.0
        %1419 = vmatprep.subr.mxu0 0.0
        %1420 = vmatpush1.msra.mxu0 0.0
        %1421 = vmatprep.subr.mxu0 0.0
        %1422 = vmatpush1.msra.mxu0 0.0
        %1423 = vmatprep.subr.mxu0 0.0
        %1424 = vmatpush1.msra.mxu0 0.0
        %1425 = vmatprep.subr.mxu0 0.0
        %1426 = vmatpush1.msra.mxu0 0.0
        %1427 = vmatprep.subr.mxu0 0.0
        %1428 = vmatpush1.msra.mxu0 0.0
        %1429 = vmatprep.subr.mxu0 0.0
        %1430 = vmatpush1.msra.mxu0 0.0
        %1431 = vmatprep.subr.mxu0 0.0
        %1432 = vmatpush1.msra.mxu0 0.0
        %1433 = vmatprep.subr.mxu0 0.0
        %1434 = vmatpush1.msra.mxu0 0.0
        %1435 = vmatprep.subr.mxu0 0.0
        %1436 = vmatpush1.msra.mxu0 0.0
        %1437 = vmatprep.subr.mxu0 0.0
        %1438 = vmatpush1.msra.mxu0 0.0
        %1439 = vmatprep.subr.mxu0 0.0
        %1440 = vmatpush1.msra.mxu0 0.0
        %1441 = vmatprep.subr.mxu0 0.0
        %1442 = vmatpush1.msra.mxu0 0.0
        %1443 = vmatprep.subr.mxu0 0.0
        %1444 = vmatpush1.msra.mxu0 0.0
        %1445 = vmatprep.subr.mxu0 0.0
        %1446 = vmatpush1.msra.mxu0 0.0
        %1447 = vmatprep.subr.mxu0 0.0
        %1448 = vmatpush1.msra.mxu0 0.0
        %1449 = vmatprep.subr.mxu0 0.0
        %1450 = vmatpush1.msra.mxu0 0.0
        %1451 = vmatprep.subr.mxu0 0.0
        %1452 = vmatpush1.msra.mxu0 0.0
        %1453 = vmatprep.subr.mxu0 0.0
        %1454 = vmatpush1.msra.mxu0 0.0
        %1455 = vmatprep.subr.mxu0 0.0
        %1456 = vmatpush1.msra.mxu0 0.0
        %1457 = vmatprep.subr.mxu0 0.0
        %1458 = vmatpush1.msra.mxu0 0.0
        %1459 = vmatprep.subr.mxu0 0.0
        %1460 = vmatpush1.msra.mxu0 0.0
        %1461 = vmatprep.subr.mxu0 0.0
        %1462 = vmatpush1.msra.mxu0 0.0
        %1463 = vmatprep.subr.mxu0 0.0
        %1464 = vmatpush1.msra.mxu0 0.0
        %1465 = vmatprep.subr.mxu0 0.0
        %1466 = vmatpush1.msra.mxu0 0.0
        %1467 = vmatprep.subr.mxu0 0.0
        %1468 = vmatpush1.msra.mxu0 0.0
        %1469 = vmatprep.subr.mxu0 0.0
        %1470 = vmatpush1.msra.mxu0 0.0
        %1471 = vmatprep.subr.mxu0 0.0
        %1472 = vmatpush1.msra.mxu0 0.0
        %1473 = vmatprep.mubr.f32.mxu0 0.0
        %1474 = vmatmul.mubr.f32.gmra.mrb[0].mxu0 %v1407
        %v1475 = vpop.f32.mrb[0].mxu0
        %v1476 = vadd.f32 0.0, %v1475
        %v1477 = vpop.f32.mrb[0].mxu0
        %1478 = vdwg.mxu0
        %1480 = vrot.lane.b32.xlu0 %v1146, 8
        %v1481 = vpop.permute.xlu0 %1480
        %1484 = vrot.lane.b32.xlu0 %v1311, 16
        %v1485 = vpop.permute.xlu0 %1484
        %1488 = vrot.lane.b32.xlu0 %v1476, 24
        %v1489 = vpop.permute.xlu0 %1488
        %v1491 = vsel %vm821, %v981, %v1481
        %vm1492 = vcmask 130048
        %v1493 = vsel %vm1492, %v1491, %v1485
        %vm1494 = vcmask 195584
        %v1495 = vsel %vm1494, %v1493, %v1489
        %v1496 = vmul.f32 %v814, 0.35355338
        %1498 = vrot.lane.b32.xlu0 %v814, 120
        %v1499 = vpop.permute.xlu0 %1498
        %v1501 = vsel %vm821, %v1496, 0
        %v1503 = vsel %vm821, %v1499, 0
        %1505 = vmatprep.subr.mxu0 0.0
        %1506 = vmatpush1.xpose.msra.mxu0 %v1503
        %1507 = vmatprep.subr.mxu0 0.0
        %1508 = vmatpush1.xpose.msra.mxu0 0.0
        %1509 = vmatprep.subr.mxu0 0.0
        %1510 = vmatpush1.xpose.msra.mxu0 0.0
        %1511 = vmatprep.subr.mxu0 0.0
        %1512 = vmatpush1.xpose.msra.mxu0 0.0
        %1513 = vmatprep.subr.mxu0 0.0
        %1514 = vmatpush1.xpose.msra.mxu0 0.0
        %1515 = vmatprep.subr.mxu0 0.0
        %1516 = vmatpush1.xpose.msra.mxu0 0.0
        %1517 = vmatprep.subr.mxu0 0.0
        %1518 = vmatpush1.xpose.msra.mxu0 0.0
        %1519 = vmatprep.subr.mxu0 0.0
        %1520 = vmatpush1.xpose.msra.mxu0 0.0
        %1521 = vmatprep.subr.mxu0 0.0
        %1522 = vmatpush1.xpose.msra.mxu0 0.0
        %1523 = vmatprep.subr.mxu0 0.0
        %1524 = vmatpush1.xpose.msra.mxu0 0.0
        %1525 = vmatprep.subr.mxu0 0.0
        %1526 = vmatpush1.xpose.msra.mxu0 0.0
        %1527 = vmatprep.subr.mxu0 0.0
        %1528 = vmatpush1.xpose.msra.mxu0 0.0
        %1529 = vmatprep.subr.mxu0 0.0
        %1530 = vmatpush1.xpose.msra.mxu0 0.0
        %1531 = vmatprep.subr.mxu0 0.0
        %1532 = vmatpush1.xpose.msra.mxu0 0.0
        %1533 = vmatprep.subr.mxu0 0.0
        %1534 = vmatpush1.xpose.msra.mxu0 0.0
        %1535 = vmatprep.subr.mxu0 0.0
        %1536 = vmatpush1.xpose.msra.mxu0 0.0
        %1537 = vmatprep.subr.mxu0 0.0
        %1538 = vmatpush1.xpose.msra.mxu0 0.0
        %1539 = vmatprep.subr.mxu0 0.0
        %1540 = vmatpush1.xpose.msra.mxu0 0.0
        %1541 = vmatprep.subr.mxu0 0.0
        %1542 = vmatpush1.xpose.msra.mxu0 0.0
        %1543 = vmatprep.subr.mxu0 0.0
        %1544 = vmatpush1.xpose.msra.mxu0 0.0
        %1545 = vmatprep.subr.mxu0 0.0
        %1546 = vmatpush1.xpose.msra.mxu0 0.0
        %1547 = vmatprep.subr.mxu0 0.0
        %1548 = vmatpush1.xpose.msra.mxu0 0.0
        %1549 = vmatprep.subr.mxu0 0.0
        %1550 = vmatpush1.xpose.msra.mxu0 0.0
        %1551 = vmatprep.subr.mxu0 0.0
        %1552 = vmatpush1.xpose.msra.mxu0 0.0
        %1553 = vmatprep.subr.mxu0 0.0
        %1554 = vmatpush1.xpose.msra.mxu0 0.0
        %1555 = vmatprep.subr.mxu0 0.0
        %1556 = vmatpush1.xpose.msra.mxu0 0.0
        %1557 = vmatprep.subr.mxu0 0.0
        %1558 = vmatpush1.xpose.msra.mxu0 0.0
        %1559 = vmatprep.subr.mxu0 0.0
        %1560 = vmatpush1.xpose.msra.mxu0 0.0
        %1561 = vmatprep.subr.mxu0 0.0
        %1562 = vmatpush1.xpose.msra.mxu0 0.0
        %1563 = vmatprep.subr.mxu0 0.0
        %1564 = vmatpush1.xpose.msra.mxu0 0.0
        %1565 = vmatprep.subr.mxu0 0.0
        %1566 = vmatpush1.xpose.msra.mxu0 0.0
        %1567 = vmatprep.subr.mxu0 0.0
        %1568 = vmatpush1.xpose.msra.mxu0 0.0
        %1569 = vmatprep.mubr.f32.mxu0 0.0
        %1570 = vmatmul.mubr.f32.gmra.mrb[0].mxu0 %v1501
        %v1571 = vpop.f32.mrb[0].mxu0
        %v1572 = vadd.f32 0.0, %v1571
        %v1573 = vpop.f32.mrb[0].mxu0
        %1574 = vdwg.mxu0
        %v1575 = vsel %vm821, %v1572, -inf
        %1576 = vmax.xlane.f32.xlu0 %v1575
        %v1577 = vpop.xlane.xlu0 %1576
        %v1578 = vsub.f32 %v1572, %v1577
        %v1579 = vmul.f32 %v1578, 1.442695
        %v1580 = vpow.pop %v1579
        %v1581 = vsel %vm821, %v1580, 0.0
        %1582 = vadd.xlane.f32.xlu0 %v1581
        %v1583 = vpop.xlane.xlu0 %1582
        %v1584 = vrcp.pop %v1583
        %v1585 = vmul.f32 %v1580, %v1584
        %1586 = vrot.lane.b32.xlu0 %v814, 112
        %v1587 = vpop.permute.xlu0 %1586
        %v1590 = vsel %vm821, %v1585, 0
        %1592 = vmatprep.subr.mxu0 0.0
        %1593 = vmatpush1.msra.mxu0 %v1587
        %1594 = vmatprep.subr.mxu0 0.0
        %1595 = vmatpush1.msra.mxu0 0.0
        %1596 = vmatprep.subr.mxu0 0.0
        %1597 = vmatpush1.msra.mxu0 0.0
        %1598 = vmatprep.subr.mxu0 0.0
        %1599 = vmatpush1.msra.mxu0 0.0
        %1600 = vmatprep.subr.mxu0 0.0
        %1601 = vmatpush1.msra.mxu0 0.0
        %1602 = vmatprep.subr.mxu0 0.0
        %1603 = vmatpush1.msra.mxu0 0.0
        %1604 = vmatprep.subr.mxu0 0.0
        %1605 = vmatpush1.msra.mxu0 0.0
        %1606 = vmatprep.subr.mxu0 0.0
        %1607 = vmatpush1.msra.mxu0 0.0
        %1608 = vmatprep.subr.mxu0 0.0
        %1609 = vmatpush1.msra.mxu0 0.0
        %1610 = vmatprep.subr.mxu0 0.0
        %1611 = vmatpush1.msra.mxu0 0.0
        %1612 = vmatprep.subr.mxu0 0.0
        %1613 = vmatpush1.msra.mxu0 0.0
        %1614 = vmatprep.subr.mxu0 0.0
        %1615 = vmatpush1.msra.mxu0 0.0
        %1616 = vmatprep.subr.mxu0 0.0
        %1617 = vmatpush1.msra.mxu0 0.0
        %1618 = vmatprep.subr.mxu0 0.0
        %1619 = vmatpush1.msra.mxu0 0.0
        %1620 = vmatprep.subr.mxu0 0.0
        %1621 = vmatpush1.msra.mxu0 0.0
        %1622 = vmatprep.subr.mxu0 0.0
        %1623 = vmatpush1.msra.mxu0 0.0
        %1624 = vmatprep.subr.mxu0 0.0
        %1625 = vmatpush1.msra.mxu0 0.0
        %1626 = vmatprep.subr.mxu0 0.0
        %1627 = vmatpush1.msra.mxu0 0.0
        %1628 = vmatprep.subr.mxu0 0.0
        %1629 = vmatpush1.msra.mxu0 0.0
        %1630 = vmatprep.subr.mxu0 0.0
        %1631 = vmatpush1.msra.mxu0 0.0
        %1632 = vmatprep.subr.mxu0 0.0
        %1633 = vmatpush1.msra.mxu0 0.0
        %1634 = vmatprep.subr.mxu0 0.0
        %1635 = vmatpush1.msra.mxu0 0.0
        %1636 = vmatprep.subr.mxu0 0.0
        %1637 = vmatpush1.msra.mxu0 0.0
        %1638 = vmatprep.subr.mxu0 0.0
        %1639 = vmatpush1.msra.mxu0 0.0
        %1640 = vmatprep.subr.mxu0 0.0
        %1641 = vmatpush1.msra.mxu0 0.0
        %1642 = vmatprep.subr.mxu0 0.0
        %1643 = vmatpush1.msra.mxu0 0.0
        %1644 = vmatprep.subr.mxu0 0.0
        %1645 = vmatpush1.msra.mxu0 0.0
        %1646 = vmatprep.subr.mxu0 0.0
        %1647 = vmatpush1.msra.mxu0 0.0
        %1648 = vmatprep.subr.mxu0 0.0
        %1649 = vmatpush1.msra.mxu0 0.0
        %1650 = vmatprep.subr.mxu0 0.0
        %1651 = vmatpush1.msra.mxu0 0.0
        %1652 = vmatprep.subr.mxu0 0.0
        %1653 = vmatpush1.msra.mxu0 0.0
        %1654 = vmatprep.subr.mxu0 0.0
        %1655 = vmatpush1.msra.mxu0 0.0
        %1656 = vmatprep.mubr.f32.mxu0 0.0
        %1657 = vmatmul.mubr.f32.gmra.mrb[0].mxu0 %v1590
        %v1658 = vpop.f32.mrb[0].mxu0
        %v1659 = vadd.f32 0.0, %v1658
        %v1660 = vpop.f32.mrb[0].mxu0
        %1661 = vdwg.mxu0
        %1662 = vrot.lane.b32.xlu0 %v1496, 104
        %v1663 = vpop.permute.xlu0 %1662
        %1664 = vrot.lane.b32.xlu0 %v814, 96
        %v1665 = vpop.permute.xlu0 %1664
        %v1666 = vsel %vm821, %v1663, 0
        %v1668 = vsel %vm821, %v1665, 0
        %1670 = vmatprep.subr.mxu0 0.0
        %1671 = vmatpush1.xpose.msra.mxu0 %v1668
        %1672 = vmatprep.subr.mxu0 0.0
        %1673 = vmatpush1.xpose.msra.mxu0 0.0
        %1674 = vmatprep.subr.mxu0 0.0
        %1675 = vmatpush1.xpose.msra.mxu0 0.0
        %1676 = vmatprep.subr.mxu0 0.0
        %1677 = vmatpush1.xpose.msra.mxu0 0.0
        %1678 = vmatprep.subr.mxu0 0.0
        %1679 = vmatpush1.xpose.msra.mxu0 0.0
        %1680 = vmatprep.subr.mxu0 0.0
        %1681 = vmatpush1.xpose.msra.mxu0 0.0
        %1682 = vmatprep.subr.mxu0 0.0
        %1683 = vmatpush1.xpose.msra.mxu0 0.0
        %1684 = vmatprep.subr.mxu0 0.0
        %1685 = vmatpush1.xpose.msra.mxu0 0.0
        %1686 = vmatprep.subr.mxu0 0.0
        %1687 = vmatpush1.xpose.msra.mxu0 0.0
        %1688 = vmatprep.subr.mxu0 0.0
        %1689 = vmatpush1.xpose.msra.mxu0 0.0
        %1690 = vmatprep.subr.mxu0 0.0
        %1691 = vmatpush1.xpose.msra.mxu0 0.0
        %1692 = vmatprep.subr.mxu0 0.0
        %1693 = vmatpush1.xpose.msra.mxu0 0.0
        %1694 = vmatprep.subr.mxu0 0.0
        %1695 = vmatpush1.xpose.msra.mxu0 0.0
        %1696 = vmatprep.subr.mxu0 0.0
        %1697 = vmatpush1.xpose.msra.mxu0 0.0
        %1698 = vmatprep.subr.mxu0 0.0
        %1699 = vmatpush1.xpose.msra.mxu0 0.0
        %1700 = vmatprep.subr.mxu0 0.0
        %1701 = vmatpush1.xpose.msra.mxu0 0.0
        %1702 = vmatprep.subr.mxu0 0.0
        %1703 = vmatpush1.xpose.msra.mxu0 0.0
        %1704 = vmatprep.subr.mxu0 0.0
        %1705 = vmatpush1.xpose.msra.mxu0 0.0
        %1706 = vmatprep.subr.mxu0 0.0
        %1707 = vmatpush1.xpose.msra.mxu0 0.0
        %1708 = vmatprep.subr.mxu0 0.0
        %1709 = vmatpush1.xpose.msra.mxu0 0.0
        %1710 = vmatprep.subr.mxu0 0.0
        %1711 = vmatpush1.xpose.msra.mxu0 0.0
        %1712 = vmatprep.subr.mxu0 0.0
        %1713 = vmatpush1.xpose.msra.mxu0 0.0
        %1714 = vmatprep.subr.mxu0 0.0
        %1715 = vmatpush1.xpose.msra.mxu0 0.0
        %1716 = vmatprep.subr.mxu0 0.0
        %1717 = vmatpush1.xpose.msra.mxu0 0.0
        %1718 = vmatprep.subr.mxu0 0.0
        %1719 = vmatpush1.xpose.msra.mxu0 0.0
        %1720 = vmatprep.subr.mxu0 0.0
        %1721 = vmatpush1.xpose.msra.mxu0 0.0
        %1722 = vmatprep.subr.mxu0 0.0
        %1723 = vmatpush1.xpose.msra.mxu0 0.0
        %1724 = vmatprep.subr.mxu0 0.0
        %1725 = vmatpush1.xpose.msra.mxu0 0.0
        %1726 = vmatprep.subr.mxu0 0.0
        %1727 = vmatpush1.xpose.msra.mxu0 0.0
        %1728 = vmatprep.subr.mxu0 0.0
        %1729 = vmatpush1.xpose.msra.mxu0 0.0
        %1730 = vmatprep.subr.mxu0 0.0
        %1731 = vmatpush1.xpose.msra.mxu0 0.0
        %1732 = vmatprep.subr.mxu0 0.0
        %1733 = vmatpush1.xpose.msra.mxu0 0.0
        %1734 = vmatprep.mubr.f32.mxu0 0.0
        %1735 = vmatmul.mubr.f32.gmra.mrb[0].mxu0 %v1666
        %v1736 = vpop.f32.mrb[0].mxu0
        %v1737 = vadd.f32 0.0, %v1736
        %v1738 = vpop.f32.mrb[0].mxu0
        %1739 = vdwg.mxu0
        %v1740 = vsel %vm821, %v1737, -inf
        %1741 = vmax.xlane.f32.xlu0 %v1740
        %v1742 = vpop.xlane.xlu0 %1741
        %v1743 = vsub.f32 %v1737, %v1742
        %v1744 = vmul.f32 %v1743, 1.442695
        %v1745 = vpow.pop %v1744
        %v1746 = vsel %vm821, %v1745, 0.0
        %1747 = vadd.xlane.f32.xlu0 %v1746
        %v1748 = vpop.xlane.xlu0 %1747
        %v1749 = vrcp.pop %v1748
        %v1750 = vmul.f32 %v1745, %v1749
        %1751 = vrot.lane.b32.xlu0 %v814, 88
        %v1752 = vpop.permute.xlu0 %1751
        %v1755 = vsel %vm821, %v1750, 0
        %1757 = vmatprep.subr.mxu0 0.0
        %1758 = vmatpush1.msra.mxu0 %v1752
        %1759 = vmatprep.subr.mxu0 0.0
        %1760 = vmatpush1.msra.mxu0 0.0
        %1761 = vmatprep.subr.mxu0 0.0
        %1762 = vmatpush1.msra.mxu0 0.0
        %1763 = vmatprep.subr.mxu0 0.0
        %1764 = vmatpush1.msra.mxu0 0.0
        %1765 = vmatprep.subr.mxu0 0.0
        %1766 = vmatpush1.msra.mxu0 0.0
        %1767 = vmatprep.subr.mxu0 0.0
        %1768 = vmatpush1.msra.mxu0 0.0
        %1769 = vmatprep.subr.mxu0 0.0
        %1770 = vmatpush1.msra.mxu0 0.0
        %1771 = vmatprep.subr.mxu0 0.0
        %1772 = vmatpush1.msra.mxu0 0.0
        %1773 = vmatprep.subr.mxu0 0.0
        %1774 = vmatpush1.msra.mxu0 0.0
        %1775 = vmatprep.subr.mxu0 0.0
        %1776 = vmatpush1.msra.mxu0 0.0
        %1777 = vmatprep.subr.mxu0 0.0
        %1778 = vmatpush1.msra.mxu0 0.0
        %1779 = vmatprep.subr.mxu0 0.0
        %1780 = vmatpush1.msra.mxu0 0.0
        %1781 = vmatprep.subr.mxu0 0.0
        %1782 = vmatpush1.msra.mxu0 0.0
        %1783 = vmatprep.subr.mxu0 0.0
        %1784 = vmatpush1.msra.mxu0 0.0
        %1785 = vmatprep.subr.mxu0 0.0
        %1786 = vmatpush1.msra.mxu0 0.0
        %1787 = vmatprep.subr.mxu0 0.0
        %1788 = vmatpush1.msra.mxu0 0.0
        %1789 = vmatprep.subr.mxu0 0.0
        %1790 = vmatpush1.msra.mxu0 0.0
        %1791 = vmatprep.subr.mxu0 0.0
        %1792 = vmatpush1.msra.mxu0 0.0
        %1793 = vmatprep.subr.mxu0 0.0
        %1794 = vmatpush1.msra.mxu0 0.0
        %1795 = vmatprep.subr.mxu0 0.0
        %1796 = vmatpush1.msra.mxu0 0.0
        %1797 = vmatprep.subr.mxu0 0.0
        %1798 = vmatpush1.msra.mxu0 0.0
        %1799 = vmatprep.subr.mxu0 0.0
        %1800 = vmatpush1.msra.mxu0 0.0
        %1801 = vmatprep.subr.mxu0 0.0
        %1802 = vmatpush1.msra.mxu0 0.0
        %1803 = vmatprep.subr.mxu0 0.0
        %1804 = vmatpush1.msra.mxu0 0.0
        %1805 = vmatprep.subr.mxu0 0.0
        %1806 = vmatpush1.msra.mxu0 0.0
        %1807 = vmatprep.subr.mxu0 0.0
        %1808 = vmatpush1.msra.mxu0 0.0
        %1809 = vmatprep.subr.mxu0 0.0
        %1810 = vmatpush1.msra.mxu0 0.0
        %1811 = vmatprep.subr.mxu0 0.0
        %1812 = vmatpush1.msra.mxu0 0.0
        %1813 = vmatprep.subr.mxu0 0.0
        %1814 = vmatpush1.msra.mxu0 0.0
        %1815 = vmatprep.subr.mxu0 0.0
        %1816 = vmatpush1.msra.mxu0 0.0
        %1817 = vmatprep.subr.mxu0 0.0
        %1818 = vmatpush1.msra.mxu0 0.0
        %1819 = vmatprep.subr.mxu0 0.0
        %1820 = vmatpush1.msra.mxu0 0.0
        %1821 = vmatprep.mubr.f32.mxu0 0.0
        %1822 = vmatmul.mubr.f32.gmra.mrb[0].mxu0 %v1755
        %v1823 = vpop.f32.mrb[0].mxu0
        %v1824 = vadd.f32 0.0, %v1823
        %v1825 = vpop.f32.mrb[0].mxu0
        %1826 = vdwg.mxu0
        %1827 = vrot.lane.b32.xlu0 %v1496, 80
        %v1828 = vpop.permute.xlu0 %1827
        %1829 = vrot.lane.b32.xlu0 %v814, 72
        %v1830 = vpop.permute.xlu0 %1829
        %v1831 = vsel %vm821, %v1828, 0
        %v1833 = vsel %vm821, %v1830, 0
        %1835 = vmatprep.subr.mxu0 0.0
        %1836 = vmatpush1.xpose.msra.mxu0 %v1833
        %1837 = vmatprep.subr.mxu0 0.0
        %1838 = vmatpush1.xpose.msra.mxu0 0.0
        %1839 = vmatprep.subr.mxu0 0.0
        %1840 = vmatpush1.xpose.msra.mxu0 0.0
        %1841 = vmatprep.subr.mxu0 0.0
        %1842 = vmatpush1.xpose.msra.mxu0 0.0
        %1843 = vmatprep.subr.mxu0 0.0
        %1844 = vmatpush1.xpose.msra.mxu0 0.0
        %1845 = vmatprep.subr.mxu0 0.0
        %1846 = vmatpush1.xpose.msra.mxu0 0.0
        %1847 = vmatprep.subr.mxu0 0.0
        %1848 = vmatpush1.xpose.msra.mxu0 0.0
        %1849 = vmatprep.subr.mxu0 0.0
        %1850 = vmatpush1.xpose.msra.mxu0 0.0
        %1851 = vmatprep.subr.mxu0 0.0
        %1852 = vmatpush1.xpose.msra.mxu0 0.0
        %1853 = vmatprep.subr.mxu0 0.0
        %1854 = vmatpush1.xpose.msra.mxu0 0.0
        %1855 = vmatprep.subr.mxu0 0.0
        %1856 = vmatpush1.xpose.msra.mxu0 0.0
        %1857 = vmatprep.subr.mxu0 0.0
        %1858 = vmatpush1.xpose.msra.mxu0 0.0
        %1859 = vmatprep.subr.mxu0 0.0
        %1860 = vmatpush1.xpose.msra.mxu0 0.0
        %1861 = vmatprep.subr.mxu0 0.0
        %1862 = vmatpush1.xpose.msra.mxu0 0.0
        %1863 = vmatprep.subr.mxu0 0.0
        %1864 = vmatpush1.xpose.msra.mxu0 0.0
        %1865 = vmatprep.subr.mxu0 0.0
        %1866 = vmatpush1.xpose.msra.mxu0 0.0
        %1867 = vmatprep.subr.mxu0 0.0
        %1868 = vmatpush1.xpose.msra.mxu0 0.0
        %1869 = vmatprep.subr.mxu0 0.0
        %1870 = vmatpush1.xpose.msra.mxu0 0.0
        %1871 = vmatprep.subr.mxu0 0.0
        %1872 = vmatpush1.xpose.msra.mxu0 0.0
        %1873 = vmatprep.subr.mxu0 0.0
        %1874 = vmatpush1.xpose.msra.mxu0 0.0
        %1875 = vmatprep.subr.mxu0 0.0
        %1876 = vmatpush1.xpose.msra.mxu0 0.0
        %1877 = vmatprep.subr.mxu0 0.0
        %1878 = vmatpush1.xpose.msra.mxu0 0.0
        %1879 = vmatprep.subr.mxu0 0.0
        %1880 = vmatpush1.xpose.msra.mxu0 0.0
        %1881 = vmatprep.subr.mxu0 0.0
        %1882 = vmatpush1.xpose.msra.mxu0 0.0
        %1883 = vmatprep.subr.mxu0 0.0
        %1884 = vmatpush1.xpose.msra.mxu0 0.0
        %1885 = vmatprep.subr.mxu0 0.0
        %1886 = vmatpush1.xpose.msra.mxu0 0.0
        %1887 = vmatprep.subr.mxu0 0.0
        %1888 = vmatpush1.xpose.msra.mxu0 0.0
        %1889 = vmatprep.subr.mxu0 0.0
        %1890 = vmatpush1.xpose.msra.mxu0 0.0
        %1891 = vmatprep.subr.mxu0 0.0
        %1892 = vmatpush1.xpose.msra.mxu0 0.0
        %1893 = vmatprep.subr.mxu0 0.0
        %1894 = vmatpush1.xpose.msra.mxu0 0.0
        %1895 = vmatprep.subr.mxu0 0.0
        %1896 = vmatpush1.xpose.msra.mxu0 0.0
        %1897 = vmatprep.subr.mxu0 0.0
        %1898 = vmatpush1.xpose.msra.mxu0 0.0
        %1899 = vmatprep.mubr.f32.mxu0 0.0
        %1900 = vmatmul.mubr.f32.gmra.mrb[0].mxu0 %v1831
        %v1901 = vpop.f32.mrb[0].mxu0
        %v1902 = vadd.f32 0.0, %v1901
        %v1903 = vpop.f32.mrb[0].mxu0
        %1904 = vdwg.mxu0
        %v1905 = vsel %vm821, %v1902, -inf
        %1906 = vmax.xlane.f32.xlu0 %v1905
        %v1907 = vpop.xlane.xlu0 %1906
        %v1908 = vsub.f32 %v1902, %v1907
        %v1909 = vmul.f32 %v1908, 1.442695
        %v1910 = vpow.pop %v1909
        %v1911 = vsel %vm821, %v1910, 0.0
        %1912 = vadd.xlane.f32.xlu0 %v1911
        %v1913 = vpop.xlane.xlu0 %1912
        %v1914 = vrcp.pop %v1913
        %v1915 = vmul.f32 %v1910, %v1914
        %1916 = vrot.lane.b32.xlu0 %v814, 64
        %v1917 = vpop.permute.xlu0 %1916
        %v1920 = vsel %vm821, %v1915, 0
        %1922 = vmatprep.subr.mxu0 0.0
        %1923 = vmatpush1.msra.mxu0 %v1917
        %1924 = vmatprep.subr.mxu0 0.0
        %1925 = vmatpush1.msra.mxu0 0.0
        %1926 = vmatprep.subr.mxu0 0.0
        %1927 = vmatpush1.msra.mxu0 0.0
        %1928 = vmatprep.subr.mxu0 0.0
        %1929 = vmatpush1.msra.mxu0 0.0
        %1930 = vmatprep.subr.mxu0 0.0
        %1931 = vmatpush1.msra.mxu0 0.0
        %1932 = vmatprep.subr.mxu0 0.0
        %1933 = vmatpush1.msra.mxu0 0.0
        %1934 = vmatprep.subr.mxu0 0.0
        %1935 = vmatpush1.msra.mxu0 0.0
        %1936 = vmatprep.subr.mxu0 0.0
        %1937 = vmatpush1.msra.mxu0 0.0
        %1938 = vmatprep.subr.mxu0 0.0
        %1939 = vmatpush1.msra.mxu0 0.0
        %1940 = vmatprep.subr.mxu0 0.0
        %1941 = vmatpush1.msra.mxu0 0.0
        %1942 = vmatprep.subr.mxu0 0.0
        %1943 = vmatpush1.msra.mxu0 0.0
        %1944 = vmatprep.subr.mxu0 0.0
        %1945 = vmatpush1.msra.mxu0 0.0
        %1946 = vmatprep.subr.mxu0 0.0
        %1947 = vmatpush1.msra.mxu0 0.0
        %1948 = vmatprep.subr.mxu0 0.0
        %1949 = vmatpush1.msra.mxu0 0.0
        %1950 = vmatprep.subr.mxu0 0.0
        %1951 = vmatpush1.msra.mxu0 0.0
        %1952 = vmatprep.subr.mxu0 0.0
        %1953 = vmatpush1.msra.mxu0 0.0
        %1954 = vmatprep.subr.mxu0 0.0
        %1955 = vmatpush1.msra.mxu0 0.0
        %1956 = vmatprep.subr.mxu0 0.0
        %1957 = vmatpush1.msra.mxu0 0.0
        %1958 = vmatprep.subr.mxu0 0.0
        %1959 = vmatpush1.msra.mxu0 0.0
        %1960 = vmatprep.subr.mxu0 0.0
        %1961 = vmatpush1.msra.mxu0 0.0
        %1962 = vmatprep.subr.mxu0 0.0
        %1963 = vmatpush1.msra.mxu0 0.0
        %1964 = vmatprep.subr.mxu0 0.0
        %1965 = vmatpush1.msra.mxu0 0.0
        %1966 = vmatprep.subr.mxu0 0.0
        %1967 = vmatpush1.msra.mxu0 0.0
        %1968 = vmatprep.subr.mxu0 0.0
        %1969 = vmatpush1.msra.mxu0 0.0
        %1970 = vmatprep.subr.mxu0 0.0
        %1971 = vmatpush1.msra.mxu0 0.0
        %1972 = vmatprep.subr.mxu0 0.0
        %1973 = vmatpush1.msra.mxu0 0.0
        %1974 = vmatprep.subr.mxu0 0.0
        %1975 = vmatpush1.msra.mxu0 0.0
        %1976 = vmatprep.subr.mxu0 0.0
        %1977 = vmatpush1.msra.mxu0 0.0
        %1978 = vmatprep.subr.mxu0 0.0
        %1979 = vmatpush1.msra.mxu0 0.0
        %1980 = vmatprep.subr.mxu0 0.0
        %1981 = vmatpush1.msra.mxu0 0.0
        %1982 = vmatprep.subr.mxu0 0.0
        %1983 = vmatpush1.msra.mxu0 0.0
        %1984 = vmatprep.subr.mxu0 0.0
        %1985 = vmatpush1.msra.mxu0 0.0
        %1986 = vmatprep.mubr.f32.mxu0 0.0
        %1987 = vmatmul.mubr.f32.gmra.mrb[0].mxu0 %v1920
        %v1988 = vpop.f32.mrb[0].mxu0
        %v1989 = vadd.f32 0.0, %v1988
        %v1990 = vpop.f32.mrb[0].mxu0
        %1991 = vdwg.mxu0
        %1992 = vrot.lane.b32.xlu0 %v1496, 56
        %v1993 = vpop.permute.xlu0 %1992
        %1994 = vrot.lane.b32.xlu0 %v814, 48
        %v1995 = vpop.permute.xlu0 %1994
        %v1996 = vsel %vm821, %v1993, 0
        %v1998 = vsel %vm821, %v1995, 0
        %2000 = vmatprep.subr.mxu0 0.0
        %2001 = vmatpush1.xpose.msra.mxu0 %v1998
        %2002 = vmatprep.subr.mxu0 0.0
        %2003 = vmatpush1.xpose.msra.mxu0 0.0
        %2004 = vmatprep.subr.mxu0 0.0
        %2005 = vmatpush1.xpose.msra.mxu0 0.0
        %2006 = vmatprep.subr.mxu0 0.0
        %2007 = vmatpush1.xpose.msra.mxu0 0.0
        %2008 = vmatprep.subr.mxu0 0.0
        %2009 = vmatpush1.xpose.msra.mxu0 0.0
        %2010 = vmatprep.subr.mxu0 0.0
        %2011 = vmatpush1.xpose.msra.mxu0 0.0
        %2012 = vmatprep.subr.mxu0 0.0
        %2013 = vmatpush1.xpose.msra.mxu0 0.0
        %2014 = vmatprep.subr.mxu0 0.0
        %2015 = vmatpush1.xpose.msra.mxu0 0.0
        %2016 = vmatprep.subr.mxu0 0.0
        %2017 = vmatpush1.xpose.msra.mxu0 0.0
        %2018 = vmatprep.subr.mxu0 0.0
        %2019 = vmatpush1.xpose.msra.mxu0 0.0
        %2020 = vmatprep.subr.mxu0 0.0
        %2021 = vmatpush1.xpose.msra.mxu0 0.0
        %2022 = vmatprep.subr.mxu0 0.0
        %2023 = vmatpush1.xpose.msra.mxu0 0.0
        %2024 = vmatprep.subr.mxu0 0.0
        %2025 = vmatpush1.xpose.msra.mxu0 0.0
        %2026 = vmatprep.subr.mxu0 0.0
        %2027 = vmatpush1.xpose.msra.mxu0 0.0
        %2028 = vmatprep.subr.mxu0 0.0
        %2029 = vmatpush1.xpose.msra.mxu0 0.0
        %2030 = vmatprep.subr.mxu0 0.0
        %2031 = vmatpush1.xpose.msra.mxu0 0.0
        %2032 = vmatprep.subr.mxu0 0.0
        %2033 = vmatpush1.xpose.msra.mxu0 0.0
        %2034 = vmatprep.subr.mxu0 0.0
        %2035 = vmatpush1.xpose.msra.mxu0 0.0
        %2036 = vmatprep.subr.mxu0 0.0
        %2037 = vmatpush1.xpose.msra.mxu0 0.0
        %2038 = vmatprep.subr.mxu0 0.0
        %2039 = vmatpush1.xpose.msra.mxu0 0.0
        %2040 = vmatprep.subr.mxu0 0.0
        %2041 = vmatpush1.xpose.msra.mxu0 0.0
        %2042 = vmatprep.subr.mxu0 0.0
        %2043 = vmatpush1.xpose.msra.mxu0 0.0
        %2044 = vmatprep.subr.mxu0 0.0
        %2045 = vmatpush1.xpose.msra.mxu0 0.0
        %2046 = vmatprep.subr.mxu0 0.0
        %2047 = vmatpush1.xpose.msra.mxu0 0.0
        %2048 = vmatprep.subr.mxu0 0.0
        %2049 = vmatpush1.xpose.msra.mxu0 0.0
        %2050 = vmatprep.subr.mxu0 0.0
        %2051 = vmatpush1.xpose.msra.mxu0 0.0
        %2052 = vmatprep.subr.mxu0 0.0
        %2053 = vmatpush1.xpose.msra.mxu0 0.0
        %2054 = vmatprep.subr.mxu0 0.0
        %2055 = vmatpush1.xpose.msra.mxu0 0.0
        %2056 = vmatprep.subr.mxu0 0.0
        %2057 = vmatpush1.xpose.msra.mxu0 0.0
        %2058 = vmatprep.subr.mxu0 0.0
        %2059 = vmatpush1.xpose.msra.mxu0 0.0
        %2060 = vmatprep.subr.mxu0 0.0
        %2061 = vmatpush1.xpose.msra.mxu0 0.0
        %2062 = vmatprep.subr.mxu0 0.0
        %2063 = vmatpush1.xpose.msra.mxu0 0.0
        %2064 = vmatprep.mubr.f32.mxu0 0.0
        %2065 = vmatmul.mubr.f32.gmra.mrb[0].mxu0 %v1996
        %v2066 = vpop.f32.mrb[0].mxu0
        %v2067 = vadd.f32 0.0, %v2066
        %v2068 = vpop.f32.mrb[0].mxu0
        %2069 = vdwg.mxu0
        %v2070 = vsel %vm821, %v2067, -inf
        %2071 = vmax.xlane.f32.xlu0 %v2070
        %v2072 = vpop.xlane.xlu0 %2071
        %v2073 = vsub.f32 %v2067, %v2072
        %v2074 = vmul.f32 %v2073, 1.442695
        %v2075 = vpow.pop %v2074
        %v2076 = vsel %vm821, %v2075, 0.0
        %2077 = vadd.xlane.f32.xlu0 %v2076
        %v2078 = vpop.xlane.xlu0 %2077
        %v2079 = vrcp.pop %v2078
        %v2080 = vmul.f32 %v2075, %v2079
        %2081 = vrot.lane.b32.xlu0 %v814, 40
        %v2082 = vpop.permute.xlu0 %2081
        %v2085 = vsel %vm821, %v2080, 0
        %2087 = vmatprep.subr.mxu0 0.0
        %2088 = vmatpush1.msra.mxu0 %v2082
        %2089 = vmatprep.subr.mxu0 0.0
        %2090 = vmatpush1.msra.mxu0 0.0
        %2091 = vmatprep.subr.mxu0 0.0
        %2092 = vmatpush1.msra.mxu0 0.0
        %2093 = vmatprep.subr.mxu0 0.0
        %2094 = vmatpush1.msra.mxu0 0.0
        %2095 = vmatprep.subr.mxu0 0.0
        %2096 = vmatpush1.msra.mxu0 0.0
        %2097 = vmatprep.subr.mxu0 0.0
        %2098 = vmatpush1.msra.mxu0 0.0
        %2099 = vmatprep.subr.mxu0 0.0
        %2100 = vmatpush1.msra.mxu0 0.0
        %2101 = vmatprep.subr.mxu0 0.0
        %2102 = vmatpush1.msra.mxu0 0.0
        %2103 = vmatprep.subr.mxu0 0.0
        %2104 = vmatpush1.msra.mxu0 0.0
        %2105 = vmatprep.subr.mxu0 0.0
        %2106 = vmatpush1.msra.mxu0 0.0
        %2107 = vmatprep.subr.mxu0 0.0
        %2108 = vmatpush1.msra.mxu0 0.0
        %2109 = vmatprep.subr.mxu0 0.0
        %2110 = vmatpush1.msra.mxu0 0.0
        %2111 = vmatprep.subr.mxu0 0.0
        %2112 = vmatpush1.msra.mxu0 0.0
        %2113 = vmatprep.subr.mxu0 0.0
        %2114 = vmatpush1.msra.mxu0 0.0
        %2115 = vmatprep.subr.mxu0 0.0
        %2116 = vmatpush1.msra.mxu0 0.0
        %2117 = vmatprep.subr.mxu0 0.0
        %2118 = vmatpush1.msra.mxu0 0.0
        %2119 = vmatprep.subr.mxu0 0.0
        %2120 = vmatpush1.msra.mxu0 0.0
        %2121 = vmatprep.subr.mxu0 0.0
        %2122 = vmatpush1.msra.mxu0 0.0
        %2123 = vmatprep.subr.mxu0 0.0
        %2124 = vmatpush1.msra.mxu0 0.0
        %2125 = vmatprep.subr.mxu0 0.0
        %2126 = vmatpush1.msra.mxu0 0.0
        %2127 = vmatprep.subr.mxu0 0.0
        %2128 = vmatpush1.msra.mxu0 0.0
        %2129 = vmatprep.subr.mxu0 0.0
        %2130 = vmatpush1.msra.mxu0 0.0
        %2131 = vmatprep.subr.mxu0 0.0
        %2132 = vmatpush1.msra.mxu0 0.0
        %2133 = vmatprep.subr.mxu0 0.0
        %2134 = vmatpush1.msra.mxu0 0.0
        %2135 = vmatprep.subr.mxu0 0.0
        %2136 = vmatpush1.msra.mxu0 0.0
        %2137 = vmatprep.subr.mxu0 0.0
        %2138 = vmatpush1.msra.mxu0 0.0
        %2139 = vmatprep.subr.mxu0 0.0
        %2140 = vmatpush1.msra.mxu0 0.0
        %2141 = vmatprep.subr.mxu0 0.0
        %2142 = vmatpush1.msra.mxu0 0.0
        %2143 = vmatprep.subr.mxu0 0.0
        %2144 = vmatpush1.msra.mxu0 0.0
        %2145 = vmatprep.subr.mxu0 0.0
        %2146 = vmatpush1.msra.mxu0 0.0
        %2147 = vmatprep.subr.mxu0 0.0
        %2148 = vmatpush1.msra.mxu0 0.0
        %2149 = vmatprep.subr.mxu0 0.0
        %2150 = vmatpush1.msra.mxu0 0.0
        %2151 = vmatprep.mubr.f32.mxu0 0.0
        %2152 = vmatmul.mubr.f32.gmra.mrb[0].mxu0 %v2085
        %v2153 = vpop.f32.mrb[0].mxu0
        %v2154 = vadd.f32 0.0, %v2153
        %v2155 = vpop.f32.mrb[0].mxu0
        %2156 = vdwg.mxu0
        %2158 = vrot.lane.b32.xlu0 %v1824, 8
        %v2159 = vpop.permute.xlu0 %2158
        %2162 = vrot.lane.b32.xlu0 %v1989, 16
        %v2163 = vpop.permute.xlu0 %2162
        %2166 = vrot.lane.b32.xlu0 %v2154, 24
        %v2167 = vpop.permute.xlu0 %2166
        %v2169 = vsel %vm821, %v1659, %v2159
        %v2170 = vsel %vm1492, %v2169, %v2163
        %v2171 = vsel %vm1494, %v2170, %v2167
        %v2172 = vld [vmem:[%s636] sm:$0xff]
        %v2173 = vld [vmem:[%s636 + $0x8] sm:$0xff]
        %v2174 = vld [vmem:[%s636 + $0x10] sm:$0xff]
        %v2175 = vld [vmem:[%s636 + $0x18] sm:$0xff]
        %v2176 = vld [vmem:[%s639] sm:$0x1]
        %v2178 = vlaneseq
        %v2179 = vshrl.u32 %v2178, 7
        %v2180 = vsub.s32 0, %v2179
        %v2181 = vrot.slane %v2176, %v2180
        %v2184 = vsel %vm681, %v1495, 0
        %v2187 = vsel %vm681, %v2171, 0
        %2189 = vmatprep.subr.mxu0 0.0
        %2190 = vmatpush1.msra.mxu0 %v2172
        %2191 = vmatprep.subr.mxu0 0.0
        %2192 = vmatpush1.msra.mxu0 %v2173
        %2193 = vmatprep.subr.mxu0 0.0
        %2194 = vmatpush1.msra.mxu0 %v2174
        %2195 = vmatprep.subr.mxu0 0.0
        %2196 = vmatpush1.msra.mxu0 %v2175
        %2197 = vmatprep.subr.mxu0 0.0
        %2198 = vmatpush1.msra.mxu0 0.0
        %2199 = vmatprep.subr.mxu0 0.0
        %2200 = vmatpush1.msra.mxu0 0.0
        %2201 = vmatprep.subr.mxu0 0.0
        %2202 = vmatpush1.msra.mxu0 0.0
        %2203 = vmatprep.subr.mxu0 0.0
        %2204 = vmatpush1.msra.mxu0 0.0
        %2205 = vmatprep.subr.mxu0 0.0
        %2206 = vmatpush1.msra.mxu0 0.0
        %2207 = vmatprep.subr.mxu0 0.0
        %2208 = vmatpush1.msra.mxu0 0.0
        %2209 = vmatprep.subr.mxu0 0.0
        %2210 = vmatpush1.msra.mxu0 0.0
        %2211 = vmatprep.subr.mxu0 0.0
        %2212 = vmatpush1.msra.mxu0 0.0
        %2213 = vmatprep.subr.mxu0 0.0
        %2214 = vmatpush1.msra.mxu0 0.0
        %2215 = vmatprep.subr.mxu0 0.0
        %2216 = vmatpush1.msra.mxu0 0.0
        %2217 = vmatprep.subr.mxu0 0.0
        %2218 = vmatpush1.msra.mxu0 0.0
        %2219 = vmatprep.subr.mxu0 0.0
        %2220 = vmatpush1.msra.mxu0 0.0
        %2221 = vmatprep.subr.mxu0 0.0
        %2222 = vmatpush1.msra.mxu0 0.0
        %2223 = vmatprep.subr.mxu0 0.0
        %2224 = vmatpush1.msra.mxu0 0.0
        %2225 = vmatprep.subr.mxu0 0.0
        %2226 = vmatpush1.msra.mxu0 0.0
        %2227 = vmatprep.subr.mxu0 0.0
        %2228 = vmatpush1.msra.mxu0 0.0
        %2229 = vmatprep.subr.mxu0 0.0
        %2230 = vmatpush1.msra.mxu0 0.0
        %2231 = vmatprep.subr.mxu0 0.0
        %2232 = vmatpush1.msra.mxu0 0.0
        %2233 = vmatprep.subr.mxu0 0.0
        %2234 = vmatpush1.msra.mxu0 0.0
        %2235 = vmatprep.subr.mxu0 0.0
        %2236 = vmatpush1.msra.mxu0 0.0
        %2237 = vmatprep.subr.mxu0 0.0
        %2238 = vmatpush1.msra.mxu0 0.0
        %2239 = vmatprep.subr.mxu0 0.0
        %2240 = vmatpush1.msra.mxu0 0.0
        %2241 = vmatprep.subr.mxu0 0.0
        %2242 = vmatpush1.msra.mxu0 0.0
        %2243 = vmatprep.subr.mxu0 0.0
        %2244 = vmatpush1.msra.mxu0 0.0
        %2245 = vmatprep.subr.mxu0 0.0
        %2246 = vmatpush1.msra.mxu0 0.0
        %2247 = vmatprep.subr.mxu0 0.0
        %2248 = vmatpush1.msra.mxu0 0.0
        %2249 = vmatprep.subr.mxu0 0.0
        %2250 = vmatpush1.msra.mxu0 0.0
        %2251 = vmatprep.subr.mxu0 0.0
        %2252 = vmatpush1.msra.mxu0 0.0
        %2253 = vmatprep.mubr.f32.mxu0 0.0
        %2254 = vmatmul.mubr.f32.gmra.mrb[0].mxu0 %v2184
        %v2255 = vpop.f32.mrb[0].mxu0
        %v2256 = vadd.f32 %v2181, %v2255
        %v2257 = vpop.f32.mrb[0].mxu0
        %2258 = vmatprep.mubr.f32.mxu0 0.0
        %2259 = vmatmul.mubr.f32.gmra.mrb[0].mxu0 %v2187
        %v2260 = vpop.f32.mrb[0].mxu0
        %v2261 = vadd.f32 %v2181, %v2260
        %v2262 = vpop.f32.mrb[0].mxu0
        %2263 = vdwg.mxu0
        %v2264 = vadd.f32 %v677, %v2256
        %v2265 = vadd.f32 %v678, %v2261
        %v2266 = vld [vmem:[%s664] sm:$0x1]
        %v2267 = vld [vmem:[%s667] sm:$0x1]
        %v2268 = vsel %vm681, %v2264, 0.0
        %2269 = vadd.xlane.f32.xlu0 %v2268
        %v2270 = vpop.xlane.xlu0 %2269
        %v2271 = vsel %vm681, %v2265, 0.0
        %2272 = vadd.xlane.f32.xlu0 %v2271
        %v2273 = vpop.xlane.xlu0 %2272
        %v2274 = vmul.f32 %v2270, %v688
        %v2275 = vmul.f32 %v2273, %v688
        %v2276 = vsub.f32 %v2264, %v2274
        %v2277 = vsub.f32 %v2265, %v2275
        %v2278 = vmul.f32 %v2276, %v2276
        %v2279 = vmul.f32 %v2277, %v2277
        %v2280 = vsel %vm681, %v2278, 0.0
        %2281 = vadd.xlane.f32.xlu0 %v2280
        %v2282 = vpop.xlane.xlu0 %2281
        %v2283 = vsel %vm681, %v2279, 0.0
        %2284 = vadd.xlane.f32.xlu0 %v2283
        %v2285 = vpop.xlane.xlu0 %2284
        %v2286 = vmul.f32 %v2282, %v688
        %v2287 = vmul.f32 %v2285, %v688
        %v2288 = vadd.f32 %v2286, 1e-05
        %v2289 = vadd.f32 %v2287, 1e-05
        %v2290 = vrsqrt.pop %v2288
        %v2291 = vrsqrt.pop %v2289
        %v2292 = vmul.f32 %v2276, %v2290
        %v2293 = vmul.f32 %v2277, %v2291
        %v2295 = vlaneseq
        %v2296 = vshrl.u32 %v2295, 7
        %v2297 = vsub.s32 0, %v2296
        %v2298 = vrot.slane %v2266, %v2297
        %v2300 = vmul.f32 %v2292, %v2298
        %v2301 = vmul.f32 %v2293, %v2298
        %v2303 = vlaneseq
        %v2304 = vshrl.u32 %v2303, 7
        %v2305 = vsub.s32 0, %v2304
        %v2306 = vrot.slane %v2267, %v2305
        %v2308 = vadd.f32 %v2300, %v2306
        %v2309 = vadd.f32 %v2301, %v2306
        %v2310 = vld [vmem:[%s644] sm:$0xff]
        %v2311 = vld [vmem:[%s644 + $0x8] sm:$0xff]
        %v2312 = vld [vmem:[%s644 + $0x10] sm:$0xff]
        %v2313 = vld [vmem:[%s644 + $0x18] sm:$0xff]
        %v2314 = vld [vmem:[%s647] sm:$0x1]
        %v2316 = vlaneseq
        %v2317 = vshrl.u32 %v2316, 7
        %v2318 = vsub.s32 0, %v2317
        %v2319 = vrot.slane %v2314, %v2318
        %v2322 = vsel %vm681, %v2308, 0
        %v2325 = vsel %vm681, %v2309, 0
        %2327 = vmatprep.subr.mxu0 0.0
        %2328 = vmatpush1.msra.mxu0 %v2310
        %2329 = vmatprep.subr.mxu0 0.0
        %2330 = vmatpush1.msra.mxu0 %v2311
        %2331 = vmatprep.subr.mxu0 0.0
        %2332 = vmatpush1.msra.mxu0 %v2312
        %2333 = vmatprep.subr.mxu0 0.0
        %2334 = vmatpush1.msra.mxu0 %v2313
        %2335 = vmatprep.subr.mxu0 0.0
        %2336 = vmatpush1.msra.mxu0 0.0
        %2337 = vmatprep.subr.mxu0 0.0
        %2338 = vmatpush1.msra.mxu0 0.0
        %2339 = vmatprep.subr.mxu0 0.0
        %2340 = vmatpush1.msra.mxu0 0.0
        %2341 = vmatprep.subr.mxu0 0.0
        %2342 = vmatpush1.msra.mxu0 0.0
        %2343 = vmatprep.subr.mxu0 0.0
        %2344 = vmatpush1.msra.mxu0 0.0
        %2345 = vmatprep.subr.mxu0 0.0
        %2346 = vmatpush1.msra.mxu0 0.0
        %2347 = vmatprep.subr.mxu0 0.0
        %2348 = vmatpush1.msra.mxu0 0.0
        %2349 = vmatprep.subr.mxu0 0.0
        %2350 = vmatpush1.msra.mxu0 0.0
        %2351 = vmatprep.subr.mxu0 0.0
        %2352 = vmatpush1.msra.mxu0 0.0
        %2353 = vmatprep.subr.mxu0 0.0
        %2354 = vmatpush1.msra.mxu0 0.0
        %2355 = vmatprep.subr.mxu0 0.0
        %2356 = vmatpush1.msra.mxu0 0.0
        %2357 = vmatprep.subr.mxu0 0.0
        %2358 = vmatpush1.msra.mxu0 0.0
        %2359 = vmatprep.subr.mxu0 0.0
        %2360 = vmatpush1.msra.mxu0 0.0
        %2361 = vmatprep.subr.mxu0 0.0
        %2362 = vmatpush1.msra.mxu0 0.0
        %2363 = vmatprep.subr.mxu0 0.0
        %2364 = vmatpush1.msra.mxu0 0.0
        %2365 = vmatprep.subr.mxu0 0.0
        %2366 = vmatpush1.msra.mxu0 0.0
        %2367 = vmatprep.subr.mxu0 0.0
        %2368 = vmatpush1.msra.mxu0 0.0
        %2369 = vmatprep.subr.mxu0 0.0
        %2370 = vmatpush1.msra.mxu0 0.0
        %2371 = vmatprep.subr.mxu0 0.0
        %2372 = vmatpush1.msra.mxu0 0.0
        %2373 = vmatprep.subr.mxu0 0.0
        %2374 = vmatpush1.msra.mxu0 0.0
        %2375 = vmatprep.subr.mxu0 0.0
        %2376 = vmatpush1.msra.mxu0 0.0
        %2377 = vmatprep.subr.mxu0 0.0
        %2378 = vmatpush1.msra.mxu0 0.0
        %2379 = vmatprep.subr.mxu0 0.0
        %2380 = vmatpush1.msra.mxu0 0.0
        %2381 = vmatprep.subr.mxu0 0.0
        %2382 = vmatpush1.msra.mxu0 0.0
        %2383 = vmatprep.subr.mxu0 0.0
        %2384 = vmatpush1.msra.mxu0 0.0
        %2385 = vmatprep.subr.mxu0 0.0
        %2386 = vmatpush1.msra.mxu0 0.0
        %2387 = vmatprep.subr.mxu0 0.0
        %2388 = vmatpush1.msra.mxu0 0.0
        %2389 = vmatprep.subr.mxu0 0.0
        %2390 = vmatpush1.msra.mxu0 0.0
        %2391 = vmatprep.mubr.f32.mxu0 0.0
        %2392 = vmatmul.mubr.f32.gmra.mrb[0].mxu0 %v2322
        %v2393 = vpop.f32.mrb[0].mxu0
        %v2394 = vadd.f32 %v2319, %v2393
        %v2395 = vpop.f32.mrb[0].mxu0
        %2396 = vmatprep.mubr.f32.mxu0 0.0
        %2397 = vmatmul.mubr.f32.gmra.mrb[0].mxu0 %v2325
        %v2398 = vpop.f32.mrb[0].mxu0
        %v2399 = vadd.f32 %v2319, %v2398
        %v2400 = vpop.f32.mrb[0].mxu0
        %2401 = vdwg.mxu0
        %v2402 = vmax.f32 %v2394, 0.0
        %v2403 = vmax.f32 %v2399, 0.0
        %v2404 = vld [vmem:[%s652] sm:$0xff]
        %v2405 = vld [vmem:[%s652 + $0x8] sm:$0xff]
        %v2406 = vld [vmem:[%s652 + $0x10] sm:$0xff]
        %v2407 = vld [vmem:[%s652 + $0x18] sm:$0xff]
        %v2408 = vld [vmem:[%s652 + $0x20] sm:$0xff]
        %v2409 = vld [vmem:[%s652 + $0x28] sm:$0xff]
        %v2410 = vld [vmem:[%s652 + $0x30] sm:$0xff]
        %v2411 = vld [vmem:[%s652 + $0x38] sm:$0xff]
        %v2412 = vld [vmem:[%s655] sm:$0x1]
        %v2414 = vlaneseq
        %v2415 = vshrl.u32 %v2414, 7
        %v2416 = vsub.s32 0, %v2415
        %v2417 = vrot.slane %v2412, %v2416
        %vm2419 = vcmask 523264
        %v2421 = vsel %vm2419, %v2402, 0
        %v2424 = vsel %vm2419, %v2403, 0
        %2426 = vmatprep.subr.mxu0 0.0
        %2427 = vmatpush1.msra.mxu0 %v2404
        %2428 = vmatprep.subr.mxu0 0.0
        %2429 = vmatpush1.msra.mxu0 %v2405
        %2430 = vmatprep.subr.mxu0 0.0
        %2431 = vmatpush1.msra.mxu0 %v2406
        %2432 = vmatprep.subr.mxu0 0.0
        %2433 = vmatpush1.msra.mxu0 %v2407
        %2434 = vmatprep.subr.mxu0 0.0
        %2435 = vmatpush1.msra.mxu0 %v2408
        %2436 = vmatprep.subr.mxu0 0.0
        %2437 = vmatpush1.msra.mxu0 %v2409
        %2438 = vmatprep.subr.mxu0 0.0
        %2439 = vmatpush1.msra.mxu0 %v2410
        %2440 = vmatprep.subr.mxu0 0.0
        %2441 = vmatpush1.msra.mxu0 %v2411
        %2442 = vmatprep.subr.mxu0 0.0
        %2443 = vmatpush1.msra.mxu0 0.0
        %2444 = vmatprep.subr.mxu0 0.0
        %2445 = vmatpush1.msra.mxu0 0.0
        %2446 = vmatprep.subr.mxu0 0.0
        %2447 = vmatpush1.msra.mxu0 0.0
        %2448 = vmatprep.subr.mxu0 0.0
        %2449 = vmatpush1.msra.mxu0 0.0
        %2450 = vmatprep.subr.mxu0 0.0
        %2451 = vmatpush1.msra.mxu0 0.0
        %2452 = vmatprep.subr.mxu0 0.0
        %2453 = vmatpush1.msra.mxu0 0.0
        %2454 = vmatprep.subr.mxu0 0.0
        %2455 = vmatpush1.msra.mxu0 0.0
        %2456 = vmatprep.subr.mxu0 0.0
        %2457 = vmatpush1.msra.mxu0 0.0
        %2458 = vmatprep.subr.mxu0 0.0
        %2459 = vmatpush1.msra.mxu0 0.0
        %2460 = vmatprep.subr.mxu0 0.0
        %2461 = vmatpush1.msra.mxu0 0.0
        %2462 = vmatprep.subr.mxu0 0.0
        %2463 = vmatpush1.msra.mxu0 0.0
        %2464 = vmatprep.subr.mxu0 0.0
        %2465 = vmatpush1.msra.mxu0 0.0
        %2466 = vmatprep.subr.mxu0 0.0
        %2467 = vmatpush1.msra.mxu0 0.0
        %2468 = vmatprep.subr.mxu0 0.0
        %2469 = vmatpush1.msra.mxu0 0.0
        %2470 = vmatprep.subr.mxu0 0.0
        %2471 = vmatpush1.msra.mxu0 0.0
        %2472 = vmatprep.subr.mxu0 0.0
        %2473 = vmatpush1.msra.mxu0 0.0
        %2474 = vmatprep.subr.mxu0 0.0
        %2475 = vmatpush1.msra.mxu0 0.0
        %2476 = vmatprep.subr.mxu0 0.0
        %2477 = vmatpush1.msra.mxu0 0.0
        %2478 = vmatprep.subr.mxu0 0.0
        %2479 = vmatpush1.msra.mxu0 0.0
        %2480 = vmatprep.subr.mxu0 0.0
        %2481 = vmatpush1.msra.mxu0 0.0
        %2482 = vmatprep.subr.mxu0 0.0
        %2483 = vmatpush1.msra.mxu0 0.0
        %2484 = vmatprep.subr.mxu0 0.0
        %2485 = vmatpush1.msra.mxu0 0.0
        %2486 = vmatprep.subr.mxu0 0.0
        %2487 = vmatpush1.msra.mxu0 0.0
        %2488 = vmatprep.subr.mxu0 0.0
        %2489 = vmatpush1.msra.mxu0 0.0
        %2490 = vmatprep.mubr.f32.mxu0 0.0
        %2491 = vmatmul.mubr.f32.gmra.mrb[0].mxu0 %v2421
        %v2492 = vpop.f32.mrb[0].mxu0
        %v2493 = vadd.f32 %v2417, %v2492
        %v2494 = vpop.f32.mrb[0].mxu0
        %2495 = vmatprep.mubr.f32.mxu0 0.0
        %2496 = vmatmul.mubr.f32.gmra.mrb[0].mxu0 %v2424
        %v2497 = vpop.f32.mrb[0].mxu0
        %v2498 = vadd.f32 %v2417, %v2497
        %v2499 = vpop.f32.mrb[0].mxu0
        %2500 = vdwg.mxu0
        %v2501 = vadd.f32 %v2264, %v2493
        %v2502 = vadd.f32 %v2265, %v2498
        %2503 = vst.msk [vmem:[#allocation2] sm:$0xff] %vm681, %v2501
        %2504 = vst.msk [vmem:[#allocation2 + $0x8] sm:$0xff] %vm681, %v2502
        %p2505 = scmp.eq.s32.totalorder %s28, 1
        // Predicated region
        $region89: #{transformer_encoder.1} parent=79 // pred_check
          %p2506 = pneg %p2505
        $region90: #{transformer_encoder.1} parent=79 // pred_check_branch
          %2508 = sbr.rel (%p2506) target = $region92
        $region91: #{transformer_encoder.1} parent=79 // pred_region
          %v2509 = vld [vmem:[%s13] sm:$0x1]
          %v2510 = vld [vmem:[%s14] sm:$0x1]
          %v2511 = vsel %vm681, %v2501, 0.0
          %2512 = vadd.xlane.f32.xlu0 %v2511
          %v2513 = vpop.xlane.xlu0 %2512
          %v2514 = vsel %vm681, %v2502, 0.0
          %2515 = vadd.xlane.f32.xlu0 %v2514
          %v2516 = vpop.xlane.xlu0 %2515
          %v2517 = vmul.f32 %v2513, %v688
          %v2518 = vmul.f32 %v2516, %v688
          %v2519 = vsub.f32 %v2501, %v2517
          %v2520 = vsub.f32 %v2502, %v2518
          %v2521 = vmul.f32 %v2519, %v2519
          %v2522 = vmul.f32 %v2520, %v2520
          %v2523 = vsel %vm681, %v2521, 0.0
          %2524 = vadd.xlane.f32.xlu0 %v2523
          %v2525 = vpop.xlane.xlu0 %2524
          %v2526 = vsel %vm681, %v2522, 0.0
          %2527 = vadd.xlane.f32.xlu0 %v2526
          %v2528 = vpop.xlane.xlu0 %2527
          %v2529 = vmul.f32 %v2525, %v688
          %v2530 = vmul.f32 %v2528, %v688
          %v2531 = vadd.f32 %v2529, 1e-05
          %v2532 = vadd.f32 %v2530, 1e-05
          %v2533 = vrsqrt.pop %v2531
          %v2534 = vrsqrt.pop %v2532
          %v2535 = vmul.f32 %v2519, %v2533
          %v2536 = vmul.f32 %v2520, %v2534
          %v2538 = vlaneseq
          %v2539 = vshrl.u32 %v2538, 7
          %v2540 = vsub.s32 0, %v2539
          %v2541 = vrot.slane %v2509, %v2540
          %v2543 = vmul.f32 %v2535, %v2541
          %v2544 = vmul.f32 %v2536, %v2541
          %v2546 = vlaneseq
          %v2547 = vshrl.u32 %v2546, 7
          %v2548 = vsub.s32 0, %v2547
          %v2549 = vrot.slane %v2510, %v2548
          %v2551 = vadd.f32 %v2543, %v2549
          %v2552 = vadd.f32 %v2544, %v2549
          %2553 = vst.msk [vmem:[#allocation6] sm:$0xff] %vm681, %v2551
          %2554 = vst.msk [vmem:[#allocation6 + $0x8] sm:$0xff] %vm681, %v2552
        $region92: #{transformer_encoder.1} parent=79 // pred_fallthru
          _
        // Predicated region
        $region93: #{transformer_encoder.1} parent=79 // pred_check
          %p2555 = pneg %p416
        $region94: #{transformer_encoder.1} parent=79 // pred_check_branch
          %2557 = sbr.rel (%p2555) target = $region96
        $region95: #{transformer_encoder.1} parent=79 // pred_region
          %s2559 = ssub.s32 256, 256
          %2560 = vsyncadd [#allocation5], %s2559
          %s2561 = sshll.u32 [#allocation6], 4
          %s2562 = int_to_ptr.vmem [resolvable:$true] %s2561
          %2567 = dma.vmem_to_hbm [thread:$0]  %s2562, 256, %s15, [#allocation5], 128, 128, 8
        $region96: #{transformer_encoder.1} parent=79 // pred_fallthru
          _
        // Predicated region
        $region97: #{transformer_encoder.1} parent=79 // pred_check
          %p2568 = pneg %p416
        $region98: #{transformer_encoder.1} parent=79 // pred_check_branch
          %2570 = sbr.rel (%p2568) target = $region100
        $region99: #{transformer_encoder.1} parent=79 // pred_region
          %2571 = dma.done [#allocation5], 256
        $region100: #{transformer_encoder.1} parent=79 // pred_fallthru
          _
      $region80: #{transformer_encoder.1} parent=5 // pred_fallthru
        _
      %p2572 = scmp.le.s32.totalorder 2, %s23
      // Predicated region
      $region101: #{transformer_encoder.1} parent=5 // pred_check
        %p2573 = pneg %p2572
      $region102: #{transformer_encoder.1} parent=5 // pred_check_branch
        %2575 = sbr.rel (%p2573) target = $region104
      $region103: #{transformer_encoder.1} parent=5 // pred_region
        %s2576 = ssub.s32 %s23, 2
      $region104: #{transformer_encoder.1} parent=5 // pred_fallthru
        _
    $region6: #{transformer_encoder.1} parent=1 // loop_footer
      %s27 = sadd.s32 1, %s23
    $region7: #{transformer_encoder.1} parent=1 // loop_footer_branch
      %22 = sbr.rel target = $region3
    $region8: #{transformer_encoder.1} parent=1 // loop_exit
      _
    %2577 = vsyncpa [#allocation4], 1
    %s2578 = scalar_lea.sflag [#allocation4], 1
    %2579 = vsyncpa %s2578, 1
    %2580 = vsyncpa [#allocation5], 1
    %s2581 = scalar_lea.sflag [#allocation5], 1
    %2582 = vsyncpa %s2581, 1

</llo_original>
